<compile_context>
chip_gen: v5e
topology: v5e:2x2
jax: 0.10.0
libtpu: 0.0.40
codegen_flags: <defaults>
</compile_context>

<pallas_src>
import numpy as np
import jax
import jax.numpy as jnp
from jax import lax
from jax.experimental import pallas as pl
from jax.experimental.pallas import tpu as pltpu


def _round_up(n, m):
    return ((n + m - 1) // m) * m


# ----------------------------- Pallas kernel --------------------------------
def pinn_kernel(inp_ref,
                w1t_ref, b1_ref, w2_ref, b2_ref, w3_ref, b3_ref,
                w4_ref, b4_ref, w5_ref, b5_ref,
                lam_ref,
                out_ref,
                st_ref):
    f32 = jnp.float32
    bf16 = jnp.bfloat16
    TN = inp_ref.shape[1]          # lane tile (batch columns)

    # channel order in the stacked scratch st_ref (H, 13*TN):
    # 0:v 1:x 2:y 3:t 4:xx 5:xy 6:xt 7:yy 8:yt 9:xxx 10:xxy 11:xyy 12:yyy
    def sl(c):
        return slice(c * TN, (c + 1) * TN)

    A = inp_ref[...]               # (8, TN) f32: rows 0..2 = x, y, t, rest 0
    W1t = w1t_ref[...]             # (H, 8) f32: cols 0..2 = W1^T, rest 0
    b1 = b1_ref[...]               # (H, 1)  f32

    xr = A[0:1, :]
    yr = A[1:2, :]
    tr = A[2:3, :]
    gx = W1t[:, 0:1]               # dz/dx  (H, 1) — exact one-hot seed
    gy = W1t[:, 1:2]               # dz/dy
    gt = W1t[:, 2:3]               # dz/dt

    # ---- layer 1: exact f32 rank-1 updates (tiny; avoids MXU precision) ----
    z = gx * xr + gy * yr + gt * tr + b1          # (H, TN)

    h = jnp.tanh(z)
    hsq = h * h
    h1 = 1.0 - hsq                 # tanh'
    h2 = -2.0 * h * h1             # tanh''
    h3 = 2.0 * h1 * (3.0 * hsq - 1.0)   # tanh'''

    gx2 = gx * gx
    gy2 = gy * gy
    gxgy = gx * gy

    # all 2nd/3rd-order z-channels are exactly 0 after the first linear
    st_ref[:, sl(0)] = h.astype(bf16)
    st_ref[:, sl(1)] = (h1 * gx).astype(bf16)
    st_ref[:, sl(2)] = (h1 * gy).astype(bf16)
    st_ref[:, sl(3)] = (h1 * gt).astype(bf16)
    st_ref[:, sl(4)] = (h2 * gx2).astype(bf16)
    st_ref[:, sl(5)] = (h2 * gxgy).astype(bf16)
    st_ref[:, sl(6)] = (h2 * (gx * gt)).astype(bf16)
    st_ref[:, sl(7)] = (h2 * gy2).astype(bf16)
    st_ref[:, sl(8)] = (h2 * (gy * gt)).astype(bf16)
    st_ref[:, sl(9)] = (h3 * (gx2 * gx)).astype(bf16)
    st_ref[:, sl(10)] = (h3 * (gx2 * gy)).astype(bf16)
    st_ref[:, sl(11)] = (h3 * (gx * gy2)).astype(bf16)
    st_ref[:, sl(12)] = (h3 * (gy2 * gy)).astype(bf16)

    # ---- mid layers 2..4: ONE bf16 stacked matmul + f32 tanh chain rule ----
    def mid_layer(w_ref, b_ref):
        # (H, H) bf16 @ (H, 13*TN) bf16 -> f32 accumulate: single MXU pass,
        # stationary weight loaded once for all 13 channels.
        Z = jnp.dot(w_ref[...], st_ref[...], preferred_element_type=f32)
        b = b_ref[...]                         # (H, 1) f32

        zv = Z[:, sl(0)] + b                   # bias only on the value channel
        zx = Z[:, sl(1)]
        zy = Z[:, sl(2)]
        zt = Z[:, sl(3)]
        zxx = Z[:, sl(4)]
        zxy = Z[:, sl(5)]
        zxt = Z[:, sl(6)]
        zyy = Z[:, sl(7)]
        zyt = Z[:, sl(8)]
        zxxx = Z[:, sl(9)]
        zxxy = Z[:, sl(10)]
        zxyy = Z[:, sl(11)]
        zyyy = Z[:, sl(12)]

        hv = jnp.tanh(zv)
        hq = hv * hv
        d1 = 1.0 - hq
        d2 = -2.0 * hv * d1
        d3 = 2.0 * d1 * (3.0 * hq - 1.0)

        # hand-CSE of the chain-rule products
        zx2 = zx * zx
        zy2 = zy * zy
        d2zx = d2 * zx
        d2zy = d2 * zy
        d3zx2 = d3 * zx2
        d3zy2 = d3 * zy2

        # compute -> cast -> store one channel at a time (keeps peak VMEM low);
        # Z was already consumed by the dot, so overwriting st_ref is safe.
        st_ref[:, sl(0)] = hv.astype(bf16)
        st_ref[:, sl(1)] = (d1 * zx).astype(bf16)
        st_ref[:, sl(2)] = (d1 * zy).astype(bf16)
        st_ref[:, sl(3)] = (d1 * zt).astype(bf16)
        st_ref[:, sl(4)] = (d2 * zx2 + d1 * zxx).astype(bf16)
        st_ref[:, sl(5)] = (d2zx * zy + d1 * zxy).astype(bf16)
        st_ref[:, sl(6)] = (d2zx * zt + d1 * zxt).astype(bf16)
        st_ref[:, sl(7)] = (d2 * zy2 + d1 * zyy).astype(bf16)
        st_ref[:, sl(8)] = (d2zy * zt + d1 * zyt).astype(bf16)
        st_ref[:, sl(9)] = (d3zx2 * zx + 3.0 * (d2zx * zxx)
                            + d1 * zxxx).astype(bf16)
        st_ref[:, sl(10)] = (d3zx2 * zy + d2 * (zxx * zy)
                             + 2.0 * (d2zx * zxy) + d1 * zxxy).astype(bf16)
        st_ref[:, sl(11)] = (d3zy2 * zx + d2 * (zyy * zx)
                             + 2.0 * (d2zy * zxy) + d1 * zxyy).astype(bf16)
        st_ref[:, sl(12)] = (d3zy2 * zy + 3.0 * (d2zy * zyy)
                             + d1 * zyyy).astype(bf16)

    mid_layer(w2_ref, b2_ref)
    mid_layer(w3_ref, b3_ref)
    mid_layer(w4_ref, b4_ref)

    # ---- last layer: one stacked bf16 matmul over all channels ----
    O = jnp.dot(w5_ref[...], st_ref[...], preferred_element_type=f32)
    b5 = b5_ref[...]                           # (out_p, 1) f32

    o = O[:, sl(0)] + b5
    ox = O[:, sl(1)]
    oy = O[:, sl(2)]
    # channel 3 (t) of the last layer is never used downstream
    oxx = O[:, sl(4)]
    oxy = O[:, sl(5)]
    oxt = O[:, sl(6)]
    oyy = O[:, sl(7)]
    oyt = O[:, sl(8)]
    oxxx = O[:, sl(9)]
    oxxy = O[:, sl(10)]
    oxyy = O[:, sl(11)]
    oyyy = O[:, sl(12)]

    # row 0 = stream function s, row 1 = pressure p
    p_pred = o[1:2, :]
    u_pred = oy[0:1, :]            # ds/dy
    v_pred = -ox[0:1, :]           # -ds/dx

    u_t = oyt[0:1, :]
    v_t = -oxt[0:1, :]
    u_x = oxy[0:1, :]
    v_x = -oxx[0:1, :]
    u_y = oyy[0:1, :]
    v_y = -oxy[0:1, :]
    p_x = ox[1:2, :]
    p_y = oy[1:2, :]
    u_xx = oxxy[0:1, :]
    v_xx = -oxxx[0:1, :]
    u_yy = oyyy[0:1, :]
    v_yy = -oxyy[0:1, :]

    lam1 = lam_ref[0]
    lam2 = lam_ref[1]

    f = lam1 * (u_t + u_pred * u_x + v_pred * u_y) + p_x - lam2 * (u_xx + u_yy)
    g = lam1 * (v_t + u_pred * v_x + v_pred * v_y) + p_y - lam2 * (v_xx + v_yy)

    # lane-dense writes into the (8, TN) output block (rows 5..7 zero-padded)
    out_ref[0:1, :] = p_pred
    out_ref[1:2, :] = u_pred
    out_ref[2:3, :] = v_pred
    out_ref[3:4, :] = f
    out_ref[4:5, :] = g
    out_ref[5:8, :] = jnp.zeros((3, TN), f32)


# --------------------------- generation-aware tiling -------------------------
def _select_tiling(hidden_pad):
    try:
        kind = jax.devices()[0].device_kind.lower()
    except Exception:
        kind = ""
    # 128 MiB-VMEM chips get the big tile; v7x/unknown stay conservative (64 MiB).
    big_vmem = any(tag in kind for tag in
                   ("v5e", "v5 lite", "v5litepod", "v6e", "v6 lite", "v5p"))
    tile = 8192 if big_vmem else 4096
    vmem_limit = (100 if big_vmem else 56) * 1024 * 1024
    if hidden_pad > 32:
        tile = max(512, ((tile * 32 // hidden_pad) // 128) * 128)
    return tile, vmem_limit


# ------------------------------- wrapper -------------------------------------
def pinn_forward(x, y, t, p, u, v, params, tile_n=None):
    """Mirror of PINN.forward(x, y, t, p, u, v).  p/u/v are accepted for
    signature fidelity but (as in the PyTorch forward) are unused."""
    del p, u, v
    (w1, b1, w2, b2, w3, b3, w4, b4, w5, b5, lam) = params
    N = x.shape[0]
    in_dim, H = w1.shape
    out_dim = w5.shape[1]
    assert in_dim == 3, "PINN.forward stacks exactly (x, y, t)"
    assert out_dim >= 2, "last layer must emit (stream fn, pressure)"

    Hp = _round_up(H, 8)
    out_p = _round_up(max(out_dim, 2), 8)

    auto_tile, vmem_limit = _select_tiling(Hp)
    tile_n = auto_tile if tile_n is None else _round_up(tile_n, 128)

    # tile/pad the batch axis (lane axis of the feature-major layout)
    tile_n = min(tile_n, _round_up(max(N, 1), 128))
    n_pad = _round_up(N, tile_n)
    # guarantee >=2 grid steps where possible so ("parallel",) can split the
    # batch across v7x's two TensorCores (no-op cost on v5e/v6e)
    if n_pad // tile_n < 2 and tile_n > 128:
        tile_n = _round_up(tile_n // 2, 128)
        n_pad = _round_up(N, tile_n)

    f32 = jnp.float32
    bf16 = jnp.bfloat16

    # input as (8, n_pad): rows = x, y, t, 0, 0, 0, 0, 0
    inp = jnp.stack([x, y, t], axis=0).astype(f32)                   # (3, N)
    inp = jnp.pad(inp, ((0, 8 - in_dim), (0, n_pad - N)))            # (8, n_pad)

    # feature-major weights (out, in); hidden dims zero-padded to multiples of 8.
    # Layer 1 stays f32 (exact seeds); layers 2..5 are bf16 (single MXU pass).
    w1t = jnp.pad(w1.astype(f32).T, ((0, Hp - H), (0, 8 - in_dim)))  # (Hp, 8) f32

    def pad_hh(w):
        return jnp.pad(w.astype(f32).T, ((0, Hp - H), (0, Hp - H))).astype(bf16)

    w2t = pad_hh(w2)
    w3t = pad_hh(w3)
    w4t = pad_hh(w4)
    w5t = jnp.pad(w5.astype(f32).T,
                  ((0, out_p - out_dim), (0, Hp - H))).astype(bf16)  # (out_p, Hp)

    def pad_b(b, rows):
        return jnp.pad(b.reshape(-1, 1).astype(f32), ((0, rows - b.size), (0, 0)))

    b1c = pad_b(b1, Hp)
    b2c = pad_b(b2, Hp)
    b3c = pad_b(b3, Hp)
    b4c = pad_b(b4, Hp)
    b5c = pad_b(b5, out_p)

    const2 = lambda i: (0, 0)
    batch2 = lambda i: (0, i)

    in_specs = [
        pl.BlockSpec((8, tile_n), batch2),                 # stacked input
        pl.BlockSpec(w1t.shape, const2), pl.BlockSpec(b1c.shape, const2),
        pl.BlockSpec(w2t.shape, const2), pl.BlockSpec(b2c.shape, const2),
        pl.BlockSpec(w3t.shape, const2), pl.BlockSpec(b3c.shape, const2),
        pl.BlockSpec(w4t.shape, const2), pl.BlockSpec(b4c.shape, const2),
        pl.BlockSpec(w5t.shape, const2), pl.BlockSpec(b5c.shape, const2),
        pl.BlockSpec(memory_space=pltpu.MemorySpace.SMEM),  # (lambda1, lambda2)
    ]
    out_spec = pl.BlockSpec((8, tile_n), batch2)

    out = pl.pallas_call(
        pinn_kernel,
        out_shape=jax.ShapeDtypeStruct((8, n_pad), f32),
        grid=(n_pad // tile_n,),
        in_specs=in_specs,
        out_specs=out_spec,
        scratch_shapes=[pltpu.VMEM((Hp, 13 * tile_n), bf16)],
        compiler_params=pltpu.CompilerParams(
            dimension_semantics=("parallel",),
            vmem_limit_bytes=vmem_limit,
        ),
    )(inp, w1t, b1c, w2t, b2c, w3t, b3c, w4t, b4c, w5t, b5c,
      lam.astype(f32))

    out = out[:, :N]
    return {
        "p_pred": out[0],
        "u_pred": out[1],
        "v_pred": out[2],
        "f": out[3],
        "g": out[4],
    }


# ----------------------- deterministic parameter init ------------------------
def init_params(key, input_dim, hidden_dim, output_dim):
    dims = [(input_dim, hidden_dim), (hidden_dim, hidden_dim),
            (hidden_dim, hidden_dim), (hidden_dim, hidden_dim),
            (hidden_dim, output_dim)]
    keys = jax.random.split(key, len(dims))
    params = []
    for k, (fi, fo) in zip(keys, dims):
        std = (2.0 / (fi + fo)) ** 0.5       # xavier_normal_, gain=1
        W = std * jax.random.normal(k, (fi, fo), jnp.float32)
        b = jnp.zeros((1, fo), jnp.float32)  # constant_(bias, 0.0)
        params += [W, b]
    lam = jnp.array([1.0, 0.01], jnp.float32)    # lambda1, lambda2
    return tuple(params) + (lam,)


# ------------------------- pure-JAX autodiff reference ------------------------
def ref_forward(x, y, t, params):
    (w1, b1, w2, b2, w3, b3, w4, b4, w5, b5, lam) = params
    lam1, lam2 = lam[0], lam[1]
    Ws = [w1, w2, w3, w4, w5]
    bs = [b1, b2, b3, b4, b5]
    hi = lax.Precision.HIGHEST               # true-f32 reference

    def net(pt):
        a = pt
        for W, b in zip(Ws[:-1], bs[:-1]):
            a = jnp.tanh(jnp.dot(a, W, precision=hi) + b[0])
        return jnp.dot(a, Ws[-1], precision=hi) + bs[-1][0]

    s_fn = lambda pt: net(pt)[0]
    p_fn = lambda pt: net(pt)[1]

    def per_pt(pt):
        gs = jax.grad(s_fn)(pt)
        gp = jax.grad(p_fn)(pt)
        H = jax.hessian(s_fn)(pt)
        T = jax.jacfwd(jax.hessian(s_fn))(pt)
        u = gs[1]
        v = -gs[0]
        u_t, v_t = H[1, 2], -H[0, 2]
        u_x, v_x = H[1, 0], -H[0, 0]
        u_y, v_y = H[1, 1], -H[0, 1]
        p_x, p_y = gp[0], gp[1]
        u_xx, v_xx = T[1, 0, 0], -T[0, 0, 0]
        u_yy, v_yy = T[1, 1, 1], -T[0, 1, 1]
        f = lam1 * (u_t + u * u_x + v * u_y) + p_x - lam2 * (u_xx + u_yy)
        g = lam1 * (v_t + u * v_x + v * v_y) + p_y - lam2 * (v_xx + v_yy)
        return jnp.stack([p_fn(pt), u, v, f, g])

    pts = jnp.stack([x, y, t], axis=1)
    return jax.vmap(per_pt)(pts)             # (N, 5)


# --------------------------------- main --------------------------------------
if __name__ == "__main__":
    N = 8
    input_dim, hidden_dim, output_dim = 3, 32, 2

    key = jax.random.PRNGKey(0)
    k_par, kx, ky, kt, kp, ku, kv = jax.random.split(key, 7)
    params = init_params(k_par, input_dim, hidden_dim, output_dim)

    x = jax.random.normal(kx, (N,), jnp.float32)
    y = jax.random.normal(ky, (N,), jnp.float32)
    t = jax.random.normal(kt, (N,), jnp.float32)
    p = jax.random.normal(kp, (N,), jnp.float32)   # unused in forward (loss only)
    u = jax.random.normal(ku, (N,), jnp.float32)   # unused in forward (loss only)
    v = jax.random.normal(kv, (N,), jnp.float32)   # unused in forward (loss only)

    out = pinn_forward(x, y, t, p, u, v, params)
    jax.block_until_ready(out)

    # Correctness check against a full-precision JAX autodiff reference
    # (same semantics as torch.autograd.grad).  Tolerance accounts for the
    # bf16 operand rounding of the layer-2..5 channel matmuls.
    ref = ref_forward(x, y, t, params)
    got = jnp.stack([out["p_pred"], out["u_pred"], out["v_pred"],
                     out["f"], out["g"]], axis=1)
    np.testing.assert_allclose(np.asarray(got), np.asarray(ref),
                               rtol=2e-2, atol=1e-2)

    print("KERNEL_OK")
</pallas_src>

<mosaic_0001>
module attributes {stable_mosaic.version = 11 : i64} {
  func.func @pinn_kernel(%arg0: i32, %arg1: memref<8x128xf32, #tpu.memory_space<vmem>>, %arg2: memref<32x8xf32, #tpu.memory_space<vmem>>, %arg3: memref<32x1xf32, #tpu.memory_space<vmem>>, %arg4: memref<32x32xbf16, #tpu.memory_space<vmem>>, %arg5: memref<32x1xf32, #tpu.memory_space<vmem>>, %arg6: memref<32x32xbf16, #tpu.memory_space<vmem>>, %arg7: memref<32x1xf32, #tpu.memory_space<vmem>>, %arg8: memref<32x32xbf16, #tpu.memory_space<vmem>>, %arg9: memref<32x1xf32, #tpu.memory_space<vmem>>, %arg10: memref<8x32xbf16, #tpu.memory_space<vmem>>, %arg11: memref<8x1xf32, #tpu.memory_space<vmem>>, %arg12: memref<2xf32, #tpu.memory_space<smem>>, %arg13: memref<8x128xf32, #tpu.memory_space<vmem>>, %arg14: memref<32x1664xbf16, #tpu.memory_space<vmem>>) attributes {dimension_semantics = [#tpu.dimension_semantics<parallel>], iteration_bounds = array<i64: 1>, scalar_prefetch = 0 : i64, scratch_operands = 1 : i64, tpu.core_type = #tpu.core_type<tc>, window_params = [{transform_indices = @transform_0, window_bounds = array<i64: 8, 128>}, {pipeline_mode = #tpu.pipeline_mode<synchronous>, transform_indices = @transform_1, window_bounds = array<i64: 32, 8>}, {pipeline_mode = #tpu.pipeline_mode<synchronous>, transform_indices = @transform_2, window_bounds = array<i64: 32, 1>}, {pipeline_mode = #tpu.pipeline_mode<synchronous>, transform_indices = @transform_3, window_bounds = array<i64: 32, 32>}, {pipeline_mode = #tpu.pipeline_mode<synchronous>, transform_indices = @transform_4, window_bounds = array<i64: 32, 1>}, {pipeline_mode = #tpu.pipeline_mode<synchronous>, transform_indices = @transform_5, window_bounds = array<i64: 32, 32>}, {pipeline_mode = #tpu.pipeline_mode<synchronous>, transform_indices = @transform_6, window_bounds = array<i64: 32, 1>}, {pipeline_mode = #tpu.pipeline_mode<synchronous>, transform_indices = @transform_7, window_bounds = array<i64: 32, 32>}, {pipeline_mode = #tpu.pipeline_mode<synchronous>, transform_indices = @transform_8, window_bounds = array<i64: 32, 1>}, {pipeline_mode = #tpu.pipeline_mode<synchronous>, transform_indices = @transform_9, window_bounds = array<i64: 8, 32>}, {pipeline_mode = #tpu.pipeline_mode<synchronous>, transform_indices = @transform_10, window_bounds = array<i64: 8, 1>}, {transform_indices = @transform_11, window_bounds = array<i64: 2>}, {transform_indices = @transform_12, window_bounds = array<i64: 8, 128>}]} {
    %c0 = arith.constant 0 : index
    %c0_0 = arith.constant 0 : index
    %0 = vector.load %arg1[%c0, %c0_0] : memref<8x128xf32, #tpu.memory_space<vmem>>, vector<8x128xf32>
    %c0_1 = arith.constant 0 : index
    %c0_2 = arith.constant 0 : index
    %1 = vector.load %arg2[%c0_1, %c0_2] : memref<32x8xf32, #tpu.memory_space<vmem>>, vector<32x8xf32>
    %c0_3 = arith.constant 0 : index
    %c0_4 = arith.constant 0 : index
    %2 = vector.load %arg3[%c0_3, %c0_4] : memref<32x1xf32, #tpu.memory_space<vmem>>, vector<32x1xf32>
    %3 = vector.extract_strided_slice %0 {offsets = [0, 0], sizes = [1, 128], strides = [1, 1]} : vector<8x128xf32> to vector<1x128xf32>
    %4 = vector.extract_strided_slice %0 {offsets = [1, 0], sizes = [1, 128], strides = [1, 1]} : vector<8x128xf32> to vector<1x128xf32>
    %5 = vector.extract_strided_slice %0 {offsets = [2, 0], sizes = [1, 128], strides = [1, 1]} : vector<8x128xf32> to vector<1x128xf32>
    %6 = vector.extract_strided_slice %1 {offsets = [0, 0], sizes = [32, 1], strides = [1, 1]} : vector<32x8xf32> to vector<32x1xf32>
    %7 = vector.extract_strided_slice %1 {offsets = [0, 1], sizes = [32, 1], strides = [1, 1]} : vector<32x8xf32> to vector<32x1xf32>
    %8 = vector.extract_strided_slice %1 {offsets = [0, 2], sizes = [32, 1], strides = [1, 1]} : vector<32x8xf32> to vector<32x1xf32>
    %9 = vector.broadcast %6 : vector<32x1xf32> to vector<32x128xf32>
    %10 = vector.broadcast %3 : vector<1x128xf32> to vector<32x128xf32>
    %11 = arith.mulf %9, %10 : vector<32x128xf32>
    %12 = vector.broadcast %7 : vector<32x1xf32> to vector<32x128xf32>
    %13 = vector.broadcast %4 : vector<1x128xf32> to vector<32x128xf32>
    %14 = arith.mulf %12, %13 : vector<32x128xf32>
    %15 = arith.addf %11, %14 : vector<32x128xf32>
    %16 = vector.broadcast %8 : vector<32x1xf32> to vector<32x128xf32>
    %17 = vector.broadcast %5 : vector<1x128xf32> to vector<32x128xf32>
    %18 = arith.mulf %16, %17 : vector<32x128xf32>
    %19 = arith.addf %15, %18 : vector<32x128xf32>
    %20 = vector.broadcast %2 : vector<32x1xf32> to vector<32x128xf32>
    %21 = arith.addf %19, %20 : vector<32x128xf32>
    %22 = math.tanh %21 : vector<32x128xf32>
    %23 = arith.mulf %22, %22 : vector<32x128xf32>
    %cst = arith.constant 1.000000e+00 : f32
    %24 = vector.broadcast %cst : f32 to vector<32x128xf32>
    %25 = arith.subf %24, %23 : vector<32x128xf32>
    %cst_5 = arith.constant -2.000000e+00 : f32
    %26 = vector.broadcast %cst_5 : f32 to vector<32x128xf32>
    %27 = arith.mulf %26, %22 : vector<32x128xf32>
    %28 = arith.mulf %27, %25 : vector<32x128xf32>
    %cst_6 = arith.constant 2.000000e+00 : f32
    %29 = vector.broadcast %cst_6 : f32 to vector<32x128xf32>
    %30 = arith.mulf %29, %25 : vector<32x128xf32>
    %cst_7 = arith.constant 3.000000e+00 : f32
    %31 = vector.broadcast %cst_7 : f32 to vector<32x128xf32>
    %32 = arith.mulf %31, %23 : vector<32x128xf32>
    %cst_8 = arith.constant 1.000000e+00 : f32
    %33 = vector.broadcast %cst_8 : f32 to vector<32x128xf32>
    %34 = arith.subf %32, %33 : vector<32x128xf32>
    %35 = arith.mulf %30, %34 : vector<32x128xf32>
    %36 = arith.mulf %6, %6 : vector<32x1xf32>
    %37 = arith.mulf %7, %7 : vector<32x1xf32>
    %38 = arith.mulf %6, %7 : vector<32x1xf32>
    %39 = arith.truncf %22 : vector<32x128xf32> to vector<32x128xbf16>
    %c0_9 = arith.constant 0 : index
    %c0_10 = arith.constant 0 : index
    %40 = vector.load %arg14[%c0_9, %c0_10] : memref<32x1664xbf16, #tpu.memory_space<vmem>>, vector<32x128xbf16>
    tpu.vector_store %arg14[%c0_9, %c0_10], %39 {strides = array<i32>} : memref<32x1664xbf16, #tpu.memory_space<vmem>>, vector<32x128xbf16>,
    %41 = vector.broadcast %6 : vector<32x1xf32> to vector<32x128xf32>
    %42 = arith.mulf %25, %41 : vector<32x128xf32>
    %43 = arith.truncf %42 : vector<32x128xf32> to vector<32x128xbf16>
    %c0_11 = arith.constant 0 : index
    %c128 = arith.constant 128 : index
    %44 = vector.load %arg14[%c0_11, %c128] : memref<32x1664xbf16, #tpu.memory_space<vmem>>, vector<32x128xbf16>
    tpu.vector_store %arg14[%c0_11, %c128], %43 {strides = array<i32>} : memref<32x1664xbf16, #tpu.memory_space<vmem>>, vector<32x128xbf16>,
    %45 = vector.broadcast %7 : vector<32x1xf32> to vector<32x128xf32>
    %46 = arith.mulf %25, %45 : vector<32x128xf32>
    %47 = arith.truncf %46 : vector<32x128xf32> to vector<32x128xbf16>
    %c0_12 = arith.constant 0 : index
    %c256 = arith.constant 256 : index
    %48 = vector.load %arg14[%c0_12, %c256] : memref<32x1664xbf16, #tpu.memory_space<vmem>>, vector<32x128xbf16>
    tpu.vector_store %arg14[%c0_12, %c256], %47 {strides = array<i32>} : memref<32x1664xbf16, #tpu.memory_space<vmem>>, vector<32x128xbf16>,
    %49 = vector.broadcast %8 : vector<32x1xf32> to vector<32x128xf32>
    %50 = arith.mulf %25, %49 : vector<32x128xf32>
    %51 = arith.truncf %50 : vector<32x128xf32> to vector<32x128xbf16>
    %c0_13 = arith.constant 0 : index
    %c384 = arith.constant 384 : index
    %52 = vector.load %arg14[%c0_13, %c384] : memref<32x1664xbf16, #tpu.memory_space<vmem>>, vector<32x128xbf16>
    tpu.vector_store %arg14[%c0_13, %c384], %51 {strides = array<i32>} : memref<32x1664xbf16, #tpu.memory_space<vmem>>, vector<32x128xbf16>,
    %53 = vector.broadcast %36 : vector<32x1xf32> to vector<32x128xf32>
    %54 = arith.mulf %28, %53 : vector<32x128xf32>
    %55 = arith.truncf %54 : vector<32x128xf32> to vector<32x128xbf16>
    %c0_14 = arith.constant 0 : index
    %c512 = arith.constant 512 : index
    %56 = vector.load %arg14[%c0_14, %c512] : memref<32x1664xbf16, #tpu.memory_space<vmem>>, vector<32x128xbf16>
    tpu.vector_store %arg14[%c0_14, %c512], %55 {strides = array<i32>} : memref<32x1664xbf16, #tpu.memory_space<vmem>>, vector<32x128xbf16>,
    %57 = vector.broadcast %38 : vector<32x1xf32> to vector<32x128xf32>
    %58 = arith.mulf %28, %57 : vector<32x128xf32>
    %59 = arith.truncf %58 : vector<32x128xf32> to vector<32x128xbf16>
    %c0_15 = arith.constant 0 : index
    %c640 = arith.constant 640 : index
    %60 = vector.load %arg14[%c0_15, %c640] : memref<32x1664xbf16, #tpu.memory_space<vmem>>, vector<32x128xbf16>
    tpu.vector_store %arg14[%c0_15, %c640], %59 {strides = array<i32>} : memref<32x1664xbf16, #tpu.memory_space<vmem>>, vector<32x128xbf16>,
    %61 = arith.mulf %6, %8 : vector<32x1xf32>
    %62 = vector.broadcast %61 : vector<32x1xf32> to vector<32x128xf32>
    %63 = arith.mulf %28, %62 : vector<32x128xf32>
    %64 = arith.truncf %63 : vector<32x128xf32> to vector<32x128xbf16>
    %c0_16 = arith.constant 0 : index
    %c768 = arith.constant 768 : index
    %65 = vector.load %arg14[%c0_16, %c768] : memref<32x1664xbf16, #tpu.memory_space<vmem>>, vector<32x128xbf16>
    tpu.vector_store %arg14[%c0_16, %c768], %64 {strides = array<i32>} : memref<32x1664xbf16, #tpu.memory_space<vmem>>, vector<32x128xbf16>,
    %66 = vector.broadcast %37 : vector<32x1xf32> to vector<32x128xf32>
    %67 = arith.mulf %28, %66 : vector<32x128xf32>
    %68 = arith.truncf %67 : vector<32x128xf32> to vector<32x128xbf16>
    %c0_17 = arith.constant 0 : index
    %c896 = arith.constant 896 : index
    %69 = vector.load %arg14[%c0_17, %c896] : memref<32x1664xbf16, #tpu.memory_space<vmem>>, vector<32x128xbf16>
    tpu.vector_store %arg14[%c0_17, %c896], %68 {strides = array<i32>} : memref<32x1664xbf16, #tpu.memory_space<vmem>>, vector<32x128xbf16>,
    %70 = arith.mulf %7, %8 : vector<32x1xf32>
    %71 = vector.broadcast %70 : vector<32x1xf32> to vector<32x128xf32>
    %72 = arith.mulf %28, %71 : vector<32x128xf32>
    %73 = arith.truncf %72 : vector<32x128xf32> to vector<32x128xbf16>
    %c0_18 = arith.constant 0 : index
    %c1024 = arith.constant 1024 : index
    %74 = vector.load %arg14[%c0_18, %c1024] : memref<32x1664xbf16, #tpu.memory_space<vmem>>, vector<32x128xbf16>
    tpu.vector_store %arg14[%c0_18, %c1024], %73 {strides = array<i32>} : memref<32x1664xbf16, #tpu.memory_space<vmem>>, vector<32x128xbf16>,
    %75 = arith.mulf %36, %6 : vector<32x1xf32>
    %76 = vector.broadcast %75 : vector<32x1xf32> to vector<32x128xf32>
    %77 = arith.mulf %35, %76 : vector<32x128xf32>
    %78 = arith.truncf %77 : vector<32x128xf32> to vector<32x128xbf16>
    %c0_19 = arith.constant 0 : index
    %c1152 = arith.constant 1152 : index
    %79 = vector.load %arg14[%c0_19, %c1152] : memref<32x1664xbf16, #tpu.memory_space<vmem>>, vector<32x128xbf16>
    tpu.vector_store %arg14[%c0_19, %c1152], %78 {strides = array<i32>} : memref<32x1664xbf16, #tpu.memory_space<vmem>>, vector<32x128xbf16>,
    %80 = arith.mulf %36, %7 : vector<32x1xf32>
    %81 = vector.broadcast %80 : vector<32x1xf32> to vector<32x128xf32>
    %82 = arith.mulf %35, %81 : vector<32x128xf32>
    %83 = arith.truncf %82 : vector<32x128xf32> to vector<32x128xbf16>
    %c0_20 = arith.constant 0 : index
    %c1280 = arith.constant 1280 : index
    %84 = vector.load %arg14[%c0_20, %c1280] : memref<32x1664xbf16, #tpu.memory_space<vmem>>, vector<32x128xbf16>
    tpu.vector_store %arg14[%c0_20, %c1280], %83 {strides = array<i32>} : memref<32x1664xbf16, #tpu.memory_space<vmem>>, vector<32x128xbf16>,
    %85 = arith.mulf %6, %37 : vector<32x1xf32>
    %86 = vector.broadcast %85 : vector<32x1xf32> to vector<32x128xf32>
    %87 = arith.mulf %35, %86 : vector<32x128xf32>
    %88 = arith.truncf %87 : vector<32x128xf32> to vector<32x128xbf16>
    %c0_21 = arith.constant 0 : index
    %c1408 = arith.constant 1408 : index
    %89 = vector.load %arg14[%c0_21, %c1408] : memref<32x1664xbf16, #tpu.memory_space<vmem>>, vector<32x128xbf16>
    tpu.vector_store %arg14[%c0_21, %c1408], %88 {strides = array<i32>} : memref<32x1664xbf16, #tpu.memory_space<vmem>>, vector<32x128xbf16>,
    %90 = arith.mulf %37, %7 : vector<32x1xf32>
    %91 = vector.broadcast %90 : vector<32x1xf32> to vector<32x128xf32>
    %92 = arith.mulf %35, %91 : vector<32x128xf32>
    %93 = arith.truncf %92 : vector<32x128xf32> to vector<32x128xbf16>
    %c0_22 = arith.constant 0 : index
    %c1536 = arith.constant 1536 : index
    %94 = vector.load %arg14[%c0_22, %c1536] : memref<32x1664xbf16, #tpu.memory_space<vmem>>, vector<32x128xbf16>
    tpu.vector_store %arg14[%c0_22, %c1536], %93 {strides = array<i32>} : memref<32x1664xbf16, #tpu.memory_space<vmem>>, vector<32x128xbf16>,
    %c0_23 = arith.constant 0 : index
    %c0_24 = arith.constant 0 : index
    %95 = vector.load %arg4[%c0_23, %c0_24] : memref<32x32xbf16, #tpu.memory_space<vmem>>, vector<32x32xbf16>
    %c0_25 = arith.constant 0 : index
    %c0_26 = arith.constant 0 : index
    %96 = vector.load %arg14[%c0_25, %c0_26] : memref<32x1664xbf16, #tpu.memory_space<vmem>>, vector<32x1664xbf16>
    %cst_27 = arith.constant dense<0.000000e+00> : vector<32x1664xf32>
    %97 = tpu.matmul %95, %96, %cst_27 {dimension_numbers = #tpu.dot_dimension_numbers<[1], [0], [0], [1], [0, 0, 1, 1], [], []>} : vector<32x32xbf16>, vector<32x1664xbf16>, vector<32x1664xf32> -> vector<32x1664xf32>
    %c0_28 = arith.constant 0 : index
    %c0_29 = arith.constant 0 : index
    %98 = vector.load %arg5[%c0_28, %c0_29] : memref<32x1xf32, #tpu.memory_space<vmem>>, vector<32x1xf32>
    %99 = vector.extract_strided_slice %97 {offsets = [0, 0], sizes = [32, 128], strides = [1, 1]} : vector<32x1664xf32> to vector<32x128xf32>
    %100 = vector.broadcast %98 : vector<32x1xf32> to vector<32x128xf32>
    %101 = arith.addf %99, %100 : vector<32x128xf32>
    %102 = vector.extract_strided_slice %97 {offsets = [0, 128], sizes = [32, 128], strides = [1, 1]} : vector<32x1664xf32> to vector<32x128xf32>
    %103 = vector.extract_strided_slice %97 {offsets = [0, 256], sizes = [32, 128], strides = [1, 1]} : vector<32x1664xf32> to vector<32x128xf32>
    %104 = vector.extract_strided_slice %97 {offsets = [0, 384], sizes = [32, 128], strides = [1, 1]} : vector<32x1664xf32> to vector<32x128xf32>
    %105 = vector.extract_strided_slice %97 {offsets = [0, 512], sizes = [32, 128], strides = [1, 1]} : vector<32x1664xf32> to vector<32x128xf32>
    %106 = vector.extract_strided_slice %97 {offsets = [0, 640], sizes = [32, 128], strides = [1, 1]} : vector<32x1664xf32> to vector<32x128xf32>
    %107 = vector.extract_strided_slice %97 {offsets = [0, 768], sizes = [32, 128], strides = [1, 1]} : vector<32x1664xf32> to vector<32x128xf32>
    %108 = vector.extract_strided_slice %97 {offsets = [0, 896], sizes = [32, 128], strides = [1, 1]} : vector<32x1664xf32> to vector<32x128xf32>
    %109 = vector.extract_strided_slice %97 {offsets = [0, 1024], sizes = [32, 128], strides = [1, 1]} : vector<32x1664xf32> to vector<32x128xf32>
    %110 = vector.extract_strided_slice %97 {offsets = [0, 1152], sizes = [32, 128], strides = [1, 1]} : vector<32x1664xf32> to vector<32x128xf32>
    %111 = vector.extract_strided_slice %97 {offsets = [0, 1280], sizes = [32, 128], strides = [1, 1]} : vector<32x1664xf32> to vector<32x128xf32>
    %112 = vector.extract_strided_slice %97 {offsets = [0, 1408], sizes = [32, 128], strides = [1, 1]} : vector<32x1664xf32> to vector<32x128xf32>
    %113 = vector.extract_strided_slice %97 {offsets = [0, 1536], sizes = [32, 128], strides = [1, 1]} : vector<32x1664xf32> to vector<32x128xf32>
    %114 = math.tanh %101 : vector<32x128xf32>
    %115 = arith.mulf %114, %114 : vector<32x128xf32>
    %cst_30 = arith.constant 1.000000e+00 : f32
    %116 = vector.broadcast %cst_30 : f32 to vector<32x128xf32>
    %117 = arith.subf %116, %115 : vector<32x128xf32>
    %cst_31 = arith.constant -2.000000e+00 : f32
    %118 = vector.broadcast %cst_31 : f32 to vector<32x128xf32>
    %119 = arith.mulf %118, %114 : vector<32x128xf32>
    %120 = arith.mulf %119, %117 : vector<32x128xf32>
    %cst_32 = arith.constant 2.000000e+00 : f32
    %121 = vector.broadcast %cst_32 : f32 to vector<32x128xf32>
    %122 = arith.mulf %121, %117 : vector<32x128xf32>
    %cst_33 = arith.constant 3.000000e+00 : f32
    %123 = vector.broadcast %cst_33 : f32 to vector<32x128xf32>
    %124 = arith.mulf %123, %115 : vector<32x128xf32>
    %cst_34 = arith.constant 1.000000e+00 : f32
    %125 = vector.broadcast %cst_34 : f32 to vector<32x128xf32>
    %126 = arith.subf %124, %125 : vector<32x128xf32>
    %127 = arith.mulf %122, %126 : vector<32x128xf32>
    %128 = arith.mulf %102, %102 : vector<32x128xf32>
    %129 = arith.mulf %103, %103 : vector<32x128xf32>
    %130 = arith.mulf %120, %102 : vector<32x128xf32>
    %131 = arith.mulf %120, %103 : vector<32x128xf32>
    %132 = arith.mulf %127, %128 : vector<32x128xf32>
    %133 = arith.mulf %127, %129 : vector<32x128xf32>
    %134 = arith.truncf %114 : vector<32x128xf32> to vector<32x128xbf16>
    %c0_35 = arith.constant 0 : index
    %c0_36 = arith.constant 0 : index
    %135 = vector.load %arg14[%c0_35, %c0_36] : memref<32x1664xbf16, #tpu.memory_space<vmem>>, vector<32x128xbf16>
    tpu.vector_store %arg14[%c0_35, %c0_36], %134 {strides = array<i32>} : memref<32x1664xbf16, #tpu.memory_space<vmem>>, vector<32x128xbf16>,
    %136 = arith.mulf %117, %102 : vector<32x128xf32>
    %137 = arith.truncf %136 : vector<32x128xf32> to vector<32x128xbf16>
    %c0_37 = arith.constant 0 : index
    %c128_38 = arith.constant 128 : index
    %138 = vector.load %arg14[%c0_37, %c128_38] : memref<32x1664xbf16, #tpu.memory_space<vmem>>, vector<32x128xbf16>
    tpu.vector_store %arg14[%c0_37, %c128_38], %137 {strides = array<i32>} : memref<32x1664xbf16, #tpu.memory_space<vmem>>, vector<32x128xbf16>,
    %139 = arith.mulf %117, %103 : vector<32x128xf32>
    %140 = arith.truncf %139 : vector<32x128xf32> to vector<32x128xbf16>
    %c0_39 = arith.constant 0 : index
    %c256_40 = arith.constant 256 : index
    %141 = vector.load %arg14[%c0_39, %c256_40] : memref<32x1664xbf16, #tpu.memory_space<vmem>>, vector<32x128xbf16>
    tpu.vector_store %arg14[%c0_39, %c256_40], %140 {strides = array<i32>} : memref<32x1664xbf16, #tpu.memory_space<vmem>>, vector<32x128xbf16>,
    %142 = arith.mulf %117, %104 : vector<32x128xf32>
    %143 = arith.truncf %142 : vector<32x128xf32> to vector<32x128xbf16>
    %c0_41 = arith.constant 0 : index
    %c384_42 = arith.constant 384 : index
    %144 = vector.load %arg14[%c0_41, %c384_42] : memref<32x1664xbf16, #tpu.memory_space<vmem>>, vector<32x128xbf16>
    tpu.vector_store %arg14[%c0_41, %c384_42], %143 {strides = array<i32>} : memref<32x1664xbf16, #tpu.memory_space<vmem>>, vector<32x128xbf16>,
    %145 = arith.mulf %120, %128 : vector<32x128xf32>
    %146 = arith.mulf %117, %105 : vector<32x128xf32>
    %147 = arith.addf %145, %146 : vector<32x128xf32>
    %148 = arith.truncf %147 : vector<32x128xf32> to vector<32x128xbf16>
    %c0_43 = arith.constant 0 : index
    %c512_44 = arith.constant 512 : index
    %149 = vector.load %arg14[%c0_43, %c512_44] : memref<32x1664xbf16, #tpu.memory_space<vmem>>, vector<32x128xbf16>
    tpu.vector_store %arg14[%c0_43, %c512_44], %148 {strides = array<i32>} : memref<32x1664xbf16, #tpu.memory_space<vmem>>, vector<32x128xbf16>,
    %150 = arith.mulf %130, %103 : vector<32x128xf32>
    %151 = arith.mulf %117, %106 : vector<32x128xf32>
    %152 = arith.addf %150, %151 : vector<32x128xf32>
    %153 = arith.truncf %152 : vector<32x128xf32> to vector<32x128xbf16>
    %c0_45 = arith.constant 0 : index
    %c640_46 = arith.constant 640 : index
    %154 = vector.load %arg14[%c0_45, %c640_46] : memref<32x1664xbf16, #tpu.memory_space<vmem>>, vector<32x128xbf16>
    tpu.vector_store %arg14[%c0_45, %c640_46], %153 {strides = array<i32>} : memref<32x1664xbf16, #tpu.memory_space<vmem>>, vector<32x128xbf16>,
    %155 = arith.mulf %130, %104 : vector<32x128xf32>
    %156 = arith.mulf %117, %107 : vector<32x128xf32>
    %157 = arith.addf %155, %156 : vector<32x128xf32>
    %158 = arith.truncf %157 : vector<32x128xf32> to vector<32x128xbf16>
    %c0_47 = arith.constant 0 : index
    %c768_48 = arith.constant 768 : index
    %159 = vector.load %arg14[%c0_47, %c768_48] : memref<32x1664xbf16, #tpu.memory_space<vmem>>, vector<32x128xbf16>
    tpu.vector_store %arg14[%c0_47, %c768_48], %158 {strides = array<i32>} : memref<32x1664xbf16, #tpu.memory_space<vmem>>, vector<32x128xbf16>,
    %160 = arith.mulf %120, %129 : vector<32x128xf32>
    %161 = arith.mulf %117, %108 : vector<32x128xf32>
    %162 = arith.addf %160, %161 : vector<32x128xf32>
    %163 = arith.truncf %162 : vector<32x128xf32> to vector<32x128xbf16>
    %c0_49 = arith.constant 0 : index
    %c896_50 = arith.constant 896 : index
    %164 = vector.load %arg14[%c0_49, %c896_50] : memref<32x1664xbf16, #tpu.memory_space<vmem>>, vector<32x128xbf16>
    tpu.vector_store %arg14[%c0_49, %c896_50], %163 {strides = array<i32>} : memref<32x1664xbf16, #tpu.memory_space<vmem>>, vector<32x128xbf16>,
    %165 = arith.mulf %131, %104 : vector<32x128xf32>
    %166 = arith.mulf %117, %109 : vector<32x128xf32>
    %167 = arith.addf %165, %166 : vector<32x128xf32>
    %168 = arith.truncf %167 : vector<32x128xf32> to vector<32x128xbf16>
    %c0_51 = arith.constant 0 : index
    %c1024_52 = arith.constant 1024 : index
    %169 = vector.load %arg14[%c0_51, %c1024_52] : memref<32x1664xbf16, #tpu.memory_space<vmem>>, vector<32x128xbf16>
    tpu.vector_store %arg14[%c0_51, %c1024_52], %168 {strides = array<i32>} : memref<32x1664xbf16, #tpu.memory_space<vmem>>, vector<32x128xbf16>,
    %170 = arith.mulf %132, %102 : vector<32x128xf32>
    %171 = arith.mulf %130, %105 : vector<32x128xf32>
    %cst_53 = arith.constant 3.000000e+00 : f32
    %172 = vector.broadcast %cst_53 : f32 to vector<32x128xf32>
    %173 = arith.mulf %172, %171 : vector<32x128xf32>
    %174 = arith.addf %170, %173 : vector<32x128xf32>
    %175 = arith.mulf %117, %110 : vector<32x128xf32>
    %176 = arith.addf %174, %175 : vector<32x128xf32>
    %177 = arith.truncf %176 : vector<32x128xf32> to vector<32x128xbf16>
    %c0_54 = arith.constant 0 : index
    %c1152_55 = arith.constant 1152 : index
    %178 = vector.load %arg14[%c0_54, %c1152_55] : memref<32x1664xbf16, #tpu.memory_space<vmem>>, vector<32x128xbf16>
    tpu.vector_store %arg14[%c0_54, %c1152_55], %177 {strides = array<i32>} : memref<32x1664xbf16, #tpu.memory_space<vmem>>, vector<32x128xbf16>,
    %179 = arith.mulf %132, %103 : vector<32x128xf32>
    %180 = arith.mulf %105, %103 : vector<32x128xf32>
    %181 = arith.mulf %120, %180 : vector<32x128xf32>
    %182 = arith.addf %179, %181 : vector<32x128xf32>
    %183 = arith.mulf %130, %106 : vector<32x128xf32>
    %cst_56 = arith.constant 2.000000e+00 : f32
    %184 = vector.broadcast %cst_56 : f32 to vector<32x128xf32>
    %185 = arith.mulf %184, %183 : vector<32x128xf32>
    %186 = arith.addf %182, %185 : vector<32x128xf32>
    %187 = arith.mulf %117, %111 : vector<32x128xf32>
    %188 = arith.addf %186, %187 : vector<32x128xf32>
    %189 = arith.truncf %188 : vector<32x128xf32> to vector<32x128xbf16>
    %c0_57 = arith.constant 0 : index
    %c1280_58 = arith.constant 1280 : index
    %190 = vector.load %arg14[%c0_57, %c1280_58] : memref<32x1664xbf16, #tpu.memory_space<vmem>>, vector<32x128xbf16>
    tpu.vector_store %arg14[%c0_57, %c1280_58], %189 {strides = array<i32>} : memref<32x1664xbf16, #tpu.memory_space<vmem>>, vector<32x128xbf16>,
    %191 = arith.mulf %133, %102 : vector<32x128xf32>
    %192 = arith.mulf %108, %102 : vector<32x128xf32>
    %193 = arith.mulf %120, %192 : vector<32x128xf32>
    %194 = arith.addf %191, %193 : vector<32x128xf32>
    %195 = arith.mulf %131, %106 : vector<32x128xf32>
    %cst_59 = arith.constant 2.000000e+00 : f32
    %196 = vector.broadcast %cst_59 : f32 to vector<32x128xf32>
    %197 = arith.mulf %196, %195 : vector<32x128xf32>
    %198 = arith.addf %194, %197 : vector<32x128xf32>
    %199 = arith.mulf %117, %112 : vector<32x128xf32>
    %200 = arith.addf %198, %199 : vector<32x128xf32>
    %201 = arith.truncf %200 : vector<32x128xf32> to vector<32x128xbf16>
    %c0_60 = arith.constant 0 : index
    %c1408_61 = arith.constant 1408 : index
    %202 = vector.load %arg14[%c0_60, %c1408_61] : memref<32x1664xbf16, #tpu.memory_space<vmem>>, vector<32x128xbf16>
    tpu.vector_store %arg14[%c0_60, %c1408_61], %201 {strides = array<i32>} : memref<32x1664xbf16, #tpu.memory_space<vmem>>, vector<32x128xbf16>,
    %203 = arith.mulf %133, %103 : vector<32x128xf32>
    %204 = arith.mulf %131, %108 : vector<32x128xf32>
    %cst_62 = arith.constant 3.000000e+00 : f32
    %205 = vector.broadcast %cst_62 : f32 to vector<32x128xf32>
    %206 = arith.mulf %205, %204 : vector<32x128xf32>
    %207 = arith.addf %203, %206 : vector<32x128xf32>
    %208 = arith.mulf %117, %113 : vector<32x128xf32>
    %209 = arith.addf %207, %208 : vector<32x128xf32>
    %210 = arith.truncf %209 : vector<32x128xf32> to vector<32x128xbf16>
    %c0_63 = arith.constant 0 : index
    %c1536_64 = arith.constant 1536 : index
    %211 = vector.load %arg14[%c0_63, %c1536_64] : memref<32x1664xbf16, #tpu.memory_space<vmem>>, vector<32x128xbf16>
    tpu.vector_store %arg14[%c0_63, %c1536_64], %210 {strides = array<i32>} : memref<32x1664xbf16, #tpu.memory_space<vmem>>, vector<32x128xbf16>,
    %c0_65 = arith.constant 0 : index
    %c0_66 = arith.constant 0 : index
    %212 = vector.load %arg6[%c0_65, %c0_66] : memref<32x32xbf16, #tpu.memory_space<vmem>>, vector<32x32xbf16>
    %c0_67 = arith.constant 0 : index
    %c0_68 = arith.constant 0 : index
    %213 = vector.load %arg14[%c0_67, %c0_68] : memref<32x1664xbf16, #tpu.memory_space<vmem>>, vector<32x1664xbf16>
    %cst_69 = arith.constant dense<0.000000e+00> : vector<32x1664xf32>
    %214 = tpu.matmul %212, %213, %cst_69 {dimension_numbers = #tpu.dot_dimension_numbers<[1], [0], [0], [1], [0, 0, 1, 1], [], []>} : vector<32x32xbf16>, vector<32x1664xbf16>, vector<32x1664xf32> -> vector<32x1664xf32>
    %c0_70 = arith.constant 0 : index
    %c0_71 = arith.constant 0 : index
    %215 = vector.load %arg7[%c0_70, %c0_71] : memref<32x1xf32, #tpu.memory_space<vmem>>, vector<32x1xf32>
    %216 = vector.extract_strided_slice %214 {offsets = [0, 0], sizes = [32, 128], strides = [1, 1]} : vector<32x1664xf32> to vector<32x128xf32>
    %217 = vector.broadcast %215 : vector<32x1xf32> to vector<32x128xf32>
    %218 = arith.addf %216, %217 : vector<32x128xf32>
    %219 = vector.extract_strided_slice %214 {offsets = [0, 128], sizes = [32, 128], strides = [1, 1]} : vector<32x1664xf32> to vector<32x128xf32>
    %220 = vector.extract_strided_slice %214 {offsets = [0, 256], sizes = [32, 128], strides = [1, 1]} : vector<32x1664xf32> to vector<32x128xf32>
    %221 = vector.extract_strided_slice %214 {offsets = [0, 384], sizes = [32, 128], strides = [1, 1]} : vector<32x1664xf32> to vector<32x128xf32>
    %222 = vector.extract_strided_slice %214 {offsets = [0, 512], sizes = [32, 128], strides = [1, 1]} : vector<32x1664xf32> to vector<32x128xf32>
    %223 = vector.extract_strided_slice %214 {offsets = [0, 640], sizes = [32, 128], strides = [1, 1]} : vector<32x1664xf32> to vector<32x128xf32>
    %224 = vector.extract_strided_slice %214 {offsets = [0, 768], sizes = [32, 128], strides = [1, 1]} : vector<32x1664xf32> to vector<32x128xf32>
    %225 = vector.extract_strided_slice %214 {offsets = [0, 896], sizes = [32, 128], strides = [1, 1]} : vector<32x1664xf32> to vector<32x128xf32>
    %226 = vector.extract_strided_slice %214 {offsets = [0, 1024], sizes = [32, 128], strides = [1, 1]} : vector<32x1664xf32> to vector<32x128xf32>
    %227 = vector.extract_strided_slice %214 {offsets = [0, 1152], sizes = [32, 128], strides = [1, 1]} : vector<32x1664xf32> to vector<32x128xf32>
    %228 = vector.extract_strided_slice %214 {offsets = [0, 1280], sizes = [32, 128], strides = [1, 1]} : vector<32x1664xf32> to vector<32x128xf32>
    %229 = vector.extract_strided_slice %214 {offsets = [0, 1408], sizes = [32, 128], strides = [1, 1]} : vector<32x1664xf32> to vector<32x128xf32>
    %230 = vector.extract_strided_slice %214 {offsets = [0, 1536], sizes = [32, 128], strides = [1, 1]} : vector<32x1664xf32> to vector<32x128xf32>
    %231 = math.tanh %218 : vector<32x128xf32>
    %232 = arith.mulf %231, %231 : vector<32x128xf32>
    %cst_72 = arith.constant 1.000000e+00 : f32
    %233 = vector.broadcast %cst_72 : f32 to vector<32x128xf32>
    %234 = arith.subf %233, %232 : vector<32x128xf32>
    %cst_73 = arith.constant -2.000000e+00 : f32
    %235 = vector.broadcast %cst_73 : f32 to vector<32x128xf32>
    %236 = arith.mulf %235, %231 : vector<32x128xf32>
    %237 = arith.mulf %236, %234 : vector<32x128xf32>
    %cst_74 = arith.constant 2.000000e+00 : f32
    %238 = vector.broadcast %cst_74 : f32 to vector<32x128xf32>
    %239 = arith.mulf %238, %234 : vector<32x128xf32>
    %cst_75 = arith.constant 3.000000e+00 : f32
    %240 = vector.broadcast %cst_75 : f32 to vector<32x128xf32>
    %241 = arith.mulf %240, %232 : vector<32x128xf32>
    %cst_76 = arith.constant 1.000000e+00 : f32
    %242 = vector.broadcast %cst_76 : f32 to vector<32x128xf32>
    %243 = arith.subf %241, %242 : vector<32x128xf32>
    %244 = arith.mulf %239, %243 : vector<32x128xf32>
    %245 = arith.mulf %219, %219 : vector<32x128xf32>
    %246 = arith.mulf %220, %220 : vector<32x128xf32>
    %247 = arith.mulf %237, %219 : vector<32x128xf32>
    %248 = arith.mulf %237, %220 : vector<32x128xf32>
    %249 = arith.mulf %244, %245 : vector<32x128xf32>
    %250 = arith.mulf %244, %246 : vector<32x128xf32>
    %251 = arith.truncf %231 : vector<32x128xf32> to vector<32x128xbf16>
    %c0_77 = arith.constant 0 : index
    %c0_78 = arith.constant 0 : index
    %252 = vector.load %arg14[%c0_77, %c0_78] : memref<32x1664xbf16, #tpu.memory_space<vmem>>, vector<32x128xbf16>
    tpu.vector_store %arg14[%c0_77, %c0_78], %251 {strides = array<i32>} : memref<32x1664xbf16, #tpu.memory_space<vmem>>, vector<32x128xbf16>,
    %253 = arith.mulf %234, %219 : vector<32x128xf32>
    %254 = arith.truncf %253 : vector<32x128xf32> to vector<32x128xbf16>
    %c0_79 = arith.constant 0 : index
    %c128_80 = arith.constant 128 : index
    %255 = vector.load %arg14[%c0_79, %c128_80] : memref<32x1664xbf16, #tpu.memory_space<vmem>>, vector<32x128xbf16>
    tpu.vector_store %arg14[%c0_79, %c128_80], %254 {strides = array<i32>} : memref<32x1664xbf16, #tpu.memory_space<vmem>>, vector<32x128xbf16>,
    %256 = arith.mulf %234, %220 : vector<32x128xf32>
    %257 = arith.truncf %256 : vector<32x128xf32> to vector<32x128xbf16>
    %c0_81 = arith.constant 0 : index
    %c256_82 = arith.constant 256 : index
    %258 = vector.load %arg14[%c0_81, %c256_82] : memref<32x1664xbf16, #tpu.memory_space<vmem>>, vector<32x128xbf16>
    tpu.vector_store %arg14[%c0_81, %c256_82], %257 {strides = array<i32>} : memref<32x1664xbf16, #tpu.memory_space<vmem>>, vector<32x128xbf16>,
    %259 = arith.mulf %234, %221 : vector<32x128xf32>
    %260 = arith.truncf %259 : vector<32x128xf32> to vector<32x128xbf16>
    %c0_83 = arith.constant 0 : index
    %c384_84 = arith.constant 384 : index
    %261 = vector.load %arg14[%c0_83, %c384_84] : memref<32x1664xbf16, #tpu.memory_space<vmem>>, vector<32x128xbf16>
    tpu.vector_store %arg14[%c0_83, %c384_84], %260 {strides = array<i32>} : memref<32x1664xbf16, #tpu.memory_space<vmem>>, vector<32x128xbf16>,
    %262 = arith.mulf %237, %245 : vector<32x128xf32>
    %263 = arith.mulf %234, %222 : vector<32x128xf32>
    %264 = arith.addf %262, %263 : vector<32x128xf32>
    %265 = arith.truncf %264 : vector<32x128xf32> to vector<32x128xbf16>
    %c0_85 = arith.constant 0 : index
    %c512_86 = arith.constant 512 : index
    %266 = vector.load %arg14[%c0_85, %c512_86] : memref<32x1664xbf16, #tpu.memory_space<vmem>>, vector<32x128xbf16>
    tpu.vector_store %arg14[%c0_85, %c512_86], %265 {strides = array<i32>} : memref<32x1664xbf16, #tpu.memory_space<vmem>>, vector<32x128xbf16>,
    %267 = arith.mulf %247, %220 : vector<32x128xf32>
    %268 = arith.mulf %234, %223 : vector<32x128xf32>
    %269 = arith.addf %267, %268 : vector<32x128xf32>
    %270 = arith.truncf %269 : vector<32x128xf32> to vector<32x128xbf16>
    %c0_87 = arith.constant 0 : index
    %c640_88 = arith.constant 640 : index
    %271 = vector.load %arg14[%c0_87, %c640_88] : memref<32x1664xbf16, #tpu.memory_space<vmem>>, vector<32x128xbf16>
    tpu.vector_store %arg14[%c0_87, %c640_88], %270 {strides = array<i32>} : memref<32x1664xbf16, #tpu.memory_space<vmem>>, vector<32x128xbf16>,
    %272 = arith.mulf %247, %221 : vector<32x128xf32>
    %273 = arith.mulf %234, %224 : vector<32x128xf32>
    %274 = arith.addf %272, %273 : vector<32x128xf32>
    %275 = arith.truncf %274 : vector<32x128xf32> to vector<32x128xbf16>
    %c0_89 = arith.constant 0 : index
    %c768_90 = arith.constant 768 : index
    %276 = vector.load %arg14[%c0_89, %c768_90] : memref<32x1664xbf16, #tpu.memory_space<vmem>>, vector<32x128xbf16>
    tpu.vector_store %arg14[%c0_89, %c768_90], %275 {strides = array<i32>} : memref<32x1664xbf16, #tpu.memory_space<vmem>>, vector<32x128xbf16>,
    %277 = arith.mulf %237, %246 : vector<32x128xf32>
    %278 = arith.mulf %234, %225 : vector<32x128xf32>
    %279 = arith.addf %277, %278 : vector<32x128xf32>
    %280 = arith.truncf %279 : vector<32x128xf32> to vector<32x128xbf16>
    %c0_91 = arith.constant 0 : index
    %c896_92 = arith.constant 896 : index
    %281 = vector.load %arg14[%c0_91, %c896_92] : memref<32x1664xbf16, #tpu.memory_space<vmem>>, vector<32x128xbf16>
    tpu.vector_store %arg14[%c0_91, %c896_92], %280 {strides = array<i32>} : memref<32x1664xbf16, #tpu.memory_space<vmem>>, vector<32x128xbf16>,
    %282 = arith.mulf %248, %221 : vector<32x128xf32>
    %283 = arith.mulf %234, %226 : vector<32x128xf32>
    %284 = arith.addf %282, %283 : vector<32x128xf32>
    %285 = arith.truncf %284 : vector<32x128xf32> to vector<32x128xbf16>
    %c0_93 = arith.constant 0 : index
    %c1024_94 = arith.constant 1024 : index
    %286 = vector.load %arg14[%c0_93, %c1024_94] : memref<32x1664xbf16, #tpu.memory_space<vmem>>, vector<32x128xbf16>
    tpu.vector_store %arg14[%c0_93, %c1024_94], %285 {strides = array<i32>} : memref<32x1664xbf16, #tpu.memory_space<vmem>>, vector<32x128xbf16>,
    %287 = arith.mulf %249, %219 : vector<32x128xf32>
    %288 = arith.mulf %247, %222 : vector<32x128xf32>
    %cst_95 = arith.constant 3.000000e+00 : f32
    %289 = vector.broadcast %cst_95 : f32 to vector<32x128xf32>
    %290 = arith.mulf %289, %288 : vector<32x128xf32>
    %291 = arith.addf %287, %290 : vector<32x128xf32>
    %292 = arith.mulf %234, %227 : vector<32x128xf32>
    %293 = arith.addf %291, %292 : vector<32x128xf32>
    %294 = arith.truncf %293 : vector<32x128xf32> to vector<32x128xbf16>
    %c0_96 = arith.constant 0 : index
    %c1152_97 = arith.constant 1152 : index
    %295 = vector.load %arg14[%c0_96, %c1152_97] : memref<32x1664xbf16, #tpu.memory_space<vmem>>, vector<32x128xbf16>
    tpu.vector_store %arg14[%c0_96, %c1152_97], %294 {strides = array<i32>} : memref<32x1664xbf16, #tpu.memory_space<vmem>>, vector<32x128xbf16>,
    %296 = arith.mulf %249, %220 : vector<32x128xf32>
    %297 = arith.mulf %222, %220 : vector<32x128xf32>
    %298 = arith.mulf %237, %297 : vector<32x128xf32>
    %299 = arith.addf %296, %298 : vector<32x128xf32>
    %300 = arith.mulf %247, %223 : vector<32x128xf32>
    %cst_98 = arith.constant 2.000000e+00 : f32
    %301 = vector.broadcast %cst_98 : f32 to vector<32x128xf32>
    %302 = arith.mulf %301, %300 : vector<32x128xf32>
    %303 = arith.addf %299, %302 : vector<32x128xf32>
    %304 = arith.mulf %234, %228 : vector<32x128xf32>
    %305 = arith.addf %303, %304 : vector<32x128xf32>
    %306 = arith.truncf %305 : vector<32x128xf32> to vector<32x128xbf16>
    %c0_99 = arith.constant 0 : index
    %c1280_100 = arith.constant 1280 : index
    %307 = vector.load %arg14[%c0_99, %c1280_100] : memref<32x1664xbf16, #tpu.memory_space<vmem>>, vector<32x128xbf16>
    tpu.vector_store %arg14[%c0_99, %c1280_100], %306 {strides = array<i32>} : memref<32x1664xbf16, #tpu.memory_space<vmem>>, vector<32x128xbf16>,
    %308 = arith.mulf %250, %219 : vector<32x128xf32>
    %309 = arith.mulf %225, %219 : vector<32x128xf32>
    %310 = arith.mulf %237, %309 : vector<32x128xf32>
    %311 = arith.addf %308, %310 : vector<32x128xf32>
    %312 = arith.mulf %248, %223 : vector<32x128xf32>
    %cst_101 = arith.constant 2.000000e+00 : f32
    %313 = vector.broadcast %cst_101 : f32 to vector<32x128xf32>
    %314 = arith.mulf %313, %312 : vector<32x128xf32>
    %315 = arith.addf %311, %314 : vector<32x128xf32>
    %316 = arith.mulf %234, %229 : vector<32x128xf32>
    %317 = arith.addf %315, %316 : vector<32x128xf32>
    %318 = arith.truncf %317 : vector<32x128xf32> to vector<32x128xbf16>
    %c0_102 = arith.constant 0 : index
    %c1408_103 = arith.constant 1408 : index
    %319 = vector.load %arg14[%c0_102, %c1408_103] : memref<32x1664xbf16, #tpu.memory_space<vmem>>, vector<32x128xbf16>
    tpu.vector_store %arg14[%c0_102, %c1408_103], %318 {strides = array<i32>} : memref<32x1664xbf16, #tpu.memory_space<vmem>>, vector<32x128xbf16>,
    %320 = arith.mulf %250, %220 : vector<32x128xf32>
    %321 = arith.mulf %248, %225 : vector<32x128xf32>
    %cst_104 = arith.constant 3.000000e+00 : f32
    %322 = vector.broadcast %cst_104 : f32 to vector<32x128xf32>
    %323 = arith.mulf %322, %321 : vector<32x128xf32>
    %324 = arith.addf %320, %323 : vector<32x128xf32>
    %325 = arith.mulf %234, %230 : vector<32x128xf32>
    %326 = arith.addf %324, %325 : vector<32x128xf32>
    %327 = arith.truncf %326 : vector<32x128xf32> to vector<32x128xbf16>
    %c0_105 = arith.constant 0 : index
    %c1536_106 = arith.constant 1536 : index
    %328 = vector.load %arg14[%c0_105, %c1536_106] : memref<32x1664xbf16, #tpu.memory_space<vmem>>, vector<32x128xbf16>
    tpu.vector_store %arg14[%c0_105, %c1536_106], %327 {strides = array<i32>} : memref<32x1664xbf16, #tpu.memory_space<vmem>>, vector<32x128xbf16>,
    %c0_107 = arith.constant 0 : index
    %c0_108 = arith.constant 0 : index
    %329 = vector.load %arg8[%c0_107, %c0_108] : memref<32x32xbf16, #tpu.memory_space<vmem>>, vector<32x32xbf16>
    %c0_109 = arith.constant 0 : index
    %c0_110 = arith.constant 0 : index
    %330 = vector.load %arg14[%c0_109, %c0_110] : memref<32x1664xbf16, #tpu.memory_space<vmem>>, vector<32x1664xbf16>
    %cst_111 = arith.constant dense<0.000000e+00> : vector<32x1664xf32>
    %331 = tpu.matmul %329, %330, %cst_111 {dimension_numbers = #tpu.dot_dimension_numbers<[1], [0], [0], [1], [0, 0, 1, 1], [], []>} : vector<32x32xbf16>, vector<32x1664xbf16>, vector<32x1664xf32> -> vector<32x1664xf32>
    %c0_112 = arith.constant 0 : index
    %c0_113 = arith.constant 0 : index
    %332 = vector.load %arg9[%c0_112, %c0_113] : memref<32x1xf32, #tpu.memory_space<vmem>>, vector<32x1xf32>
    %333 = vector.extract_strided_slice %331 {offsets = [0, 0], sizes = [32, 128], strides = [1, 1]} : vector<32x1664xf32> to vector<32x128xf32>
    %334 = vector.broadcast %332 : vector<32x1xf32> to vector<32x128xf32>
    %335 = arith.addf %333, %334 : vector<32x128xf32>
    %336 = vector.extract_strided_slice %331 {offsets = [0, 128], sizes = [32, 128], strides = [1, 1]} : vector<32x1664xf32> to vector<32x128xf32>
    %337 = vector.extract_strided_slice %331 {offsets = [0, 256], sizes = [32, 128], strides = [1, 1]} : vector<32x1664xf32> to vector<32x128xf32>
    %338 = vector.extract_strided_slice %331 {offsets = [0, 384], sizes = [32, 128], strides = [1, 1]} : vector<32x1664xf32> to vector<32x128xf32>
    %339 = vector.extract_strided_slice %331 {offsets = [0, 512], sizes = [32, 128], strides = [1, 1]} : vector<32x1664xf32> to vector<32x128xf32>
    %340 = vector.extract_strided_slice %331 {offsets = [0, 640], sizes = [32, 128], strides = [1, 1]} : vector<32x1664xf32> to vector<32x128xf32>
    %341 = vector.extract_strided_slice %331 {offsets = [0, 768], sizes = [32, 128], strides = [1, 1]} : vector<32x1664xf32> to vector<32x128xf32>
    %342 = vector.extract_strided_slice %331 {offsets = [0, 896], sizes = [32, 128], strides = [1, 1]} : vector<32x1664xf32> to vector<32x128xf32>
    %343 = vector.extract_strided_slice %331 {offsets = [0, 1024], sizes = [32, 128], strides = [1, 1]} : vector<32x1664xf32> to vector<32x128xf32>
    %344 = vector.extract_strided_slice %331 {offsets = [0, 1152], sizes = [32, 128], strides = [1, 1]} : vector<32x1664xf32> to vector<32x128xf32>
    %345 = vector.extract_strided_slice %331 {offsets = [0, 1280], sizes = [32, 128], strides = [1, 1]} : vector<32x1664xf32> to vector<32x128xf32>
    %346 = vector.extract_strided_slice %331 {offsets = [0, 1408], sizes = [32, 128], strides = [1, 1]} : vector<32x1664xf32> to vector<32x128xf32>
    %347 = vector.extract_strided_slice %331 {offsets = [0, 1536], sizes = [32, 128], strides = [1, 1]} : vector<32x1664xf32> to vector<32x128xf32>
    %348 = math.tanh %335 : vector<32x128xf32>
    %349 = arith.mulf %348, %348 : vector<32x128xf32>
    %cst_114 = arith.constant 1.000000e+00 : f32
    %350 = vector.broadcast %cst_114 : f32 to vector<32x128xf32>
    %351 = arith.subf %350, %349 : vector<32x128xf32>
    %cst_115 = arith.constant -2.000000e+00 : f32
    %352 = vector.broadcast %cst_115 : f32 to vector<32x128xf32>
    %353 = arith.mulf %352, %348 : vector<32x128xf32>
    %354 = arith.mulf %353, %351 : vector<32x128xf32>
    %cst_116 = arith.constant 2.000000e+00 : f32
    %355 = vector.broadcast %cst_116 : f32 to vector<32x128xf32>
    %356 = arith.mulf %355, %351 : vector<32x128xf32>
    %cst_117 = arith.constant 3.000000e+00 : f32
    %357 = vector.broadcast %cst_117 : f32 to vector<32x128xf32>
    %358 = arith.mulf %357, %349 : vector<32x128xf32>
    %cst_118 = arith.constant 1.000000e+00 : f32
    %359 = vector.broadcast %cst_118 : f32 to vector<32x128xf32>
    %360 = arith.subf %358, %359 : vector<32x128xf32>
    %361 = arith.mulf %356, %360 : vector<32x128xf32>
    %362 = arith.mulf %336, %336 : vector<32x128xf32>
    %363 = arith.mulf %337, %337 : vector<32x128xf32>
    %364 = arith.mulf %354, %336 : vector<32x128xf32>
    %365 = arith.mulf %354, %337 : vector<32x128xf32>
    %366 = arith.mulf %361, %362 : vector<32x128xf32>
    %367 = arith.mulf %361, %363 : vector<32x128xf32>
    %368 = arith.truncf %348 : vector<32x128xf32> to vector<32x128xbf16>
    %c0_119 = arith.constant 0 : index
    %c0_120 = arith.constant 0 : index
    %369 = vector.load %arg14[%c0_119, %c0_120] : memref<32x1664xbf16, #tpu.memory_space<vmem>>, vector<32x128xbf16>
    tpu.vector_store %arg14[%c0_119, %c0_120], %368 {strides = array<i32>} : memref<32x1664xbf16, #tpu.memory_space<vmem>>, vector<32x128xbf16>,
    %370 = arith.mulf %351, %336 : vector<32x128xf32>
    %371 = arith.truncf %370 : vector<32x128xf32> to vector<32x128xbf16>
    %c0_121 = arith.constant 0 : index
    %c128_122 = arith.constant 128 : index
    %372 = vector.load %arg14[%c0_121, %c128_122] : memref<32x1664xbf16, #tpu.memory_space<vmem>>, vector<32x128xbf16>
    tpu.vector_store %arg14[%c0_121, %c128_122], %371 {strides = array<i32>} : memref<32x1664xbf16, #tpu.memory_space<vmem>>, vector<32x128xbf16>,
    %373 = arith.mulf %351, %337 : vector<32x128xf32>
    %374 = arith.truncf %373 : vector<32x128xf32> to vector<32x128xbf16>
    %c0_123 = arith.constant 0 : index
    %c256_124 = arith.constant 256 : index
    %375 = vector.load %arg14[%c0_123, %c256_124] : memref<32x1664xbf16, #tpu.memory_space<vmem>>, vector<32x128xbf16>
    tpu.vector_store %arg14[%c0_123, %c256_124], %374 {strides = array<i32>} : memref<32x1664xbf16, #tpu.memory_space<vmem>>, vector<32x128xbf16>,
    %376 = arith.mulf %351, %338 : vector<32x128xf32>
    %377 = arith.truncf %376 : vector<32x128xf32> to vector<32x128xbf16>
    %c0_125 = arith.constant 0 : index
    %c384_126 = arith.constant 384 : index
    %378 = vector.load %arg14[%c0_125, %c384_126] : memref<32x1664xbf16, #tpu.memory_space<vmem>>, vector<32x128xbf16>
    tpu.vector_store %arg14[%c0_125, %c384_126], %377 {strides = array<i32>} : memref<32x1664xbf16, #tpu.memory_space<vmem>>, vector<32x128xbf16>,
    %379 = arith.mulf %354, %362 : vector<32x128xf32>
    %380 = arith.mulf %351, %339 : vector<32x128xf32>
    %381 = arith.addf %379, %380 : vector<32x128xf32>
    %382 = arith.truncf %381 : vector<32x128xf32> to vector<32x128xbf16>
    %c0_127 = arith.constant 0 : index
    %c512_128 = arith.constant 512 : index
    %383 = vector.load %arg14[%c0_127, %c512_128] : memref<32x1664xbf16, #tpu.memory_space<vmem>>, vector<32x128xbf16>
    tpu.vector_store %arg14[%c0_127, %c512_128], %382 {strides = array<i32>} : memref<32x1664xbf16, #tpu.memory_space<vmem>>, vector<32x128xbf16>,
    %384 = arith.mulf %364, %337 : vector<32x128xf32>
    %385 = arith.mulf %351, %340 : vector<32x128xf32>
    %386 = arith.addf %384, %385 : vector<32x128xf32>
    %387 = arith.truncf %386 : vector<32x128xf32> to vector<32x128xbf16>
    %c0_129 = arith.constant 0 : index
    %c640_130 = arith.constant 640 : index
    %388 = vector.load %arg14[%c0_129, %c640_130] : memref<32x1664xbf16, #tpu.memory_space<vmem>>, vector<32x128xbf16>
    tpu.vector_store %arg14[%c0_129, %c640_130], %387 {strides = array<i32>} : memref<32x1664xbf16, #tpu.memory_space<vmem>>, vector<32x128xbf16>,
    %389 = arith.mulf %364, %338 : vector<32x128xf32>
    %390 = arith.mulf %351, %341 : vector<32x128xf32>
    %391 = arith.addf %389, %390 : vector<32x128xf32>
    %392 = arith.truncf %391 : vector<32x128xf32> to vector<32x128xbf16>
    %c0_131 = arith.constant 0 : index
    %c768_132 = arith.constant 768 : index
    %393 = vector.load %arg14[%c0_131, %c768_132] : memref<32x1664xbf16, #tpu.memory_space<vmem>>, vector<32x128xbf16>
    tpu.vector_store %arg14[%c0_131, %c768_132], %392 {strides = array<i32>} : memref<32x1664xbf16, #tpu.memory_space<vmem>>, vector<32x128xbf16>,
    %394 = arith.mulf %354, %363 : vector<32x128xf32>
    %395 = arith.mulf %351, %342 : vector<32x128xf32>
    %396 = arith.addf %394, %395 : vector<32x128xf32>
    %397 = arith.truncf %396 : vector<32x128xf32> to vector<32x128xbf16>
    %c0_133 = arith.constant 0 : index
    %c896_134 = arith.constant 896 : index
    %398 = vector.load %arg14[%c0_133, %c896_134] : memref<32x1664xbf16, #tpu.memory_space<vmem>>, vector<32x128xbf16>
    tpu.vector_store %arg14[%c0_133, %c896_134], %397 {strides = array<i32>} : memref<32x1664xbf16, #tpu.memory_space<vmem>>, vector<32x128xbf16>,
    %399 = arith.mulf %365, %338 : vector<32x128xf32>
    %400 = arith.mulf %351, %343 : vector<32x128xf32>
    %401 = arith.addf %399, %400 : vector<32x128xf32>
    %402 = arith.truncf %401 : vector<32x128xf32> to vector<32x128xbf16>
    %c0_135 = arith.constant 0 : index
    %c1024_136 = arith.constant 1024 : index
    %403 = vector.load %arg14[%c0_135, %c1024_136] : memref<32x1664xbf16, #tpu.memory_space<vmem>>, vector<32x128xbf16>
    tpu.vector_store %arg14[%c0_135, %c1024_136], %402 {strides = array<i32>} : memref<32x1664xbf16, #tpu.memory_space<vmem>>, vector<32x128xbf16>,
    %404 = arith.mulf %366, %336 : vector<32x128xf32>
    %405 = arith.mulf %364, %339 : vector<32x128xf32>
    %cst_137 = arith.constant 3.000000e+00 : f32
    %406 = vector.broadcast %cst_137 : f32 to vector<32x128xf32>
    %407 = arith.mulf %406, %405 : vector<32x128xf32>
    %408 = arith.addf %404, %407 : vector<32x128xf32>
    %409 = arith.mulf %351, %344 : vector<32x128xf32>
    %410 = arith.addf %408, %409 : vector<32x128xf32>
    %411 = arith.truncf %410 : vector<32x128xf32> to vector<32x128xbf16>
    %c0_138 = arith.constant 0 : index
    %c1152_139 = arith.constant 1152 : index
    %412 = vector.load %arg14[%c0_138, %c1152_139] : memref<32x1664xbf16, #tpu.memory_space<vmem>>, vector<32x128xbf16>
    tpu.vector_store %arg14[%c0_138, %c1152_139], %411 {strides = array<i32>} : memref<32x1664xbf16, #tpu.memory_space<vmem>>, vector<32x128xbf16>,
    %413 = arith.mulf %366, %337 : vector<32x128xf32>
    %414 = arith.mulf %339, %337 : vector<32x128xf32>
    %415 = arith.mulf %354, %414 : vector<32x128xf32>
    %416 = arith.addf %413, %415 : vector<32x128xf32>
    %417 = arith.mulf %364, %340 : vector<32x128xf32>
    %cst_140 = arith.constant 2.000000e+00 : f32
    %418 = vector.broadcast %cst_140 : f32 to vector<32x128xf32>
    %419 = arith.mulf %418, %417 : vector<32x128xf32>
    %420 = arith.addf %416, %419 : vector<32x128xf32>
    %421 = arith.mulf %351, %345 : vector<32x128xf32>
    %422 = arith.addf %420, %421 : vector<32x128xf32>
    %423 = arith.truncf %422 : vector<32x128xf32> to vector<32x128xbf16>
    %c0_141 = arith.constant 0 : index
    %c1280_142 = arith.constant 1280 : index
    %424 = vector.load %arg14[%c0_141, %c1280_142] : memref<32x1664xbf16, #tpu.memory_space<vmem>>, vector<32x128xbf16>
    tpu.vector_store %arg14[%c0_141, %c1280_142], %423 {strides = array<i32>} : memref<32x1664xbf16, #tpu.memory_space<vmem>>, vector<32x128xbf16>,
    %425 = arith.mulf %367, %336 : vector<32x128xf32>
    %426 = arith.mulf %342, %336 : vector<32x128xf32>
    %427 = arith.mulf %354, %426 : vector<32x128xf32>
    %428 = arith.addf %425, %427 : vector<32x128xf32>
    %429 = arith.mulf %365, %340 : vector<32x128xf32>
    %cst_143 = arith.constant 2.000000e+00 : f32
    %430 = vector.broadcast %cst_143 : f32 to vector<32x128xf32>
    %431 = arith.mulf %430, %429 : vector<32x128xf32>
    %432 = arith.addf %428, %431 : vector<32x128xf32>
    %433 = arith.mulf %351, %346 : vector<32x128xf32>
    %434 = arith.addf %432, %433 : vector<32x128xf32>
    %435 = arith.truncf %434 : vector<32x128xf32> to vector<32x128xbf16>
    %c0_144 = arith.constant 0 : index
    %c1408_145 = arith.constant 1408 : index
    %436 = vector.load %arg14[%c0_144, %c1408_145] : memref<32x1664xbf16, #tpu.memory_space<vmem>>, vector<32x128xbf16>
    tpu.vector_store %arg14[%c0_144, %c1408_145], %435 {strides = array<i32>} : memref<32x1664xbf16, #tpu.memory_space<vmem>>, vector<32x128xbf16>,
    %437 = arith.mulf %367, %337 : vector<32x128xf32>
    %438 = arith.mulf %365, %342 : vector<32x128xf32>
    %cst_146 = arith.constant 3.000000e+00 : f32
    %439 = vector.broadcast %cst_146 : f32 to vector<32x128xf32>
    %440 = arith.mulf %439, %438 : vector<32x128xf32>
    %441 = arith.addf %437, %440 : vector<32x128xf32>
    %442 = arith.mulf %351, %347 : vector<32x128xf32>
    %443 = arith.addf %441, %442 : vector<32x128xf32>
    %444 = arith.truncf %443 : vector<32x128xf32> to vector<32x128xbf16>
    %c0_147 = arith.constant 0 : index
    %c1536_148 = arith.constant 1536 : index
    %445 = vector.load %arg14[%c0_147, %c1536_148] : memref<32x1664xbf16, #tpu.memory_space<vmem>>, vector<32x128xbf16>
    tpu.vector_store %arg14[%c0_147, %c1536_148], %444 {strides = array<i32>} : memref<32x1664xbf16, #tpu.memory_space<vmem>>, vector<32x128xbf16>,
    %c0_149 = arith.constant 0 : index
    %c0_150 = arith.constant 0 : index
    %446 = vector.load %arg10[%c0_149, %c0_150] : memref<8x32xbf16, #tpu.memory_space<vmem>>, vector<8x32xbf16>
    %c0_151 = arith.constant 0 : index
    %c0_152 = arith.constant 0 : index
    %447 = vector.load %arg14[%c0_151, %c0_152] : memref<32x1664xbf16, #tpu.memory_space<vmem>>, vector<32x1664xbf16>
    %cst_153 = arith.constant dense<0.000000e+00> : vector<8x1664xf32>
    %448 = tpu.matmul %446, %447, %cst_153 {dimension_numbers = #tpu.dot_dimension_numbers<[1], [0], [0], [1], [0, 0, 1, 1], [], []>} : vector<8x32xbf16>, vector<32x1664xbf16>, vector<8x1664xf32> -> vector<8x1664xf32>
    %c0_154 = arith.constant 0 : index
    %c0_155 = arith.constant 0 : index
    %449 = vector.load %arg11[%c0_154, %c0_155] : memref<8x1xf32, #tpu.memory_space<vmem>>, vector<8x1xf32>
    %450 = vector.extract_strided_slice %448 {offsets = [0, 0], sizes = [8, 128], strides = [1, 1]} : vector<8x1664xf32> to vector<8x128xf32>
    %451 = vector.broadcast %449 : vector<8x1xf32> to vector<8x128xf32>
    %452 = arith.addf %450, %451 : vector<8x128xf32>
    %453 = vector.extract_strided_slice %448 {offsets = [0, 128], sizes = [8, 128], strides = [1, 1]} : vector<8x1664xf32> to vector<8x128xf32>
    %454 = vector.extract_strided_slice %448 {offsets = [0, 256], sizes = [8, 128], strides = [1, 1]} : vector<8x1664xf32> to vector<8x128xf32>
    %455 = vector.extract_strided_slice %448 {offsets = [0, 512], sizes = [8, 128], strides = [1, 1]} : vector<8x1664xf32> to vector<8x128xf32>
    %456 = vector.extract_strided_slice %448 {offsets = [0, 640], sizes = [8, 128], strides = [1, 1]} : vector<8x1664xf32> to vector<8x128xf32>
    %457 = vector.extract_strided_slice %448 {offsets = [0, 768], sizes = [8, 128], strides = [1, 1]} : vector<8x1664xf32> to vector<8x128xf32>
    %458 = vector.extract_strided_slice %448 {offsets = [0, 896], sizes = [8, 128], strides = [1, 1]} : vector<8x1664xf32> to vector<8x128xf32>
    %459 = vector.extract_strided_slice %448 {offsets = [0, 1024], sizes = [8, 128], strides = [1, 1]} : vector<8x1664xf32> to vector<8x128xf32>
    %460 = vector.extract_strided_slice %448 {offsets = [0, 1152], sizes = [8, 128], strides = [1, 1]} : vector<8x1664xf32> to vector<8x128xf32>
    %461 = vector.extract_strided_slice %448 {offsets = [0, 1280], sizes = [8, 128], strides = [1, 1]} : vector<8x1664xf32> to vector<8x128xf32>
    %462 = vector.extract_strided_slice %448 {offsets = [0, 1408], sizes = [8, 128], strides = [1, 1]} : vector<8x1664xf32> to vector<8x128xf32>
    %463 = vector.extract_strided_slice %448 {offsets = [0, 1536], sizes = [8, 128], strides = [1, 1]} : vector<8x1664xf32> to vector<8x128xf32>
    %464 = vector.extract_strided_slice %452 {offsets = [1, 0], sizes = [1, 128], strides = [1, 1]} : vector<8x128xf32> to vector<1x128xf32>
    %465 = vector.extract_strided_slice %454 {offsets = [0, 0], sizes = [1, 128], strides = [1, 1]} : vector<8x128xf32> to vector<1x128xf32>
    %466 = vector.extract_strided_slice %453 {offsets = [0, 0], sizes = [1, 128], strides = [1, 1]} : vector<8x128xf32> to vector<1x128xf32>
    %cst_156 = arith.constant 0.000000e+00 : f32
    %467 = vector.broadcast %cst_156 : f32 to vector<1x128xf32>
    %468 = arith.subf %467, %466 : vector<1x128xf32>
    %469 = vector.extract_strided_slice %459 {offsets = [0, 0], sizes = [1, 128], strides = [1, 1]} : vector<8x128xf32> to vector<1x128xf32>
    %470 = vector.extract_strided_slice %457 {offsets = [0, 0], sizes = [1, 128], strides = [1, 1]} : vector<8x128xf32> to vector<1x128xf32>
    %cst_157 = arith.constant 0.000000e+00 : f32
    %471 = vector.broadcast %cst_157 : f32 to vector<1x128xf32>
    %472 = arith.subf %471, %470 : vector<1x128xf32>
    %473 = vector.extract_strided_slice %456 {offsets = [0, 0], sizes = [1, 128], strides = [1, 1]} : vector<8x128xf32> to vector<1x128xf32>
    %474 = vector.extract_strided_slice %455 {offsets = [0, 0], sizes = [1, 128], strides = [1, 1]} : vector<8x128xf32> to vector<1x128xf32>
    %cst_158 = arith.constant 0.000000e+00 : f32
    %475 = vector.broadcast %cst_158 : f32 to vector<1x128xf32>
    %476 = arith.subf %475, %474 : vector<1x128xf32>
    %477 = vector.extract_strided_slice %458 {offsets = [0, 0], sizes = [1, 128], strides = [1, 1]} : vector<8x128xf32> to vector<1x128xf32>
    %478 = vector.extract_strided_slice %456 {offsets = [0, 0], sizes = [1, 128], strides = [1, 1]} : vector<8x128xf32> to vector<1x128xf32>
    %cst_159 = arith.constant 0.000000e+00 : f32
    %479 = vector.broadcast %cst_159 : f32 to vector<1x128xf32>
    %480 = arith.subf %479, %478 : vector<1x128xf32>
    %481 = vector.extract_strided_slice %453 {offsets = [1, 0], sizes = [1, 128], strides = [1, 1]} : vector<8x128xf32> to vector<1x128xf32>
    %482 = vector.extract_strided_slice %454 {offsets = [1, 0], sizes = [1, 128], strides = [1, 1]} : vector<8x128xf32> to vector<1x128xf32>
    %483 = vector.extract_strided_slice %461 {offsets = [0, 0], sizes = [1, 128], strides = [1, 1]} : vector<8x128xf32> to vector<1x128xf32>
    %484 = vector.extract_strided_slice %460 {offsets = [0, 0], sizes = [1, 128], strides = [1, 1]} : vector<8x128xf32> to vector<1x128xf32>
    %cst_160 = arith.constant 0.000000e+00 : f32
    %485 = vector.broadcast %cst_160 : f32 to vector<1x128xf32>
    %486 = arith.subf %485, %484 : vector<1x128xf32>
    %487 = vector.extract_strided_slice %463 {offsets = [0, 0], sizes = [1, 128], strides = [1, 1]} : vector<8x128xf32> to vector<1x128xf32>
    %488 = vector.extract_strided_slice %462 {offsets = [0, 0], sizes = [1, 128], strides = [1, 1]} : vector<8x128xf32> to vector<1x128xf32>
    %cst_161 = arith.constant 0.000000e+00 : f32
    %489 = vector.broadcast %cst_161 : f32 to vector<1x128xf32>
    %490 = arith.subf %489, %488 : vector<1x128xf32>
    %c0_162 = arith.constant 0 : index
    %491 = memref.load %arg12[%c0_162] : memref<2xf32, #tpu.memory_space<smem>>
    %c1 = arith.constant 1 : index
    %492 = memref.load %arg12[%c1] : memref<2xf32, #tpu.memory_space<smem>>
    %493 = arith.mulf %465, %473 : vector<1x128xf32>
    %494 = arith.addf %469, %493 : vector<1x128xf32>
    %495 = arith.mulf %468, %477 : vector<1x128xf32>
    %496 = arith.addf %494, %495 : vector<1x128xf32>
    %497 = vector.broadcast %491 : f32 to vector<1x128xf32>
    %498 = arith.mulf %497, %496 : vector<1x128xf32>
    %499 = arith.addf %498, %481 : vector<1x128xf32>
    %500 = arith.addf %483, %487 : vector<1x128xf32>
    %501 = vector.broadcast %492 : f32 to vector<1x128xf32>
    %502 = arith.mulf %501, %500 : vector<1x128xf32>
    %503 = arith.subf %499, %502 : vector<1x128xf32>
    %504 = arith.mulf %465, %476 : vector<1x128xf32>
    %505 = arith.addf %472, %504 : vector<1x128xf32>
    %506 = arith.mulf %468, %480 : vector<1x128xf32>
    %507 = arith.addf %505, %506 : vector<1x128xf32>
    %508 = vector.broadcast %491 : f32 to vector<1x128xf32>
    %509 = arith.mulf %508, %507 : vector<1x128xf32>
    %510 = arith.addf %509, %482 : vector<1x128xf32>
    %511 = arith.addf %486, %490 : vector<1x128xf32>
    %512 = vector.broadcast %492 : f32 to vector<1x128xf32>
    %513 = arith.mulf %512, %511 : vector<1x128xf32>
    %514 = arith.subf %510, %513 : vector<1x128xf32>
    %c0_163 = arith.constant 0 : index
    %c0_164 = arith.constant 0 : index
    %515 = vector.load %arg13[%c0_163, %c0_164] : memref<8x128xf32, #tpu.memory_space<vmem>>, vector<1x128xf32>
    tpu.vector_store %arg13[%c0_163, %c0_164], %464 {strides = array<i32>} : memref<8x128xf32, #tpu.memory_space<vmem>>, vector<1x128xf32>,
    %c1_165 = arith.constant 1 : index
    %c0_166 = arith.constant 0 : index
    %516 = vector.load %arg13[%c1_165, %c0_166] : memref<8x128xf32, #tpu.memory_space<vmem>>, vector<1x128xf32>
    tpu.vector_store %arg13[%c1_165, %c0_166], %465 {strides = array<i32>} : memref<8x128xf32, #tpu.memory_space<vmem>>, vector<1x128xf32>,
    %c2 = arith.constant 2 : index
    %c0_167 = arith.constant 0 : index
    %517 = vector.load %arg13[%c2, %c0_167] : memref<8x128xf32, #tpu.memory_space<vmem>>, vector<1x128xf32>
    tpu.vector_store %arg13[%c2, %c0_167], %468 {strides = array<i32>} : memref<8x128xf32, #tpu.memory_space<vmem>>, vector<1x128xf32>,
    %c3 = arith.constant 3 : index
    %c0_168 = arith.constant 0 : index
    %518 = vector.load %arg13[%c3, %c0_168] : memref<8x128xf32, #tpu.memory_space<vmem>>, vector<1x128xf32>
    tpu.vector_store %arg13[%c3, %c0_168], %503 {strides = array<i32>} : memref<8x128xf32, #tpu.memory_space<vmem>>, vector<1x128xf32>,
    %c4 = arith.constant 4 : index
    %c0_169 = arith.constant 0 : index
    %519 = vector.load %arg13[%c4, %c0_169] : memref<8x128xf32, #tpu.memory_space<vmem>>, vector<1x128xf32>
    tpu.vector_store %arg13[%c4, %c0_169], %514 {strides = array<i32>} : memref<8x128xf32, #tpu.memory_space<vmem>>, vector<1x128xf32>,
    %cst_170 = arith.constant 0.000000e+00 : f32
    %520 = vector.broadcast %cst_170 : f32 to vector<3x128xf32>
    %c5 = arith.constant 5 : index
    %c0_171 = arith.constant 0 : index
    %521 = vector.load %arg13[%c5, %c0_171] : memref<8x128xf32, #tpu.memory_space<vmem>>, vector<3x128xf32>
    tpu.vector_store %arg13[%c5, %c0_171], %520 {strides = array<i32>} : memref<8x128xf32, #tpu.memory_space<vmem>>, vector<3x128xf32>,
    return
  }
  func.func @transform_0(%arg0: i32) -> (i32, i32) {
    %c0_i32 = arith.constant 0 : i32
    %c0_i32_0 = arith.constant 0 : i32
    return %c0_i32, %arg0 : i32, i32
  }
  func.func @transform_1(%arg0: i32) -> (i32, i32) {
    %c0_i32 = arith.constant 0 : i32
    %c0_i32_0 = arith.constant 0 : i32
    %c0_i32_1 = arith.constant 0 : i32
    return %c0_i32, %c0_i32_0 : i32, i32
  }
  func.func @transform_2(%arg0: i32) -> (i32, i32) {
    %c0_i32 = arith.constant 0 : i32
    %c0_i32_0 = arith.constant 0 : i32
    %c0_i32_1 = arith.constant 0 : i32
    return %c0_i32, %c0_i32_0 : i32, i32
  }
  func.func @transform_3(%arg0: i32) -> (i32, i32) {
    %c0_i32 = arith.constant 0 : i32
    %c0_i32_0 = arith.constant 0 : i32
    %c0_i32_1 = arith.constant 0 : i32
    return %c0_i32, %c0_i32_0 : i32, i32
  }
  func.func @transform_4(%arg0: i32) -> (i32, i32) {
    %c0_i32 = arith.constant 0 : i32
    %c0_i32_0 = arith.constant 0 : i32
    %c0_i32_1 = arith.constant 0 : i32
    return %c0_i32, %c0_i32_0 : i32, i32
  }
  func.func @transform_5(%arg0: i32) -> (i32, i32) {
    %c0_i32 = arith.constant 0 : i32
    %c0_i32_0 = arith.constant 0 : i32
    %c0_i32_1 = arith.constant 0 : i32
    return %c0_i32, %c0_i32_0 : i32, i32
  }
  func.func @transform_6(%arg0: i32) -> (i32, i32) {
    %c0_i32 = arith.constant 0 : i32
    %c0_i32_0 = arith.constant 0 : i32
    %c0_i32_1 = arith.constant 0 : i32
    return %c0_i32, %c0_i32_0 : i32, i32
  }
  func.func @transform_7(%arg0: i32) -> (i32, i32) {
    %c0_i32 = arith.constant 0 : i32
    %c0_i32_0 = arith.constant 0 : i32
    %c0_i32_1 = arith.constant 0 : i32
    return %c0_i32, %c0_i32_0 : i32, i32
  }
  func.func @transform_8(%arg0: i32) -> (i32, i32) {
    %c0_i32 = arith.constant 0 : i32
    %c0_i32_0 = arith.constant 0 : i32
    %c0_i32_1 = arith.constant 0 : i32
    return %c0_i32, %c0_i32_0 : i32, i32
  }
  func.func @transform_9(%arg0: i32) -> (i32, i32) {
    %c0_i32 = arith.constant 0 : i32
    %c0_i32_0 = arith.constant 0 : i32
    %c0_i32_1 = arith.constant 0 : i32
    return %c0_i32, %c0_i32_0 : i32, i32
  }
  func.func @transform_10(%arg0: i32) -> (i32, i32) {
    %c0_i32 = arith.constant 0 : i32
    %c0_i32_0 = arith.constant 0 : i32
    %c0_i32_1 = arith.constant 0 : i32
    return %c0_i32, %c0_i32_0 : i32, i32
  }
  func.func @transform_11(%arg0: i32) -> i32 {
    %c0_i32 = arith.constant 0 : i32
    %c0_i32_0 = arith.constant 0 : i32
    return %c0_i32 : i32
  }
  func.func @transform_12(%arg0: i32) -> (i32, i32) {
    %c0_i32 = arith.constant 0 : i32
    %c0_i32_0 = arith.constant 0 : i32
    return %c0_i32, %arg0 : i32, i32
  }
}

</mosaic_0001>

<llo_original>
// kernel: tpu_custom_call.1
$region0: #{tpu_custom_call.1}
  #allocation0 [shape = 'u32[]', space=smem, size = 0x4, offset = 0x4, fixed_abs, tag = 'smem constant byte address 0x4 - core index']
  #allocation1 [shape = 'u32[72,128]{1,0:T(1,128)}', space=vmem, size = 0x9000, scoped, tag = 'internal scratch']
  #allocation2 [shape = 'bf16[32,1664]{1,0:T(8,128)(2,1)}', space=vmem, size = 0x1a000, scoped, tag = 'scratch operand']
  %s0 = inlined_call_operand.vmem [shape: f32[8,128], index: 0, kind: input, shape index: {}]
  %s1 = inlined_call_operand.vmem [shape: f32[32,8], index: 1, kind: input, shape index: {}]
  %s2 = inlined_call_operand.vmem [shape: f32[32,1], index: 2, kind: input, shape index: {}]
  %s3 = inlined_call_operand.vmem [shape: bf16[32,32], index: 3, kind: input, shape index: {}]
  %s4 = inlined_call_operand.vmem [shape: f32[32,1], index: 4, kind: input, shape index: {}]
  %s5 = inlined_call_operand.vmem [shape: bf16[32,32], index: 5, kind: input, shape index: {}]
  %s6 = inlined_call_operand.vmem [shape: f32[32,1], index: 6, kind: input, shape index: {}]
  %s7 = inlined_call_operand.vmem [shape: bf16[32,32], index: 7, kind: input, shape index: {}]
  %s8 = inlined_call_operand.vmem [shape: f32[32,1], index: 8, kind: input, shape index: {}]
  %s9 = inlined_call_operand.vmem [shape: bf16[8,32], index: 9, kind: input, shape index: {}]
  %s10 = inlined_call_operand.vmem [shape: f32[8,1], index: 10, kind: input, shape index: {}]
  %s11 = inlined_call_operand.vmem [shape: f32[2], index: 11, kind: input, shape index: {}]
  %s12 = inlined_call_operand.hbm [shape: f32[8,128], index: 12, kind: output, shape index: {}]
  %s13 = sld [smem:[#allocation0]]
  $region62: #{tpu_custom_call.1} parent=0
    _
  %s15 = ssub.s32 1, %s13
  %s16 = scalar_select 0, %s15, %s13
  $region1: #{tpu_custom_call.1} parent=0
    #allocation3 [shape = 'u8[512]{0}', space=smem, size = 0x200, scoped, tag = 'input window, operand 11, single buffered']
    #allocation4 [shape = 's32[1]{0}', space=sflag, size = 0x4, scoped, tag = 'scoped memory for tpu_custom_call.1']
    #allocation5 [shape = 's32[1]{0}', space=sflag, size = 0x4, scoped, tag = 'scoped memory for tpu_custom_call.1']
    #allocation6 [shape = 'u8[4096]{0}', space=vmem, size = 0x1000, scoped, tag = 'output window, operand 0, single buffered']
    %17 = vsyncpa [#allocation5], 0
    %18 = vsyncpa [#allocation4], 0
    // Predicated region
    $region2: #{tpu_custom_call.1} parent=1 // pred_check
      _
    $region3: #{tpu_custom_call.1} parent=1 // pred_check_branch
      %20 = sbr.rel (0) target = $region5
    $region4: #{tpu_custom_call.1} parent=1 // pred_region
      _
    $region5: #{tpu_custom_call.1} parent=1 // pred_fallthru
      _
    // Predicated region
    $region6: #{tpu_custom_call.1} parent=1 // pred_check
      _
    $region7: #{tpu_custom_call.1} parent=1 // pred_check_branch
      %22 = sbr.rel (0) target = $region9
    $region8: #{tpu_custom_call.1} parent=1 // pred_region
      _
    $region9: #{tpu_custom_call.1} parent=1 // pred_fallthru
      _
    // Predicated region
    $region10: #{tpu_custom_call.1} parent=1 // pred_check
      _
    $region11: #{tpu_custom_call.1} parent=1 // pred_check_branch
      %24 = sbr.rel (0) target = $region13
    $region12: #{tpu_custom_call.1} parent=1 // pred_region
      _
    $region13: #{tpu_custom_call.1} parent=1 // pred_fallthru
      _
    // Predicated region
    $region14: #{tpu_custom_call.1} parent=1 // pred_check
      _
    $region15: #{tpu_custom_call.1} parent=1 // pred_check_branch
      %26 = sbr.rel (0) target = $region17
    $region16: #{tpu_custom_call.1} parent=1 // pred_region
      _
    $region17: #{tpu_custom_call.1} parent=1 // pred_fallthru
      _
    // Predicated region
    $region18: #{tpu_custom_call.1} parent=1 // pred_check
      _
    $region19: #{tpu_custom_call.1} parent=1 // pred_check_branch
      %28 = sbr.rel (0) target = $region21
    $region20: #{tpu_custom_call.1} parent=1 // pred_region
      _
    $region21: #{tpu_custom_call.1} parent=1 // pred_fallthru
      _
    // Predicated region
    $region22: #{tpu_custom_call.1} parent=1 // pred_check
      _
    $region23: #{tpu_custom_call.1} parent=1 // pred_check_branch
      %30 = sbr.rel (0) target = $region25
    $region24: #{tpu_custom_call.1} parent=1 // pred_region
      _
    $region25: #{tpu_custom_call.1} parent=1 // pred_fallthru
      _
    // Predicated region
    $region26: #{tpu_custom_call.1} parent=1 // pred_check
      _
    $region27: #{tpu_custom_call.1} parent=1 // pred_check_branch
      %32 = sbr.rel (0) target = $region29
    $region28: #{tpu_custom_call.1} parent=1 // pred_region
      _
    $region29: #{tpu_custom_call.1} parent=1 // pred_fallthru
      _
    // Predicated region
    $region30: #{tpu_custom_call.1} parent=1 // pred_check
      _
    $region31: #{tpu_custom_call.1} parent=1 // pred_check_branch
      %34 = sbr.rel (0) target = $region33
    $region32: #{tpu_custom_call.1} parent=1 // pred_region
      _
    $region33: #{tpu_custom_call.1} parent=1 // pred_fallthru
      _
    // Predicated region
    $region34: #{tpu_custom_call.1} parent=1 // pred_check
      _
    $region35: #{tpu_custom_call.1} parent=1 // pred_check_branch
      %36 = sbr.rel (0) target = $region37
    $region36: #{tpu_custom_call.1} parent=1 // pred_region
      _
    $region37: #{tpu_custom_call.1} parent=1 // pred_fallthru
      _
    // Predicated region
    $region38: #{tpu_custom_call.1} parent=1 // pred_check
      _
    $region39: #{tpu_custom_call.1} parent=1 // pred_check_branch
      %38 = sbr.rel (0) target = $region41
    $region40: #{tpu_custom_call.1} parent=1 // pred_region
      _
    $region41: #{tpu_custom_call.1} parent=1 // pred_fallthru
      _
    // Predicated region
    $region42: #{tpu_custom_call.1} parent=1 // pred_check
      _
    $region43: #{tpu_custom_call.1} parent=1 // pred_check_branch
      %40 = sbr.rel (0) target = $region45
    $region44: #{tpu_custom_call.1} parent=1 // pred_region
      _
    $region45: #{tpu_custom_call.1} parent=1 // pred_fallthru
      _
    // Predicated region
    $region46: #{tpu_custom_call.1} parent=1 // pred_check
      _
    $region47: #{tpu_custom_call.1} parent=1 // pred_check_branch
      %42 = sbr.rel (0) target = $region49
    $region48: #{tpu_custom_call.1} parent=1 // pred_region
      %44 = vsyncadd [#allocation5], 0
      %s46 = sshll.u32 %s11, 4
      %s47 = int_to_ptr.vmem [resolvable:$true] %s46
      %49 = dma.vmem_to_smem %s47, 16, [#allocation3], [#allocation5]
    $region49: #{tpu_custom_call.1} parent=1 // pred_fallthru
      _
    // Predicated region
    $region50: #{tpu_custom_call.1} parent=1 // pred_check
      _
    $region51: #{tpu_custom_call.1} parent=1 // pred_check_branch
      %51 = sbr.rel (0) target = $region53
    $region52: #{tpu_custom_call.1} parent=1 // pred_region
      %53 = dma.done [#allocation5], 16
    $region53: #{tpu_custom_call.1} parent=1 // pred_fallthru
      _
    %54 = sfence
    %v56 = vld [vmem:[%s0] sm:$0xff]
    %v57 = vld [vmem:[%s1] sm:$0xff]
    %v58 = vld [vmem:[%s1 + $0x8] sm:$0xff]
    %v59 = vld [vmem:[%s1 + $0x10] sm:$0xff]
    %v60 = vld [vmem:[%s1 + $0x18] sm:$0xff]
    %v61 = vld [vmem:[%s2] sm:$0xff]
    %v62 = vld [vmem:[%s2 + $0x8] sm:$0xff]
    %v63 = vld [vmem:[%s2 + $0x10] sm:$0xff]
    %v64 = vld [vmem:[%s2 + $0x18] sm:$0xff]
    %66 = vset.pattern.permute.xlu0 0
    %67 = vperm.xlu0 %66, %v57
    %v68 = vpop.permute.xlu0 %67
    %71 = vset.pattern.permute.xlu0 0
    %72 = vperm.xlu0 %71, %v58
    %v73 = vpop.permute.xlu0 %72
    %76 = vset.pattern.permute.xlu0 0
    %77 = vperm.xlu0 %76, %v59
    %v78 = vpop.permute.xlu0 %77
    %81 = vset.pattern.permute.xlu0 0
    %82 = vperm.xlu0 %81, %v60
    %v83 = vpop.permute.xlu0 %82
    %v85 = vperm.slane %v56, 0
    %v86 = vmul.f32 %v68, %v85
    %v87 = vmul.f32 %v73, %v85
    %v88 = vmul.f32 %v78, %v85
    %v89 = vmul.f32 %v83, %v85
    %90 = vset.pattern.permute.xlu0 1
    %91 = vperm.xlu0 %90, %v57
    %v92 = vpop.permute.xlu0 %91
    %94 = vset.pattern.permute.xlu0 1
    %95 = vperm.xlu0 %94, %v58
    %v96 = vpop.permute.xlu0 %95
    %98 = vset.pattern.permute.xlu0 1
    %99 = vperm.xlu0 %98, %v59
    %v100 = vpop.permute.xlu0 %99
    %102 = vset.pattern.permute.xlu0 1
    %103 = vperm.xlu0 %102, %v60
    %v104 = vpop.permute.xlu0 %103
    %v106 = vperm.slane %v56, 1
    %v107 = vmul.f32 %v92, %v106
    %v108 = vmul.f32 %v96, %v106
    %v109 = vmul.f32 %v100, %v106
    %v110 = vmul.f32 %v104, %v106
    %v111 = vadd.f32 %v86, %v107
    %v112 = vadd.f32 %v87, %v108
    %v113 = vadd.f32 %v88, %v109
    %v114 = vadd.f32 %v89, %v110
    %115 = vset.pattern.permute.xlu0 2
    %116 = vperm.xlu0 %115, %v57
    %v117 = vpop.permute.xlu0 %116
    %119 = vset.pattern.permute.xlu0 2
    %120 = vperm.xlu0 %119, %v58
    %v121 = vpop.permute.xlu0 %120
    %123 = vset.pattern.permute.xlu0 2
    %124 = vperm.xlu0 %123, %v59
    %v125 = vpop.permute.xlu0 %124
    %127 = vset.pattern.permute.xlu0 2
    %128 = vperm.xlu0 %127, %v60
    %v129 = vpop.permute.xlu0 %128
    %v131 = vperm.slane %v56, 2
    %v132 = vmul.f32 %v117, %v131
    %v133 = vmul.f32 %v121, %v131
    %v134 = vmul.f32 %v125, %v131
    %v135 = vmul.f32 %v129, %v131
    %v136 = vadd.f32 %v111, %v132
    %v137 = vadd.f32 %v112, %v133
    %v138 = vadd.f32 %v113, %v134
    %v139 = vadd.f32 %v114, %v135
    %141 = vset.pattern.permute.xlu0 0
    %142 = vperm.xlu0 %141, %v61
    %v143 = vpop.permute.xlu0 %142
    %146 = vset.pattern.permute.xlu0 0
    %147 = vperm.xlu0 %146, %v62
    %v148 = vpop.permute.xlu0 %147
    %151 = vset.pattern.permute.xlu0 0
    %152 = vperm.xlu0 %151, %v63
    %v153 = vpop.permute.xlu0 %152
    %156 = vset.pattern.permute.xlu0 0
    %157 = vperm.xlu0 %156, %v64
    %v158 = vpop.permute.xlu0 %157
    %v160 = vadd.f32 %v136, %v143
    %v161 = vadd.f32 %v137, %v148
    %v162 = vadd.f32 %v138, %v153
    %v163 = vadd.f32 %v139, %v158
    %v164 = vtanh.pop %v160
    %v165 = vtanh.pop %v161
    %v166 = vtanh.pop %v162
    %v167 = vtanh.pop %v163
    %v168 = vmul.f32 %v164, %v164
    %v169 = vmul.f32 %v165, %v165
    %v170 = vmul.f32 %v166, %v166
    %v171 = vmul.f32 %v167, %v167
    %v172 = vsub.f32 1.0, %v168
    %v173 = vsub.f32 1.0, %v169
    %v174 = vsub.f32 1.0, %v170
    %v175 = vsub.f32 1.0, %v171
    %v176 = vmul.f32 %v164, -2.0
    %v177 = vmul.f32 %v165, -2.0
    %v178 = vmul.f32 %v166, -2.0
    %v179 = vmul.f32 %v167, -2.0
    %v180 = vmul.f32 %v176, %v172
    %v181 = vmul.f32 %v177, %v173
    %v182 = vmul.f32 %v178, %v174
    %v183 = vmul.f32 %v179, %v175
    %v184 = vmul.f32 %v172, 2.0
    %v185 = vmul.f32 %v173, 2.0
    %v186 = vmul.f32 %v174, 2.0
    %v187 = vmul.f32 %v175, 2.0
    %v188 = vmul.f32 %v168, 3.0
    %v189 = vmul.f32 %v169, 3.0
    %v190 = vmul.f32 %v170, 3.0
    %v191 = vmul.f32 %v171, 3.0
    %v192 = vsub.f32 %v188, 1.0
    %v193 = vsub.f32 %v189, 1.0
    %v194 = vsub.f32 %v190, 1.0
    %v195 = vsub.f32 %v191, 1.0
    %v196 = vmul.f32 %v184, %v192
    %v197 = vmul.f32 %v185, %v193
    %v198 = vmul.f32 %v186, %v194
    %v199 = vmul.f32 %v187, %v195
    %v200 = vmul.f32 %v57, %v57
    %v201 = vmul.f32 %v58, %v58
    %v202 = vmul.f32 %v59, %v59
    %v203 = vmul.f32 %v60, %v60
    %204 = vrot.lane.b32.xlu0 %v57, 127
    %v205 = vpop.permute.xlu0 %204
    %206 = vrot.lane.b32.xlu0 %v58, 127
    %v207 = vpop.permute.xlu0 %206
    %208 = vrot.lane.b32.xlu0 %v59, 127
    %v209 = vpop.permute.xlu0 %208
    %210 = vrot.lane.b32.xlu0 %v60, 127
    %v211 = vpop.permute.xlu0 %210
    %v216 = vmul.f32 %v57, %v205
    %v217 = vmul.f32 %v58, %v207
    %v218 = vmul.f32 %v59, %v209
    %v219 = vmul.f32 %v60, %v211
    %v220 = vpack.c.bf16 %v164, %v164
    %v221 = vpack.c.bf16 %v165, %v165
    %v222 = vpack.c.bf16 %v166, %v166
    %v223 = vpack.c.bf16 %v167, %v167
    %224 = vst [vmem:[#allocation2] sm:$0xf] %v220
    %225 = vst [vmem:[#allocation2 + $0x34] sm:$0xf] %v221
    %226 = vst [vmem:[#allocation2 + $0x68] sm:$0xf] %v222
    %227 = vst [vmem:[#allocation2 + $0x9c] sm:$0xf] %v223
    %v228 = vmul.f32 %v172, %v68
    %v229 = vmul.f32 %v173, %v73
    %v230 = vmul.f32 %v174, %v78
    %v231 = vmul.f32 %v175, %v83
    %v232 = vpack.c.bf16 %v228, %v228
    %v233 = vpack.c.bf16 %v229, %v229
    %v234 = vpack.c.bf16 %v230, %v230
    %v235 = vpack.c.bf16 %v231, %v231
    %236 = vst [vmem:[#allocation2 + $0x4] sm:$0xf] %v232
    %237 = vst [vmem:[#allocation2 + $0x38] sm:$0xf] %v233
    %238 = vst [vmem:[#allocation2 + $0x6c] sm:$0xf] %v234
    %239 = vst [vmem:[#allocation2 + $0xa0] sm:$0xf] %v235
    %v240 = vmul.f32 %v172, %v92
    %v241 = vmul.f32 %v173, %v96
    %v242 = vmul.f32 %v174, %v100
    %v243 = vmul.f32 %v175, %v104
    %v244 = vpack.c.bf16 %v240, %v240
    %v245 = vpack.c.bf16 %v241, %v241
    %v246 = vpack.c.bf16 %v242, %v242
    %v247 = vpack.c.bf16 %v243, %v243
    %248 = vst [vmem:[#allocation2 + $0x8] sm:$0xf] %v244
    %249 = vst [vmem:[#allocation2 + $0x3c] sm:$0xf] %v245
    %250 = vst [vmem:[#allocation2 + $0x70] sm:$0xf] %v246
    %251 = vst [vmem:[#allocation2 + $0xa4] sm:$0xf] %v247
    %v252 = vmul.f32 %v172, %v117
    %v253 = vmul.f32 %v173, %v121
    %v254 = vmul.f32 %v174, %v125
    %v255 = vmul.f32 %v175, %v129
    %v256 = vpack.c.bf16 %v252, %v252
    %v257 = vpack.c.bf16 %v253, %v253
    %v258 = vpack.c.bf16 %v254, %v254
    %v259 = vpack.c.bf16 %v255, %v255
    %260 = vst [vmem:[#allocation2 + $0xc] sm:$0xf] %v256
    %261 = vst [vmem:[#allocation2 + $0x40] sm:$0xf] %v257
    %262 = vst [vmem:[#allocation2 + $0x74] sm:$0xf] %v258
    %263 = vst [vmem:[#allocation2 + $0xa8] sm:$0xf] %v259
    %265 = vset.pattern.permute.xlu0 0
    %266 = vperm.xlu0 %265, %v200
    %v267 = vpop.permute.xlu0 %266
    %270 = vset.pattern.permute.xlu0 0
    %271 = vperm.xlu0 %270, %v201
    %v272 = vpop.permute.xlu0 %271
    %275 = vset.pattern.permute.xlu0 0
    %276 = vperm.xlu0 %275, %v202
    %v277 = vpop.permute.xlu0 %276
    %280 = vset.pattern.permute.xlu0 0
    %281 = vperm.xlu0 %280, %v203
    %v282 = vpop.permute.xlu0 %281
    %v284 = vmul.f32 %v180, %v267
    %v285 = vmul.f32 %v181, %v272
    %v286 = vmul.f32 %v182, %v277
    %v287 = vmul.f32 %v183, %v282
    %v288 = vpack.c.bf16 %v284, %v284
    %v289 = vpack.c.bf16 %v285, %v285
    %v290 = vpack.c.bf16 %v286, %v286
    %v291 = vpack.c.bf16 %v287, %v287
    %292 = vst [vmem:[#allocation2 + $0x10] sm:$0xf] %v288
    %293 = vst [vmem:[#allocation2 + $0x44] sm:$0xf] %v289
    %294 = vst [vmem:[#allocation2 + $0x78] sm:$0xf] %v290
    %295 = vst [vmem:[#allocation2 + $0xac] sm:$0xf] %v291
    %297 = vset.pattern.permute.xlu0 0
    %298 = vperm.xlu0 %297, %v216
    %v299 = vpop.permute.xlu0 %298
    %302 = vset.pattern.permute.xlu0 0
    %303 = vperm.xlu0 %302, %v217
    %v304 = vpop.permute.xlu0 %303
    %307 = vset.pattern.permute.xlu0 0
    %308 = vperm.xlu0 %307, %v218
    %v309 = vpop.permute.xlu0 %308
    %312 = vset.pattern.permute.xlu0 0
    %313 = vperm.xlu0 %312, %v219
    %v314 = vpop.permute.xlu0 %313
    %v316 = vmul.f32 %v180, %v299
    %v317 = vmul.f32 %v181, %v304
    %v318 = vmul.f32 %v182, %v309
    %v319 = vmul.f32 %v183, %v314
    %v320 = vpack.c.bf16 %v316, %v316
    %v321 = vpack.c.bf16 %v317, %v317
    %v322 = vpack.c.bf16 %v318, %v318
    %v323 = vpack.c.bf16 %v319, %v319
    %324 = vst [vmem:[#allocation2 + $0x14] sm:$0xf] %v320
    %325 = vst [vmem:[#allocation2 + $0x48] sm:$0xf] %v321
    %326 = vst [vmem:[#allocation2 + $0x7c] sm:$0xf] %v322
    %327 = vst [vmem:[#allocation2 + $0xb0] sm:$0xf] %v323
    %328 = vrot.lane.b32.xlu0 %v57, 126
    %v329 = vpop.permute.xlu0 %328
    %330 = vrot.lane.b32.xlu0 %v58, 126
    %v331 = vpop.permute.xlu0 %330
    %332 = vrot.lane.b32.xlu0 %v59, 126
    %v333 = vpop.permute.xlu0 %332
    %334 = vrot.lane.b32.xlu0 %v60, 126
    %v335 = vpop.permute.xlu0 %334
    %v340 = vmul.f32 %v57, %v329
    %v341 = vmul.f32 %v58, %v331
    %v342 = vmul.f32 %v59, %v333
    %v343 = vmul.f32 %v60, %v335
    %345 = vset.pattern.permute.xlu0 0
    %346 = vperm.xlu0 %345, %v340
    %v347 = vpop.permute.xlu0 %346
    %350 = vset.pattern.permute.xlu0 0
    %351 = vperm.xlu0 %350, %v341
    %v352 = vpop.permute.xlu0 %351
    %355 = vset.pattern.permute.xlu0 0
    %356 = vperm.xlu0 %355, %v342
    %v357 = vpop.permute.xlu0 %356
    %360 = vset.pattern.permute.xlu0 0
    %361 = vperm.xlu0 %360, %v343
    %v362 = vpop.permute.xlu0 %361
    %v364 = vmul.f32 %v180, %v347
    %v365 = vmul.f32 %v181, %v352
    %v366 = vmul.f32 %v182, %v357
    %v367 = vmul.f32 %v183, %v362
    %v368 = vpack.c.bf16 %v364, %v364
    %v369 = vpack.c.bf16 %v365, %v365
    %v370 = vpack.c.bf16 %v366, %v366
    %v371 = vpack.c.bf16 %v367, %v367
    %372 = vst [vmem:[#allocation2 + $0x18] sm:$0xf] %v368
    %373 = vst [vmem:[#allocation2 + $0x4c] sm:$0xf] %v369
    %374 = vst [vmem:[#allocation2 + $0x80] sm:$0xf] %v370
    %375 = vst [vmem:[#allocation2 + $0xb4] sm:$0xf] %v371
    %376 = vset.pattern.permute.xlu0 1
    %377 = vperm.xlu0 %376, %v200
    %v378 = vpop.permute.xlu0 %377
    %380 = vset.pattern.permute.xlu0 1
    %381 = vperm.xlu0 %380, %v201
    %v382 = vpop.permute.xlu0 %381
    %384 = vset.pattern.permute.xlu0 1
    %385 = vperm.xlu0 %384, %v202
    %v386 = vpop.permute.xlu0 %385
    %388 = vset.pattern.permute.xlu0 1
    %389 = vperm.xlu0 %388, %v203
    %v390 = vpop.permute.xlu0 %389
    %v392 = vmul.f32 %v180, %v378
    %v393 = vmul.f32 %v181, %v382
    %v394 = vmul.f32 %v182, %v386
    %v395 = vmul.f32 %v183, %v390
    %v396 = vpack.c.bf16 %v392, %v392
    %v397 = vpack.c.bf16 %v393, %v393
    %v398 = vpack.c.bf16 %v394, %v394
    %v399 = vpack.c.bf16 %v395, %v395
    %400 = vst [vmem:[#allocation2 + $0x1c] sm:$0xf] %v396
    %401 = vst [vmem:[#allocation2 + $0x50] sm:$0xf] %v397
    %402 = vst [vmem:[#allocation2 + $0x84] sm:$0xf] %v398
    %403 = vst [vmem:[#allocation2 + $0xb8] sm:$0xf] %v399
    %404 = vset.pattern.permute.xlu0 1
    %405 = vperm.xlu0 %404, %v216
    %v406 = vpop.permute.xlu0 %405
    %408 = vset.pattern.permute.xlu0 1
    %409 = vperm.xlu0 %408, %v217
    %v410 = vpop.permute.xlu0 %409
    %412 = vset.pattern.permute.xlu0 1
    %413 = vperm.xlu0 %412, %v218
    %v414 = vpop.permute.xlu0 %413
    %416 = vset.pattern.permute.xlu0 1
    %417 = vperm.xlu0 %416, %v219
    %v418 = vpop.permute.xlu0 %417
    %v420 = vmul.f32 %v180, %v406
    %v421 = vmul.f32 %v181, %v410
    %v422 = vmul.f32 %v182, %v414
    %v423 = vmul.f32 %v183, %v418
    %v424 = vpack.c.bf16 %v420, %v420
    %v425 = vpack.c.bf16 %v421, %v421
    %v426 = vpack.c.bf16 %v422, %v422
    %v427 = vpack.c.bf16 %v423, %v423
    %428 = vst [vmem:[#allocation2 + $0x20] sm:$0xf] %v424
    %429 = vst [vmem:[#allocation2 + $0x54] sm:$0xf] %v425
    %430 = vst [vmem:[#allocation2 + $0x88] sm:$0xf] %v426
    %431 = vst [vmem:[#allocation2 + $0xbc] sm:$0xf] %v427
    %v432 = vmul.f32 %v200, %v57
    %v433 = vmul.f32 %v201, %v58
    %v434 = vmul.f32 %v202, %v59
    %v435 = vmul.f32 %v203, %v60
    %437 = vset.pattern.permute.xlu0 0
    %438 = vperm.xlu0 %437, %v432
    %v439 = vpop.permute.xlu0 %438
    %442 = vset.pattern.permute.xlu0 0
    %443 = vperm.xlu0 %442, %v433
    %v444 = vpop.permute.xlu0 %443
    %447 = vset.pattern.permute.xlu0 0
    %448 = vperm.xlu0 %447, %v434
    %v449 = vpop.permute.xlu0 %448
    %452 = vset.pattern.permute.xlu0 0
    %453 = vperm.xlu0 %452, %v435
    %v454 = vpop.permute.xlu0 %453
    %v456 = vmul.f32 %v196, %v439
    %v457 = vmul.f32 %v197, %v444
    %v458 = vmul.f32 %v198, %v449
    %v459 = vmul.f32 %v199, %v454
    %v460 = vpack.c.bf16 %v456, %v456
    %v461 = vpack.c.bf16 %v457, %v457
    %v462 = vpack.c.bf16 %v458, %v458
    %v463 = vpack.c.bf16 %v459, %v459
    %464 = vst [vmem:[#allocation2 + $0x24] sm:$0xf] %v460
    %465 = vst [vmem:[#allocation2 + $0x58] sm:$0xf] %v461
    %466 = vst [vmem:[#allocation2 + $0x8c] sm:$0xf] %v462
    %467 = vst [vmem:[#allocation2 + $0xc0] sm:$0xf] %v463
    %v468 = vmul.f32 %v200, %v205
    %v469 = vmul.f32 %v201, %v207
    %v470 = vmul.f32 %v202, %v209
    %v471 = vmul.f32 %v203, %v211
    %473 = vset.pattern.permute.xlu0 0
    %474 = vperm.xlu0 %473, %v468
    %v475 = vpop.permute.xlu0 %474
    %478 = vset.pattern.permute.xlu0 0
    %479 = vperm.xlu0 %478, %v469
    %v480 = vpop.permute.xlu0 %479
    %483 = vset.pattern.permute.xlu0 0
    %484 = vperm.xlu0 %483, %v470
    %v485 = vpop.permute.xlu0 %484
    %488 = vset.pattern.permute.xlu0 0
    %489 = vperm.xlu0 %488, %v471
    %v490 = vpop.permute.xlu0 %489
    %v492 = vmul.f32 %v196, %v475
    %v493 = vmul.f32 %v197, %v480
    %v494 = vmul.f32 %v198, %v485
    %v495 = vmul.f32 %v199, %v490
    %v496 = vpack.c.bf16 %v492, %v492
    %v497 = vpack.c.bf16 %v493, %v493
    %v498 = vpack.c.bf16 %v494, %v494
    %v499 = vpack.c.bf16 %v495, %v495
    %500 = vst [vmem:[#allocation2 + $0x28] sm:$0xf] %v496
    %501 = vst [vmem:[#allocation2 + $0x5c] sm:$0xf] %v497
    %502 = vst [vmem:[#allocation2 + $0x90] sm:$0xf] %v498
    %503 = vst [vmem:[#allocation2 + $0xc4] sm:$0xf] %v499
    %504 = vrot.lane.b32.xlu0 %v200, 127
    %v505 = vpop.permute.xlu0 %504
    %506 = vrot.lane.b32.xlu0 %v201, 127
    %v507 = vpop.permute.xlu0 %506
    %508 = vrot.lane.b32.xlu0 %v202, 127
    %v509 = vpop.permute.xlu0 %508
    %510 = vrot.lane.b32.xlu0 %v203, 127
    %v511 = vpop.permute.xlu0 %510
    %v516 = vmul.f32 %v57, %v505
    %v517 = vmul.f32 %v58, %v507
    %v518 = vmul.f32 %v59, %v509
    %v519 = vmul.f32 %v60, %v511
    %521 = vset.pattern.permute.xlu0 0
    %522 = vperm.xlu0 %521, %v516
    %v523 = vpop.permute.xlu0 %522
    %526 = vset.pattern.permute.xlu0 0
    %527 = vperm.xlu0 %526, %v517
    %v528 = vpop.permute.xlu0 %527
    %531 = vset.pattern.permute.xlu0 0
    %532 = vperm.xlu0 %531, %v518
    %v533 = vpop.permute.xlu0 %532
    %536 = vset.pattern.permute.xlu0 0
    %537 = vperm.xlu0 %536, %v519
    %v538 = vpop.permute.xlu0 %537
    %v540 = vmul.f32 %v196, %v523
    %v541 = vmul.f32 %v197, %v528
    %v542 = vmul.f32 %v198, %v533
    %v543 = vmul.f32 %v199, %v538
    %v544 = vpack.c.bf16 %v540, %v540
    %v545 = vpack.c.bf16 %v541, %v541
    %v546 = vpack.c.bf16 %v542, %v542
    %v547 = vpack.c.bf16 %v543, %v543
    %548 = vst [vmem:[#allocation2 + $0x2c] sm:$0xf] %v544
    %549 = vst [vmem:[#allocation2 + $0x60] sm:$0xf] %v545
    %550 = vst [vmem:[#allocation2 + $0x94] sm:$0xf] %v546
    %551 = vst [vmem:[#allocation2 + $0xc8] sm:$0xf] %v547
    %552 = vset.pattern.permute.xlu0 1
    %553 = vperm.xlu0 %552, %v432
    %v554 = vpop.permute.xlu0 %553
    %556 = vset.pattern.permute.xlu0 1
    %557 = vperm.xlu0 %556, %v433
    %v558 = vpop.permute.xlu0 %557
    %560 = vset.pattern.permute.xlu0 1
    %561 = vperm.xlu0 %560, %v434
    %v562 = vpop.permute.xlu0 %561
    %564 = vset.pattern.permute.xlu0 1
    %565 = vperm.xlu0 %564, %v435
    %v566 = vpop.permute.xlu0 %565
    %v568 = vmul.f32 %v196, %v554
    %v569 = vmul.f32 %v197, %v558
    %v570 = vmul.f32 %v198, %v562
    %v571 = vmul.f32 %v199, %v566
    %v572 = vpack.c.bf16 %v568, %v568
    %v573 = vpack.c.bf16 %v569, %v569
    %v574 = vpack.c.bf16 %v570, %v570
    %v575 = vpack.c.bf16 %v571, %v571
    %576 = vst [vmem:[#allocation2 + $0x30] sm:$0xf] %v572
    %577 = vst [vmem:[#allocation2 + $0x64] sm:$0xf] %v573
    %578 = vst [vmem:[#allocation2 + $0x98] sm:$0xf] %v574
    %579 = vst [vmem:[#allocation2 + $0xcc] sm:$0xf] %v575
    %v580 = vld [vmem:[%s3] sm:$0xf]
    %v581 = vld [vmem:[%s3 + $0x4] sm:$0xf]
    %v582 = vld [vmem:[%s3 + $0x8] sm:$0xf]
    %v583 = vld [vmem:[%s3 + $0xc] sm:$0xf]
    %v584 = vld [vmem:[#allocation2] sm:$0xff]
    %v585 = vld [vmem:[#allocation2 + $0x8] sm:$0xff]
    %v586 = vld [vmem:[#allocation2 + $0x10] sm:$0xff]
    %v587 = vld [vmem:[#allocation2 + $0x18] sm:$0xff]
    %v588 = vld [vmem:[#allocation2 + $0x20] sm:$0xff]
    %v589 = vld [vmem:[#allocation2 + $0x28] sm:$0xff]
    %v590 = vld [vmem:[#allocation2 + $0x30] sm:$0xf]
    %v591 = vld [vmem:[#allocation2 + $0x34] sm:$0xff]
    %v592 = vld [vmem:[#allocation2 + $0x3c] sm:$0xff]
    %v593 = vld [vmem:[#allocation2 + $0x44] sm:$0xff]
    %v594 = vld [vmem:[#allocation2 + $0x4c] sm:$0xff]
    %v595 = vld [vmem:[#allocation2 + $0x54] sm:$0xff]
    %v596 = vld [vmem:[#allocation2 + $0x5c] sm:$0xff]
    %v597 = vld [vmem:[#allocation2 + $0x64] sm:$0xf]
    %v598 = vld [vmem:[#allocation2 + $0x68] sm:$0xff]
    %v599 = vld [vmem:[#allocation2 + $0x70] sm:$0xff]
    %v600 = vld [vmem:[#allocation2 + $0x78] sm:$0xff]
    %v601 = vld [vmem:[#allocation2 + $0x80] sm:$0xff]
    %v602 = vld [vmem:[#allocation2 + $0x88] sm:$0xff]
    %v603 = vld [vmem:[#allocation2 + $0x90] sm:$0xff]
    %v604 = vld [vmem:[#allocation2 + $0x98] sm:$0xf]
    %v605 = vld [vmem:[#allocation2 + $0x9c] sm:$0xff]
    %v606 = vld [vmem:[#allocation2 + $0xa4] sm:$0xff]
    %v607 = vld [vmem:[#allocation2 + $0xac] sm:$0xff]
    %v608 = vld [vmem:[#allocation2 + $0xb4] sm:$0xff]
    %v609 = vld [vmem:[#allocation2 + $0xbc] sm:$0xff]
    %v610 = vld [vmem:[#allocation2 + $0xc4] sm:$0xff]
    %v611 = vld [vmem:[#allocation2 + $0xcc] sm:$0xf]
    %v616 = vunpack.c.l.b16 %v580
    %v617 = vunpack.c.l.b16 %v581
    %v618 = vunpack.c.l.b16 %v582
    %v619 = vunpack.c.l.b16 %v583
    %v620 = vpack.c.b16 %v617, %v616
    %v621 = vpack.c.b16 %v619, %v618
    %v650 = vunpack.c.l.b16 %v584
    %v651 = vunpack.c.h.b16 %v584
    %v652 = vunpack.c.l.b16 %v585
    %v653 = vunpack.c.h.b16 %v585
    %v654 = vunpack.c.l.b16 %v586
    %v655 = vunpack.c.h.b16 %v586
    %v656 = vunpack.c.l.b16 %v587
    %v657 = vunpack.c.h.b16 %v587
    %v658 = vunpack.c.l.b16 %v588
    %v659 = vunpack.c.h.b16 %v588
    %v660 = vunpack.c.l.b16 %v589
    %v661 = vunpack.c.h.b16 %v589
    %v662 = vunpack.c.l.b16 %v590
    %v663 = vunpack.c.l.b16 %v591
    %v664 = vunpack.c.h.b16 %v591
    %v665 = vunpack.c.l.b16 %v592
    %v666 = vunpack.c.h.b16 %v592
    %v667 = vunpack.c.l.b16 %v593
    %v668 = vunpack.c.h.b16 %v593
    %v669 = vunpack.c.l.b16 %v594
    %v670 = vunpack.c.h.b16 %v594
    %v671 = vunpack.c.l.b16 %v595
    %v672 = vunpack.c.h.b16 %v595
    %v673 = vunpack.c.l.b16 %v596
    %v674 = vunpack.c.h.b16 %v596
    %v675 = vunpack.c.l.b16 %v597
    %v676 = vunpack.c.l.b16 %v598
    %v677 = vunpack.c.h.b16 %v598
    %v678 = vunpack.c.l.b16 %v599
    %v679 = vunpack.c.h.b16 %v599
    %v680 = vunpack.c.l.b16 %v600
    %v681 = vunpack.c.h.b16 %v600
    %v682 = vunpack.c.l.b16 %v601
    %v683 = vunpack.c.h.b16 %v601
    %v684 = vunpack.c.l.b16 %v602
    %v685 = vunpack.c.h.b16 %v602
    %v686 = vunpack.c.l.b16 %v603
    %v687 = vunpack.c.h.b16 %v603
    %v688 = vunpack.c.l.b16 %v604
    %v689 = vunpack.c.l.b16 %v605
    %v690 = vunpack.c.h.b16 %v605
    %v691 = vunpack.c.l.b16 %v606
    %v692 = vunpack.c.h.b16 %v606
    %v693 = vunpack.c.l.b16 %v607
    %v694 = vunpack.c.h.b16 %v607
    %v695 = vunpack.c.l.b16 %v608
    %v696 = vunpack.c.h.b16 %v608
    %v697 = vunpack.c.l.b16 %v609
    %v698 = vunpack.c.h.b16 %v609
    %v699 = vunpack.c.l.b16 %v610
    %v700 = vunpack.c.h.b16 %v610
    %v701 = vunpack.c.l.b16 %v611
    %v702 = vpack.c.b16 %v663, %v650
    %v703 = vpack.c.b16 %v664, %v651
    %v704 = vpack.c.b16 %v665, %v652
    %v705 = vpack.c.b16 %v666, %v653
    %v706 = vpack.c.b16 %v667, %v654
    %v707 = vpack.c.b16 %v668, %v655
    %v708 = vpack.c.b16 %v669, %v656
    %v709 = vpack.c.b16 %v670, %v657
    %v710 = vpack.c.b16 %v671, %v658
    %v711 = vpack.c.b16 %v672, %v659
    %v712 = vpack.c.b16 %v673, %v660
    %v713 = vpack.c.b16 %v674, %v661
    %v714 = vpack.c.b16 %v675, %v662
    %v715 = vpack.c.b16 %v689, %v676
    %v716 = vpack.c.b16 %v690, %v677
    %v717 = vpack.c.b16 %v691, %v678
    %v718 = vpack.c.b16 %v692, %v679
    %v719 = vpack.c.b16 %v693, %v680
    %v720 = vpack.c.b16 %v694, %v681
    %v721 = vpack.c.b16 %v695, %v682
    %v722 = vpack.c.b16 %v696, %v683
    %v723 = vpack.c.b16 %v697, %v684
    %v724 = vpack.c.b16 %v698, %v685
    %v725 = vpack.c.b16 %v699, %v686
    %v726 = vpack.c.b16 %v700, %v687
    %v727 = vpack.c.b16 %v701, %v688
    %vm754 = vcmask 261120
    %v756 = vsel %vm754, %v620, 0
    %v759 = vsel %vm754, %v621, 0
    %761 = vmatpush.bf16.msra.mxu0 0
    %762 = vmatpush.bf16.msra.mxu0 0
    %763 = vmatpush.bf16.msra.mxu0 0
    %764 = vmatpush.bf16.msra.mxu0 0
    %765 = vmatpush.bf16.msra.mxu0 0
    %766 = vmatpush.bf16.msra.mxu0 0
    %767 = vmatpush.bf16.msra.mxu0 %v715
    %768 = vmatpush.bf16.msra.mxu0 %v702
    %769 = vmatmul.bf16.gmra.mxu0 %v756
    %v770 = vpop.f32.mrf.mxu0
    %v771 = vadd.f32 0.0, %v770
    %v772 = vpop.f32.mrf.mxu0
    %v773 = vadd.f32 0.0, %v772
    %774 = vmatmul.bf16.gmra.mxu0 %v759
    %v775 = vpop.f32.mrf.mxu0
    %v776 = vadd.f32 0.0, %v775
    %v777 = vpop.f32.mrf.mxu0
    %v778 = vadd.f32 0.0, %v777
    %779 = vdwg.mxu0
    %780 = vmatpush.bf16.msra.mxu0 0
    %781 = vmatpush.bf16.msra.mxu0 0
    %782 = vmatpush.bf16.msra.mxu0 0
    %783 = vmatpush.bf16.msra.mxu0 0
    %784 = vmatpush.bf16.msra.mxu0 0
    %785 = vmatpush.bf16.msra.mxu0 0
    %786 = vmatpush.bf16.msra.mxu0 %v716
    %787 = vmatpush.bf16.msra.mxu0 %v703
    %788 = vmatmul.bf16.gmra.mxu0 %v756
    %v789 = vpop.f32.mrf.mxu0
    %v790 = vadd.f32 0.0, %v789
    %v791 = vpop.f32.mrf.mxu0
    %v792 = vadd.f32 0.0, %v791
    %793 = vmatmul.bf16.gmra.mxu0 %v759
    %v794 = vpop.f32.mrf.mxu0
    %v795 = vadd.f32 0.0, %v794
    %v796 = vpop.f32.mrf.mxu0
    %v797 = vadd.f32 0.0, %v796
    %798 = vdwg.mxu0
    %799 = vmatpush.bf16.msra.mxu0 0
    %800 = vmatpush.bf16.msra.mxu0 0
    %801 = vmatpush.bf16.msra.mxu0 0
    %802 = vmatpush.bf16.msra.mxu0 0
    %803 = vmatpush.bf16.msra.mxu0 0
    %804 = vmatpush.bf16.msra.mxu0 0
    %805 = vmatpush.bf16.msra.mxu0 %v717
    %806 = vmatpush.bf16.msra.mxu0 %v704
    %807 = vmatmul.bf16.gmra.mxu0 %v756
    %v808 = vpop.f32.mrf.mxu0
    %v809 = vadd.f32 0.0, %v808
    %v810 = vpop.f32.mrf.mxu0
    %v811 = vadd.f32 0.0, %v810
    %812 = vmatmul.bf16.gmra.mxu0 %v759
    %v813 = vpop.f32.mrf.mxu0
    %v814 = vadd.f32 0.0, %v813
    %v815 = vpop.f32.mrf.mxu0
    %v816 = vadd.f32 0.0, %v815
    %817 = vdwg.mxu0
    %818 = vmatpush.bf16.msra.mxu0 0
    %819 = vmatpush.bf16.msra.mxu0 0
    %820 = vmatpush.bf16.msra.mxu0 0
    %821 = vmatpush.bf16.msra.mxu0 0
    %822 = vmatpush.bf16.msra.mxu0 0
    %823 = vmatpush.bf16.msra.mxu0 0
    %824 = vmatpush.bf16.msra.mxu0 %v718
    %825 = vmatpush.bf16.msra.mxu0 %v705
    %826 = vmatmul.bf16.gmra.mxu0 %v756
    %v827 = vpop.f32.mrf.mxu0
    %v828 = vadd.f32 0.0, %v827
    %v829 = vpop.f32.mrf.mxu0
    %v830 = vadd.f32 0.0, %v829
    %831 = vmatmul.bf16.gmra.mxu0 %v759
    %v832 = vpop.f32.mrf.mxu0
    %v833 = vadd.f32 0.0, %v832
    %v834 = vpop.f32.mrf.mxu0
    %v835 = vadd.f32 0.0, %v834
    %836 = vdwg.mxu0
    %837 = vmatpush.bf16.msra.mxu0 0
    %838 = vmatpush.bf16.msra.mxu0 0
    %839 = vmatpush.bf16.msra.mxu0 0
    %840 = vmatpush.bf16.msra.mxu0 0
    %841 = vmatpush.bf16.msra.mxu0 0
    %842 = vmatpush.bf16.msra.mxu0 0
    %843 = vmatpush.bf16.msra.mxu0 %v719
    %844 = vmatpush.bf16.msra.mxu0 %v706
    %845 = vmatmul.bf16.gmra.mxu0 %v756
    %v846 = vpop.f32.mrf.mxu0
    %v847 = vadd.f32 0.0, %v846
    %v848 = vpop.f32.mrf.mxu0
    %v849 = vadd.f32 0.0, %v848
    %850 = vmatmul.bf16.gmra.mxu0 %v759
    %v851 = vpop.f32.mrf.mxu0
    %v852 = vadd.f32 0.0, %v851
    %v853 = vpop.f32.mrf.mxu0
    %v854 = vadd.f32 0.0, %v853
    %855 = vdwg.mxu0
    %856 = vmatpush.bf16.msra.mxu0 0
    %857 = vmatpush.bf16.msra.mxu0 0
    %858 = vmatpush.bf16.msra.mxu0 0
    %859 = vmatpush.bf16.msra.mxu0 0
    %860 = vmatpush.bf16.msra.mxu0 0
    %861 = vmatpush.bf16.msra.mxu0 0
    %862 = vmatpush.bf16.msra.mxu0 %v720
    %863 = vmatpush.bf16.msra.mxu0 %v707
    %864 = vmatmul.bf16.gmra.mxu0 %v756
    %v865 = vpop.f32.mrf.mxu0
    %v866 = vadd.f32 0.0, %v865
    %v867 = vpop.f32.mrf.mxu0
    %v868 = vadd.f32 0.0, %v867
    %869 = vmatmul.bf16.gmra.mxu0 %v759
    %v870 = vpop.f32.mrf.mxu0
    %v871 = vadd.f32 0.0, %v870
    %v872 = vpop.f32.mrf.mxu0
    %v873 = vadd.f32 0.0, %v872
    %874 = vdwg.mxu0
    %875 = vmatpush.bf16.msra.mxu0 0
    %876 = vmatpush.bf16.msra.mxu0 0
    %877 = vmatpush.bf16.msra.mxu0 0
    %878 = vmatpush.bf16.msra.mxu0 0
    %879 = vmatpush.bf16.msra.mxu0 0
    %880 = vmatpush.bf16.msra.mxu0 0
    %881 = vmatpush.bf16.msra.mxu0 %v721
    %882 = vmatpush.bf16.msra.mxu0 %v708
    %883 = vmatmul.bf16.gmra.mxu0 %v756
    %v884 = vpop.f32.mrf.mxu0
    %v885 = vadd.f32 0.0, %v884
    %v886 = vpop.f32.mrf.mxu0
    %v887 = vadd.f32 0.0, %v886
    %888 = vmatmul.bf16.gmra.mxu0 %v759
    %v889 = vpop.f32.mrf.mxu0
    %v890 = vadd.f32 0.0, %v889
    %v891 = vpop.f32.mrf.mxu0
    %v892 = vadd.f32 0.0, %v891
    %893 = vdwg.mxu0
    %894 = vmatpush.bf16.msra.mxu0 0
    %895 = vmatpush.bf16.msra.mxu0 0
    %896 = vmatpush.bf16.msra.mxu0 0
    %897 = vmatpush.bf16.msra.mxu0 0
    %898 = vmatpush.bf16.msra.mxu0 0
    %899 = vmatpush.bf16.msra.mxu0 0
    %900 = vmatpush.bf16.msra.mxu0 %v722
    %901 = vmatpush.bf16.msra.mxu0 %v709
    %902 = vmatmul.bf16.gmra.mxu0 %v756
    %v903 = vpop.f32.mrf.mxu0
    %v904 = vadd.f32 0.0, %v903
    %v905 = vpop.f32.mrf.mxu0
    %v906 = vadd.f32 0.0, %v905
    %907 = vmatmul.bf16.gmra.mxu0 %v759
    %v908 = vpop.f32.mrf.mxu0
    %v909 = vadd.f32 0.0, %v908
    %v910 = vpop.f32.mrf.mxu0
    %v911 = vadd.f32 0.0, %v910
    %912 = vdwg.mxu0
    %913 = vmatpush.bf16.msra.mxu0 0
    %914 = vmatpush.bf16.msra.mxu0 0
    %915 = vmatpush.bf16.msra.mxu0 0
    %916 = vmatpush.bf16.msra.mxu0 0
    %917 = vmatpush.bf16.msra.mxu0 0
    %918 = vmatpush.bf16.msra.mxu0 0
    %919 = vmatpush.bf16.msra.mxu0 %v723
    %920 = vmatpush.bf16.msra.mxu0 %v710
    %921 = vmatmul.bf16.gmra.mxu0 %v756
    %v922 = vpop.f32.mrf.mxu0
    %v923 = vadd.f32 0.0, %v922
    %v924 = vpop.f32.mrf.mxu0
    %v925 = vadd.f32 0.0, %v924
    %926 = vmatmul.bf16.gmra.mxu0 %v759
    %v927 = vpop.f32.mrf.mxu0
    %v928 = vadd.f32 0.0, %v927
    %v929 = vpop.f32.mrf.mxu0
    %v930 = vadd.f32 0.0, %v929
    %931 = vdwg.mxu0
    %932 = vmatpush.bf16.msra.mxu0 0
    %933 = vmatpush.bf16.msra.mxu0 0
    %934 = vmatpush.bf16.msra.mxu0 0
    %935 = vmatpush.bf16.msra.mxu0 0
    %936 = vmatpush.bf16.msra.mxu0 0
    %937 = vmatpush.bf16.msra.mxu0 0
    %938 = vmatpush.bf16.msra.mxu0 %v724
    %939 = vmatpush.bf16.msra.mxu0 %v711
    %940 = vmatmul.bf16.gmra.mxu0 %v756
    %v941 = vpop.f32.mrf.mxu0
    %v942 = vadd.f32 0.0, %v941
    %v943 = vpop.f32.mrf.mxu0
    %v944 = vadd.f32 0.0, %v943
    %945 = vmatmul.bf16.gmra.mxu0 %v759
    %v946 = vpop.f32.mrf.mxu0
    %v947 = vadd.f32 0.0, %v946
    %v948 = vpop.f32.mrf.mxu0
    %v949 = vadd.f32 0.0, %v948
    %950 = vdwg.mxu0
    %951 = vmatpush.bf16.msra.mxu0 0
    %952 = vmatpush.bf16.msra.mxu0 0
    %953 = vmatpush.bf16.msra.mxu0 0
    %954 = vmatpush.bf16.msra.mxu0 0
    %955 = vmatpush.bf16.msra.mxu0 0
    %956 = vmatpush.bf16.msra.mxu0 0
    %957 = vmatpush.bf16.msra.mxu0 %v725
    %958 = vmatpush.bf16.msra.mxu0 %v712
    %959 = vmatmul.bf16.gmra.mxu0 %v756
    %v960 = vpop.f32.mrf.mxu0
    %v961 = vadd.f32 0.0, %v960
    %v962 = vpop.f32.mrf.mxu0
    %v963 = vadd.f32 0.0, %v962
    %964 = vmatmul.bf16.gmra.mxu0 %v759
    %v965 = vpop.f32.mrf.mxu0
    %v966 = vadd.f32 0.0, %v965
    %v967 = vpop.f32.mrf.mxu0
    %v968 = vadd.f32 0.0, %v967
    %969 = vdwg.mxu0
    %970 = vmatpush.bf16.msra.mxu0 0
    %971 = vmatpush.bf16.msra.mxu0 0
    %972 = vmatpush.bf16.msra.mxu0 0
    %973 = vmatpush.bf16.msra.mxu0 0
    %974 = vmatpush.bf16.msra.mxu0 0
    %975 = vmatpush.bf16.msra.mxu0 0
    %976 = vmatpush.bf16.msra.mxu0 %v726
    %977 = vmatpush.bf16.msra.mxu0 %v713
    %978 = vmatmul.bf16.gmra.mxu0 %v756
    %v979 = vpop.f32.mrf.mxu0
    %v980 = vadd.f32 0.0, %v979
    %v981 = vpop.f32.mrf.mxu0
    %v982 = vadd.f32 0.0, %v981
    %983 = vmatmul.bf16.gmra.mxu0 %v759
    %v984 = vpop.f32.mrf.mxu0
    %v985 = vadd.f32 0.0, %v984
    %v986 = vpop.f32.mrf.mxu0
    %v987 = vadd.f32 0.0, %v986
    %988 = vdwg.mxu0
    %989 = vmatpush.bf16.msra.mxu0 0
    %990 = vmatpush.bf16.msra.mxu0 0
    %991 = vmatpush.bf16.msra.mxu0 0
    %992 = vmatpush.bf16.msra.mxu0 0
    %993 = vmatpush.bf16.msra.mxu0 0
    %994 = vmatpush.bf16.msra.mxu0 0
    %995 = vmatpush.bf16.msra.mxu0 %v727
    %996 = vmatpush.bf16.msra.mxu0 %v714
    %997 = vmatmul.bf16.gmra.mxu0 %v756
    %v998 = vpop.f32.mrf.mxu0
    %v999 = vadd.f32 0.0, %v998
    %v1000 = vpop.f32.mrf.mxu0
    %v1001 = vadd.f32 0.0, %v1000
    %1002 = vmatmul.bf16.gmra.mxu0 %v759
    %v1003 = vpop.f32.mrf.mxu0
    %v1004 = vadd.f32 0.0, %v1003
    %v1005 = vpop.f32.mrf.mxu0
    %v1006 = vadd.f32 0.0, %v1005
    %1007 = vdwg.mxu0
    %v1008 = vld [vmem:[%s4] sm:$0xff]
    %v1009 = vld [vmem:[%s4 + $0x8] sm:$0xff]
    %v1010 = vld [vmem:[%s4 + $0x10] sm:$0xff]
    %v1011 = vld [vmem:[%s4 + $0x18] sm:$0xff]
    %1013 = vset.pattern.permute.xlu0 0
    %1014 = vperm.xlu0 %1013, %v1008
    %v1015 = vpop.permute.xlu0 %1014
    %1018 = vset.pattern.permute.xlu0 0
    %1019 = vperm.xlu0 %1018, %v1009
    %v1020 = vpop.permute.xlu0 %1019
    %1023 = vset.pattern.permute.xlu0 0
    %1024 = vperm.xlu0 %1023, %v1010
    %v1025 = vpop.permute.xlu0 %1024
    %1028 = vset.pattern.permute.xlu0 0
    %1029 = vperm.xlu0 %1028, %v1011
    %v1030 = vpop.permute.xlu0 %1029
    %v1032 = vadd.f32 %v771, %v1015
    %v1033 = vadd.f32 %v773, %v1020
    %v1034 = vadd.f32 %v776, %v1025
    %v1035 = vadd.f32 %v778, %v1030
    %v1036 = vtanh.pop %v1032
    %v1037 = vtanh.pop %v1033
    %v1038 = vtanh.pop %v1034
    %v1039 = vtanh.pop %v1035
    %v1040 = vmul.f32 %v1036, %v1036
    %v1041 = vmul.f32 %v1037, %v1037
    %v1042 = vmul.f32 %v1038, %v1038
    %v1043 = vmul.f32 %v1039, %v1039
    %v1044 = vsub.f32 1.0, %v1040
    %v1045 = vsub.f32 1.0, %v1041
    %v1046 = vsub.f32 1.0, %v1042
    %v1047 = vsub.f32 1.0, %v1043
    %v1048 = vmul.f32 %v1036, -2.0
    %v1049 = vmul.f32 %v1037, -2.0
    %v1050 = vmul.f32 %v1038, -2.0
    %v1051 = vmul.f32 %v1039, -2.0
    %v1052 = vmul.f32 %v1048, %v1044
    %v1053 = vmul.f32 %v1049, %v1045
    %v1054 = vmul.f32 %v1050, %v1046
    %v1055 = vmul.f32 %v1051, %v1047
    %v1056 = vmul.f32 %v1044, 2.0
    %v1057 = vmul.f32 %v1045, 2.0
    %v1058 = vmul.f32 %v1046, 2.0
    %v1059 = vmul.f32 %v1047, 2.0
    %v1060 = vmul.f32 %v1040, 3.0
    %v1061 = vmul.f32 %v1041, 3.0
    %v1062 = vmul.f32 %v1042, 3.0
    %v1063 = vmul.f32 %v1043, 3.0
    %v1064 = vsub.f32 %v1060, 1.0
    %v1065 = vsub.f32 %v1061, 1.0
    %v1066 = vsub.f32 %v1062, 1.0
    %v1067 = vsub.f32 %v1063, 1.0
    %v1068 = vmul.f32 %v1056, %v1064
    %v1069 = vmul.f32 %v1057, %v1065
    %v1070 = vmul.f32 %v1058, %v1066
    %v1071 = vmul.f32 %v1059, %v1067
    %v1072 = vmul.f32 %v790, %v790
    %v1073 = vmul.f32 %v792, %v792
    %v1074 = vmul.f32 %v795, %v795
    %v1075 = vmul.f32 %v797, %v797
    %v1076 = vmul.f32 %v809, %v809
    %v1077 = vmul.f32 %v811, %v811
    %v1078 = vmul.f32 %v814, %v814
    %v1079 = vmul.f32 %v816, %v816
    %v1080 = vmul.f32 %v1052, %v790
    %v1081 = vmul.f32 %v1053, %v792
    %v1082 = vmul.f32 %v1054, %v795
    %v1083 = vmul.f32 %v1055, %v797
    %v1084 = vmul.f32 %v1052, %v809
    %v1085 = vmul.f32 %v1053, %v811
    %v1086 = vmul.f32 %v1054, %v814
    %v1087 = vmul.f32 %v1055, %v816
    %v1088 = vmul.f32 %v1068, %v1072
    %v1089 = vmul.f32 %v1069, %v1073
    %v1090 = vmul.f32 %v1070, %v1074
    %v1091 = vmul.f32 %v1071, %v1075
    %v1092 = vmul.f32 %v1068, %v1076
    %v1093 = vmul.f32 %v1069, %v1077
    %v1094 = vmul.f32 %v1070, %v1078
    %v1095 = vmul.f32 %v1071, %v1079
    %v1096 = vpack.c.bf16 %v1036, %v1036
    %v1097 = vpack.c.bf16 %v1037, %v1037
    %v1098 = vpack.c.bf16 %v1038, %v1038
    %v1099 = vpack.c.bf16 %v1039, %v1039
    %1100 = vst [vmem:[#allocation2] sm:$0xf] %v1096
    %1101 = vst [vmem:[#allocation2 + $0x34] sm:$0xf] %v1097
    %1102 = vst [vmem:[#allocation2 + $0x68] sm:$0xf] %v1098
    %1103 = vst [vmem:[#allocation2 + $0x9c] sm:$0xf] %v1099
    %v1104 = vmul.f32 %v1044, %v790
    %v1105 = vmul.f32 %v1045, %v792
    %v1106 = vmul.f32 %v1046, %v795
    %v1107 = vmul.f32 %v1047, %v797
    %v1108 = vpack.c.bf16 %v1104, %v1104
    %v1109 = vpack.c.bf16 %v1105, %v1105
    %v1110 = vpack.c.bf16 %v1106, %v1106
    %v1111 = vpack.c.bf16 %v1107, %v1107
    %1112 = vst [vmem:[#allocation2 + $0x4] sm:$0xf] %v1108
    %1113 = vst [vmem:[#allocation2 + $0x38] sm:$0xf] %v1109
    %1114 = vst [vmem:[#allocation2 + $0x6c] sm:$0xf] %v1110
    %1115 = vst [vmem:[#allocation2 + $0xa0] sm:$0xf] %v1111
    %v1116 = vmul.f32 %v1044, %v809
    %v1117 = vmul.f32 %v1045, %v811
    %v1118 = vmul.f32 %v1046, %v814
    %v1119 = vmul.f32 %v1047, %v816
    %v1120 = vpack.c.bf16 %v1116, %v1116
    %v1121 = vpack.c.bf16 %v1117, %v1117
    %v1122 = vpack.c.bf16 %v1118, %v1118
    %v1123 = vpack.c.bf16 %v1119, %v1119
    %1124 = vst [vmem:[#allocation2 + $0x8] sm:$0xf] %v1120
    %1125 = vst [vmem:[#allocation2 + $0x3c] sm:$0xf] %v1121
    %1126 = vst [vmem:[#allocation2 + $0x70] sm:$0xf] %v1122
    %1127 = vst [vmem:[#allocation2 + $0xa4] sm:$0xf] %v1123
    %v1128 = vmul.f32 %v1044, %v828
    %v1129 = vmul.f32 %v1045, %v830
    %v1130 = vmul.f32 %v1046, %v833
    %v1131 = vmul.f32 %v1047, %v835
    %v1132 = vpack.c.bf16 %v1128, %v1128
    %v1133 = vpack.c.bf16 %v1129, %v1129
    %v1134 = vpack.c.bf16 %v1130, %v1130
    %v1135 = vpack.c.bf16 %v1131, %v1131
    %1136 = vst [vmem:[#allocation2 + $0xc] sm:$0xf] %v1132
    %1137 = vst [vmem:[#allocation2 + $0x40] sm:$0xf] %v1133
    %1138 = vst [vmem:[#allocation2 + $0x74] sm:$0xf] %v1134
    %1139 = vst [vmem:[#allocation2 + $0xa8] sm:$0xf] %v1135
    %v1140 = vmul.f32 %v1052, %v1072
    %v1141 = vmul.f32 %v1053, %v1073
    %v1142 = vmul.f32 %v1054, %v1074
    %v1143 = vmul.f32 %v1055, %v1075
    %v1144 = vmul.f32 %v1044, %v847
    %v1145 = vmul.f32 %v1045, %v849
    %v1146 = vmul.f32 %v1046, %v852
    %v1147 = vmul.f32 %v1047, %v854
    %v1148 = vadd.f32 %v1140, %v1144
    %v1149 = vadd.f32 %v1141, %v1145
    %v1150 = vadd.f32 %v1142, %v1146
    %v1151 = vadd.f32 %v1143, %v1147
    %v1152 = vpack.c.bf16 %v1148, %v1148
    %v1153 = vpack.c.bf16 %v1149, %v1149
    %v1154 = vpack.c.bf16 %v1150, %v1150
    %v1155 = vpack.c.bf16 %v1151, %v1151
    %1156 = vst [vmem:[#allocation2 + $0x10] sm:$0xf] %v1152
    %1157 = vst [vmem:[#allocation2 + $0x44] sm:$0xf] %v1153
    %1158 = vst [vmem:[#allocation2 + $0x78] sm:$0xf] %v1154
    %1159 = vst [vmem:[#allocation2 + $0xac] sm:$0xf] %v1155
    %v1160 = vmul.f32 %v1080, %v809
    %v1161 = vmul.f32 %v1081, %v811
    %v1162 = vmul.f32 %v1082, %v814
    %v1163 = vmul.f32 %v1083, %v816
    %v1164 = vmul.f32 %v1044, %v866
    %v1165 = vmul.f32 %v1045, %v868
    %v1166 = vmul.f32 %v1046, %v871
    %v1167 = vmul.f32 %v1047, %v873
    %v1168 = vadd.f32 %v1160, %v1164
    %v1169 = vadd.f32 %v1161, %v1165
    %v1170 = vadd.f32 %v1162, %v1166
    %v1171 = vadd.f32 %v1163, %v1167
    %v1172 = vpack.c.bf16 %v1168, %v1168
    %v1173 = vpack.c.bf16 %v1169, %v1169
    %v1174 = vpack.c.bf16 %v1170, %v1170
    %v1175 = vpack.c.bf16 %v1171, %v1171
    %1176 = vst [vmem:[#allocation2 + $0x14] sm:$0xf] %v1172
    %1177 = vst [vmem:[#allocation2 + $0x48] sm:$0xf] %v1173
    %1178 = vst [vmem:[#allocation2 + $0x7c] sm:$0xf] %v1174
    %1179 = vst [vmem:[#allocation2 + $0xb0] sm:$0xf] %v1175
    %v1180 = vmul.f32 %v1080, %v828
    %v1181 = vmul.f32 %v1081, %v830
    %v1182 = vmul.f32 %v1082, %v833
    %v1183 = vmul.f32 %v1083, %v835
    %v1184 = vmul.f32 %v1044, %v885
    %v1185 = vmul.f32 %v1045, %v887
    %v1186 = vmul.f32 %v1046, %v890
    %v1187 = vmul.f32 %v1047, %v892
    %v1188 = vadd.f32 %v1180, %v1184
    %v1189 = vadd.f32 %v1181, %v1185
    %v1190 = vadd.f32 %v1182, %v1186
    %v1191 = vadd.f32 %v1183, %v1187
    %v1192 = vpack.c.bf16 %v1188, %v1188
    %v1193 = vpack.c.bf16 %v1189, %v1189
    %v1194 = vpack.c.bf16 %v1190, %v1190
    %v1195 = vpack.c.bf16 %v1191, %v1191
    %1196 = vst [vmem:[#allocation2 + $0x18] sm:$0xf] %v1192
    %1197 = vst [vmem:[#allocation2 + $0x4c] sm:$0xf] %v1193
    %1198 = vst [vmem:[#allocation2 + $0x80] sm:$0xf] %v1194
    %1199 = vst [vmem:[#allocation2 + $0xb4] sm:$0xf] %v1195
    %v1200 = vmul.f32 %v1052, %v1076
    %v1201 = vmul.f32 %v1053, %v1077
    %v1202 = vmul.f32 %v1054, %v1078
    %v1203 = vmul.f32 %v1055, %v1079
    %v1204 = vmul.f32 %v1044, %v904
    %v1205 = vmul.f32 %v1045, %v906
    %v1206 = vmul.f32 %v1046, %v909
    %v1207 = vmul.f32 %v1047, %v911
    %v1208 = vadd.f32 %v1200, %v1204
    %v1209 = vadd.f32 %v1201, %v1205
    %v1210 = vadd.f32 %v1202, %v1206
    %v1211 = vadd.f32 %v1203, %v1207
    %v1212 = vpack.c.bf16 %v1208, %v1208
    %v1213 = vpack.c.bf16 %v1209, %v1209
    %v1214 = vpack.c.bf16 %v1210, %v1210
    %v1215 = vpack.c.bf16 %v1211, %v1211
    %1216 = vst [vmem:[#allocation2 + $0x1c] sm:$0xf] %v1212
    %1217 = vst [vmem:[#allocation2 + $0x50] sm:$0xf] %v1213
    %1218 = vst [vmem:[#allocation2 + $0x84] sm:$0xf] %v1214
    %1219 = vst [vmem:[#allocation2 + $0xb8] sm:$0xf] %v1215
    %v1220 = vmul.f32 %v1084, %v828
    %v1221 = vmul.f32 %v1085, %v830
    %v1222 = vmul.f32 %v1086, %v833
    %v1223 = vmul.f32 %v1087, %v835
    %v1224 = vmul.f32 %v1044, %v923
    %v1225 = vmul.f32 %v1045, %v925
    %v1226 = vmul.f32 %v1046, %v928
    %v1227 = vmul.f32 %v1047, %v930
    %v1228 = vadd.f32 %v1220, %v1224
    %v1229 = vadd.f32 %v1221, %v1225
    %v1230 = vadd.f32 %v1222, %v1226
    %v1231 = vadd.f32 %v1223, %v1227
    %v1232 = vpack.c.bf16 %v1228, %v1228
    %v1233 = vpack.c.bf16 %v1229, %v1229
    %v1234 = vpack.c.bf16 %v1230, %v1230
    %v1235 = vpack.c.bf16 %v1231, %v1231
    %1236 = vst [vmem:[#allocation2 + $0x20] sm:$0xf] %v1232
    %1237 = vst [vmem:[#allocation2 + $0x54] sm:$0xf] %v1233
    %1238 = vst [vmem:[#allocation2 + $0x88] sm:$0xf] %v1234
    %1239 = vst [vmem:[#allocation2 + $0xbc] sm:$0xf] %v1235
    %v1240 = vmul.f32 %v1088, %v790
    %v1241 = vmul.f32 %v1089, %v792
    %v1242 = vmul.f32 %v1090, %v795
    %v1243 = vmul.f32 %v1091, %v797
    %v1244 = vmul.f32 %v1080, %v847
    %v1245 = vmul.f32 %v1081, %v849
    %v1246 = vmul.f32 %v1082, %v852
    %v1247 = vmul.f32 %v1083, %v854
    %v1248 = vmul.f32 %v1244, 3.0
    %v1249 = vmul.f32 %v1245, 3.0
    %v1250 = vmul.f32 %v1246, 3.0
    %v1251 = vmul.f32 %v1247, 3.0
    %v1252 = vadd.f32 %v1240, %v1248
    %v1253 = vadd.f32 %v1241, %v1249
    %v1254 = vadd.f32 %v1242, %v1250
    %v1255 = vadd.f32 %v1243, %v1251
    %v1256 = vmul.f32 %v1044, %v942
    %v1257 = vmul.f32 %v1045, %v944
    %v1258 = vmul.f32 %v1046, %v947
    %v1259 = vmul.f32 %v1047, %v949
    %v1260 = vadd.f32 %v1252, %v1256
    %v1261 = vadd.f32 %v1253, %v1257
    %v1262 = vadd.f32 %v1254, %v1258
    %v1263 = vadd.f32 %v1255, %v1259
    %v1264 = vpack.c.bf16 %v1260, %v1260
    %v1265 = vpack.c.bf16 %v1261, %v1261
    %v1266 = vpack.c.bf16 %v1262, %v1262
    %v1267 = vpack.c.bf16 %v1263, %v1263
    %1268 = vst [vmem:[#allocation2 + $0x24] sm:$0xf] %v1264
    %1269 = vst [vmem:[#allocation2 + $0x58] sm:$0xf] %v1265
    %1270 = vst [vmem:[#allocation2 + $0x8c] sm:$0xf] %v1266
    %1271 = vst [vmem:[#allocation2 + $0xc0] sm:$0xf] %v1267
    %v1272 = vmul.f32 %v1088, %v809
    %v1273 = vmul.f32 %v1089, %v811
    %v1274 = vmul.f32 %v1090, %v814
    %v1275 = vmul.f32 %v1091, %v816
    %v1276 = vmul.f32 %v847, %v809
    %v1277 = vmul.f32 %v849, %v811
    %v1278 = vmul.f32 %v852, %v814
    %v1279 = vmul.f32 %v854, %v816
    %v1280 = vmul.f32 %v1052, %v1276
    %v1281 = vmul.f32 %v1053, %v1277
    %v1282 = vmul.f32 %v1054, %v1278
    %v1283 = vmul.f32 %v1055, %v1279
    %v1284 = vadd.f32 %v1272, %v1280
    %v1285 = vadd.f32 %v1273, %v1281
    %v1286 = vadd.f32 %v1274, %v1282
    %v1287 = vadd.f32 %v1275, %v1283
    %v1288 = vmul.f32 %v1080, %v866
    %v1289 = vmul.f32 %v1081, %v868
    %v1290 = vmul.f32 %v1082, %v871
    %v1291 = vmul.f32 %v1083, %v873
    %v1292 = vmul.f32 %v1288, 2.0
    %v1293 = vmul.f32 %v1289, 2.0
    %v1294 = vmul.f32 %v1290, 2.0
    %v1295 = vmul.f32 %v1291, 2.0
    %v1296 = vadd.f32 %v1284, %v1292
    %v1297 = vadd.f32 %v1285, %v1293
    %v1298 = vadd.f32 %v1286, %v1294
    %v1299 = vadd.f32 %v1287, %v1295
    %v1300 = vmul.f32 %v1044, %v961
    %v1301 = vmul.f32 %v1045, %v963
    %v1302 = vmul.f32 %v1046, %v966
    %v1303 = vmul.f32 %v1047, %v968
    %v1304 = vadd.f32 %v1296, %v1300
    %v1305 = vadd.f32 %v1297, %v1301
    %v1306 = vadd.f32 %v1298, %v1302
    %v1307 = vadd.f32 %v1299, %v1303
    %v1308 = vpack.c.bf16 %v1304, %v1304
    %v1309 = vpack.c.bf16 %v1305, %v1305
    %v1310 = vpack.c.bf16 %v1306, %v1306
    %v1311 = vpack.c.bf16 %v1307, %v1307
    %1312 = vst [vmem:[#allocation2 + $0x28] sm:$0xf] %v1308
    %1313 = vst [vmem:[#allocation2 + $0x5c] sm:$0xf] %v1309
    %1314 = vst [vmem:[#allocation2 + $0x90] sm:$0xf] %v1310
    %1315 = vst [vmem:[#allocation2 + $0xc4] sm:$0xf] %v1311
    %v1316 = vmul.f32 %v1092, %v790
    %v1317 = vmul.f32 %v1093, %v792
    %v1318 = vmul.f32 %v1094, %v795
    %v1319 = vmul.f32 %v1095, %v797
    %v1320 = vmul.f32 %v904, %v790
    %v1321 = vmul.f32 %v906, %v792
    %v1322 = vmul.f32 %v909, %v795
    %v1323 = vmul.f32 %v911, %v797
    %v1324 = vmul.f32 %v1052, %v1320
    %v1325 = vmul.f32 %v1053, %v1321
    %v1326 = vmul.f32 %v1054, %v1322
    %v1327 = vmul.f32 %v1055, %v1323
    %v1328 = vadd.f32 %v1316, %v1324
    %v1329 = vadd.f32 %v1317, %v1325
    %v1330 = vadd.f32 %v1318, %v1326
    %v1331 = vadd.f32 %v1319, %v1327
    %v1332 = vmul.f32 %v1084, %v866
    %v1333 = vmul.f32 %v1085, %v868
    %v1334 = vmul.f32 %v1086, %v871
    %v1335 = vmul.f32 %v1087, %v873
    %v1336 = vmul.f32 %v1332, 2.0
    %v1337 = vmul.f32 %v1333, 2.0
    %v1338 = vmul.f32 %v1334, 2.0
    %v1339 = vmul.f32 %v1335, 2.0
    %v1340 = vadd.f32 %v1328, %v1336
    %v1341 = vadd.f32 %v1329, %v1337
    %v1342 = vadd.f32 %v1330, %v1338
    %v1343 = vadd.f32 %v1331, %v1339
    %v1344 = vmul.f32 %v1044, %v980
    %v1345 = vmul.f32 %v1045, %v982
    %v1346 = vmul.f32 %v1046, %v985
    %v1347 = vmul.f32 %v1047, %v987
    %v1348 = vadd.f32 %v1340, %v1344
    %v1349 = vadd.f32 %v1341, %v1345
    %v1350 = vadd.f32 %v1342, %v1346
    %v1351 = vadd.f32 %v1343, %v1347
    %v1352 = vpack.c.bf16 %v1348, %v1348
    %v1353 = vpack.c.bf16 %v1349, %v1349
    %v1354 = vpack.c.bf16 %v1350, %v1350
    %v1355 = vpack.c.bf16 %v1351, %v1351
    %1356 = vst [vmem:[#allocation2 + $0x2c] sm:$0xf] %v1352
    %1357 = vst [vmem:[#allocation2 + $0x60] sm:$0xf] %v1353
    %1358 = vst [vmem:[#allocation2 + $0x94] sm:$0xf] %v1354
    %1359 = vst [vmem:[#allocation2 + $0xc8] sm:$0xf] %v1355
    %v1360 = vmul.f32 %v1092, %v809
    %v1361 = vmul.f32 %v1093, %v811
    %v1362 = vmul.f32 %v1094, %v814
    %v1363 = vmul.f32 %v1095, %v816
    %v1364 = vmul.f32 %v1084, %v904
    %v1365 = vmul.f32 %v1085, %v906
    %v1366 = vmul.f32 %v1086, %v909
    %v1367 = vmul.f32 %v1087, %v911
    %v1368 = vmul.f32 %v1364, 3.0
    %v1369 = vmul.f32 %v1365, 3.0
    %v1370 = vmul.f32 %v1366, 3.0
    %v1371 = vmul.f32 %v1367, 3.0
    %v1372 = vadd.f32 %v1360, %v1368
    %v1373 = vadd.f32 %v1361, %v1369
    %v1374 = vadd.f32 %v1362, %v1370
    %v1375 = vadd.f32 %v1363, %v1371
    %v1376 = vmul.f32 %v1044, %v999
    %v1377 = vmul.f32 %v1045, %v1001
    %v1378 = vmul.f32 %v1046, %v1004
    %v1379 = vmul.f32 %v1047, %v1006
    %v1380 = vadd.f32 %v1372, %v1376
    %v1381 = vadd.f32 %v1373, %v1377
    %v1382 = vadd.f32 %v1374, %v1378
    %v1383 = vadd.f32 %v1375, %v1379
    %v1384 = vpack.c.bf16 %v1380, %v1380
    %v1385 = vpack.c.bf16 %v1381, %v1381
    %v1386 = vpack.c.bf16 %v1382, %v1382
    %v1387 = vpack.c.bf16 %v1383, %v1383
    %1388 = vst [vmem:[#allocation2 + $0x30] sm:$0xf] %v1384
    %1389 = vst [vmem:[#allocation2 + $0x64] sm:$0xf] %v1385
    %1390 = vst [vmem:[#allocation2 + $0x98] sm:$0xf] %v1386
    %1391 = vst [vmem:[#allocation2 + $0xcc] sm:$0xf] %v1387
    %v1392 = vld [vmem:[%s5] sm:$0xf]
    %v1393 = vld [vmem:[%s5 + $0x4] sm:$0xf]
    %v1394 = vld [vmem:[%s5 + $0x8] sm:$0xf]
    %v1395 = vld [vmem:[%s5 + $0xc] sm:$0xf]
    %v1396 = vld [vmem:[#allocation2] sm:$0xff]
    %v1397 = vld [vmem:[#allocation2 + $0x8] sm:$0xff]
    %v1398 = vld [vmem:[#allocation2 + $0x10] sm:$0xff]
    %v1399 = vld [vmem:[#allocation2 + $0x18] sm:$0xff]
    %v1400 = vld [vmem:[#allocation2 + $0x20] sm:$0xff]
    %v1401 = vld [vmem:[#allocation2 + $0x28] sm:$0xff]
    %v1402 = vld [vmem:[#allocation2 + $0x30] sm:$0xf]
    %v1403 = vld [vmem:[#allocation2 + $0x34] sm:$0xff]
    %v1404 = vld [vmem:[#allocation2 + $0x3c] sm:$0xff]
    %v1405 = vld [vmem:[#allocation2 + $0x44] sm:$0xff]
    %v1406 = vld [vmem:[#allocation2 + $0x4c] sm:$0xff]
    %v1407 = vld [vmem:[#allocation2 + $0x54] sm:$0xff]
    %v1408 = vld [vmem:[#allocation2 + $0x5c] sm:$0xff]
    %v1409 = vld [vmem:[#allocation2 + $0x64] sm:$0xf]
    %v1410 = vld [vmem:[#allocation2 + $0x68] sm:$0xff]
    %v1411 = vld [vmem:[#allocation2 + $0x70] sm:$0xff]
    %v1412 = vld [vmem:[#allocation2 + $0x78] sm:$0xff]
    %v1413 = vld [vmem:[#allocation2 + $0x80] sm:$0xff]
    %v1414 = vld [vmem:[#allocation2 + $0x88] sm:$0xff]
    %v1415 = vld [vmem:[#allocation2 + $0x90] sm:$0xff]
    %v1416 = vld [vmem:[#allocation2 + $0x98] sm:$0xf]
    %v1417 = vld [vmem:[#allocation2 + $0x9c] sm:$0xff]
    %v1418 = vld [vmem:[#allocation2 + $0xa4] sm:$0xff]
    %v1419 = vld [vmem:[#allocation2 + $0xac] sm:$0xff]
    %v1420 = vld [vmem:[#allocation2 + $0xb4] sm:$0xff]
    %v1421 = vld [vmem:[#allocation2 + $0xbc] sm:$0xff]
    %v1422 = vld [vmem:[#allocation2 + $0xc4] sm:$0xff]
    %v1423 = vld [vmem:[#allocation2 + $0xcc] sm:$0xf]
    %v1428 = vunpack.c.l.b16 %v1392
    %v1429 = vunpack.c.l.b16 %v1393
    %v1430 = vunpack.c.l.b16 %v1394
    %v1431 = vunpack.c.l.b16 %v1395
    %v1432 = vpack.c.b16 %v1429, %v1428
    %v1433 = vpack.c.b16 %v1431, %v1430
    %v1462 = vunpack.c.l.b16 %v1396
    %v1463 = vunpack.c.h.b16 %v1396
    %v1464 = vunpack.c.l.b16 %v1397
    %v1465 = vunpack.c.h.b16 %v1397
    %v1466 = vunpack.c.l.b16 %v1398
    %v1467 = vunpack.c.h.b16 %v1398
    %v1468 = vunpack.c.l.b16 %v1399
    %v1469 = vunpack.c.h.b16 %v1399
    %v1470 = vunpack.c.l.b16 %v1400
    %v1471 = vunpack.c.h.b16 %v1400
    %v1472 = vunpack.c.l.b16 %v1401
    %v1473 = vunpack.c.h.b16 %v1401
    %v1474 = vunpack.c.l.b16 %v1402
    %v1475 = vunpack.c.l.b16 %v1403
    %v1476 = vunpack.c.h.b16 %v1403
    %v1477 = vunpack.c.l.b16 %v1404
    %v1478 = vunpack.c.h.b16 %v1404
    %v1479 = vunpack.c.l.b16 %v1405
    %v1480 = vunpack.c.h.b16 %v1405
    %v1481 = vunpack.c.l.b16 %v1406
    %v1482 = vunpack.c.h.b16 %v1406
    %v1483 = vunpack.c.l.b16 %v1407
    %v1484 = vunpack.c.h.b16 %v1407
    %v1485 = vunpack.c.l.b16 %v1408
    %v1486 = vunpack.c.h.b16 %v1408
    %v1487 = vunpack.c.l.b16 %v1409
    %v1488 = vunpack.c.l.b16 %v1410
    %v1489 = vunpack.c.h.b16 %v1410
    %v1490 = vunpack.c.l.b16 %v1411
    %v1491 = vunpack.c.h.b16 %v1411
    %v1492 = vunpack.c.l.b16 %v1412
    %v1493 = vunpack.c.h.b16 %v1412
    %v1494 = vunpack.c.l.b16 %v1413
    %v1495 = vunpack.c.h.b16 %v1413
    %v1496 = vunpack.c.l.b16 %v1414
    %v1497 = vunpack.c.h.b16 %v1414
    %v1498 = vunpack.c.l.b16 %v1415
    %v1499 = vunpack.c.h.b16 %v1415
    %v1500 = vunpack.c.l.b16 %v1416
    %v1501 = vunpack.c.l.b16 %v1417
    %v1502 = vunpack.c.h.b16 %v1417
    %v1503 = vunpack.c.l.b16 %v1418
    %v1504 = vunpack.c.h.b16 %v1418
    %v1505 = vunpack.c.l.b16 %v1419
    %v1506 = vunpack.c.h.b16 %v1419
    %v1507 = vunpack.c.l.b16 %v1420
    %v1508 = vunpack.c.h.b16 %v1420
    %v1509 = vunpack.c.l.b16 %v1421
    %v1510 = vunpack.c.h.b16 %v1421
    %v1511 = vunpack.c.l.b16 %v1422
    %v1512 = vunpack.c.h.b16 %v1422
    %v1513 = vunpack.c.l.b16 %v1423
    %v1514 = vpack.c.b16 %v1475, %v1462
    %v1515 = vpack.c.b16 %v1476, %v1463
    %v1516 = vpack.c.b16 %v1477, %v1464
    %v1517 = vpack.c.b16 %v1478, %v1465
    %v1518 = vpack.c.b16 %v1479, %v1466
    %v1519 = vpack.c.b16 %v1480, %v1467
    %v1520 = vpack.c.b16 %v1481, %v1468
    %v1521 = vpack.c.b16 %v1482, %v1469
    %v1522 = vpack.c.b16 %v1483, %v1470
    %v1523 = vpack.c.b16 %v1484, %v1471
    %v1524 = vpack.c.b16 %v1485, %v1472
    %v1525 = vpack.c.b16 %v1486, %v1473
    %v1526 = vpack.c.b16 %v1487, %v1474
    %v1527 = vpack.c.b16 %v1501, %v1488
    %v1528 = vpack.c.b16 %v1502, %v1489
    %v1529 = vpack.c.b16 %v1503, %v1490
    %v1530 = vpack.c.b16 %v1504, %v1491
    %v1531 = vpack.c.b16 %v1505, %v1492
    %v1532 = vpack.c.b16 %v1506, %v1493
    %v1533 = vpack.c.b16 %v1507, %v1494
    %v1534 = vpack.c.b16 %v1508, %v1495
    %v1535 = vpack.c.b16 %v1509, %v1496
    %v1536 = vpack.c.b16 %v1510, %v1497
    %v1537 = vpack.c.b16 %v1511, %v1498
    %v1538 = vpack.c.b16 %v1512, %v1499
    %v1539 = vpack.c.b16 %v1513, %v1500
    %v1567 = vsel %vm754, %v1432, 0
    %v1570 = vsel %vm754, %v1433, 0
    %1572 = vmatpush.bf16.msra.mxu0 0
    %1573 = vmatpush.bf16.msra.mxu0 0
    %1574 = vmatpush.bf16.msra.mxu0 0
    %1575 = vmatpush.bf16.msra.mxu0 0
    %1576 = vmatpush.bf16.msra.mxu0 0
    %1577 = vmatpush.bf16.msra.mxu0 0
    %1578 = vmatpush.bf16.msra.mxu0 %v1527
    %1579 = vmatpush.bf16.msra.mxu0 %v1514
    %1580 = vmatmul.bf16.gmra.mxu0 %v1567
    %v1581 = vpop.f32.mrf.mxu0
    %v1582 = vadd.f32 0.0, %v1581
    %v1583 = vpop.f32.mrf.mxu0
    %v1584 = vadd.f32 0.0, %v1583
    %1585 = vmatmul.bf16.gmra.mxu0 %v1570
    %v1586 = vpop.f32.mrf.mxu0
    %v1587 = vadd.f32 0.0, %v1586
    %v1588 = vpop.f32.mrf.mxu0
    %v1589 = vadd.f32 0.0, %v1588
    %1590 = vdwg.mxu0
    %1591 = vmatpush.bf16.msra.mxu0 0
    %1592 = vmatpush.bf16.msra.mxu0 0
    %1593 = vmatpush.bf16.msra.mxu0 0
    %1594 = vmatpush.bf16.msra.mxu0 0
    %1595 = vmatpush.bf16.msra.mxu0 0
    %1596 = vmatpush.bf16.msra.mxu0 0
    %1597 = vmatpush.bf16.msra.mxu0 %v1528
    %1598 = vmatpush.bf16.msra.mxu0 %v1515
    %1599 = vmatmul.bf16.gmra.mxu0 %v1567
    %v1600 = vpop.f32.mrf.mxu0
    %v1601 = vadd.f32 0.0, %v1600
    %v1602 = vpop.f32.mrf.mxu0
    %v1603 = vadd.f32 0.0, %v1602
    %1604 = vmatmul.bf16.gmra.mxu0 %v1570
    %v1605 = vpop.f32.mrf.mxu0
    %v1606 = vadd.f32 0.0, %v1605
    %v1607 = vpop.f32.mrf.mxu0
    %v1608 = vadd.f32 0.0, %v1607
    %1609 = vdwg.mxu0
    %1610 = vmatpush.bf16.msra.mxu0 0
    %1611 = vmatpush.bf16.msra.mxu0 0
    %1612 = vmatpush.bf16.msra.mxu0 0
    %1613 = vmatpush.bf16.msra.mxu0 0
    %1614 = vmatpush.bf16.msra.mxu0 0
    %1615 = vmatpush.bf16.msra.mxu0 0
    %1616 = vmatpush.bf16.msra.mxu0 %v1529
    %1617 = vmatpush.bf16.msra.mxu0 %v1516
    %1618 = vmatmul.bf16.gmra.mxu0 %v1567
    %v1619 = vpop.f32.mrf.mxu0
    %v1620 = vadd.f32 0.0, %v1619
    %v1621 = vpop.f32.mrf.mxu0
    %v1622 = vadd.f32 0.0, %v1621
    %1623 = vmatmul.bf16.gmra.mxu0 %v1570
    %v1624 = vpop.f32.mrf.mxu0
    %v1625 = vadd.f32 0.0, %v1624
    %v1626 = vpop.f32.mrf.mxu0
    %v1627 = vadd.f32 0.0, %v1626
    %1628 = vdwg.mxu0
    %1629 = vmatpush.bf16.msra.mxu0 0
    %1630 = vmatpush.bf16.msra.mxu0 0
    %1631 = vmatpush.bf16.msra.mxu0 0
    %1632 = vmatpush.bf16.msra.mxu0 0
    %1633 = vmatpush.bf16.msra.mxu0 0
    %1634 = vmatpush.bf16.msra.mxu0 0
    %1635 = vmatpush.bf16.msra.mxu0 %v1530
    %1636 = vmatpush.bf16.msra.mxu0 %v1517
    %1637 = vmatmul.bf16.gmra.mxu0 %v1567
    %v1638 = vpop.f32.mrf.mxu0
    %v1639 = vadd.f32 0.0, %v1638
    %v1640 = vpop.f32.mrf.mxu0
    %v1641 = vadd.f32 0.0, %v1640
    %1642 = vmatmul.bf16.gmra.mxu0 %v1570
    %v1643 = vpop.f32.mrf.mxu0
    %v1644 = vadd.f32 0.0, %v1643
    %v1645 = vpop.f32.mrf.mxu0
    %v1646 = vadd.f32 0.0, %v1645
    %1647 = vdwg.mxu0
    %1648 = vmatpush.bf16.msra.mxu0 0
    %1649 = vmatpush.bf16.msra.mxu0 0
    %1650 = vmatpush.bf16.msra.mxu0 0
    %1651 = vmatpush.bf16.msra.mxu0 0
    %1652 = vmatpush.bf16.msra.mxu0 0
    %1653 = vmatpush.bf16.msra.mxu0 0
    %1654 = vmatpush.bf16.msra.mxu0 %v1531
    %1655 = vmatpush.bf16.msra.mxu0 %v1518
    %1656 = vmatmul.bf16.gmra.mxu0 %v1567
    %v1657 = vpop.f32.mrf.mxu0
    %v1658 = vadd.f32 0.0, %v1657
    %v1659 = vpop.f32.mrf.mxu0
    %v1660 = vadd.f32 0.0, %v1659
    %1661 = vmatmul.bf16.gmra.mxu0 %v1570
    %v1662 = vpop.f32.mrf.mxu0
    %v1663 = vadd.f32 0.0, %v1662
    %v1664 = vpop.f32.mrf.mxu0
    %v1665 = vadd.f32 0.0, %v1664
    %1666 = vdwg.mxu0
    %1667 = vmatpush.bf16.msra.mxu0 0
    %1668 = vmatpush.bf16.msra.mxu0 0
    %1669 = vmatpush.bf16.msra.mxu0 0
    %1670 = vmatpush.bf16.msra.mxu0 0
    %1671 = vmatpush.bf16.msra.mxu0 0
    %1672 = vmatpush.bf16.msra.mxu0 0
    %1673 = vmatpush.bf16.msra.mxu0 %v1532
    %1674 = vmatpush.bf16.msra.mxu0 %v1519
    %1675 = vmatmul.bf16.gmra.mxu0 %v1567
    %v1676 = vpop.f32.mrf.mxu0
    %v1677 = vadd.f32 0.0, %v1676
    %v1678 = vpop.f32.mrf.mxu0
    %v1679 = vadd.f32 0.0, %v1678
    %1680 = vmatmul.bf16.gmra.mxu0 %v1570
    %v1681 = vpop.f32.mrf.mxu0
    %v1682 = vadd.f32 0.0, %v1681
    %v1683 = vpop.f32.mrf.mxu0
    %v1684 = vadd.f32 0.0, %v1683
    %1685 = vdwg.mxu0
    %1686 = vmatpush.bf16.msra.mxu0 0
    %1687 = vmatpush.bf16.msra.mxu0 0
    %1688 = vmatpush.bf16.msra.mxu0 0
    %1689 = vmatpush.bf16.msra.mxu0 0
    %1690 = vmatpush.bf16.msra.mxu0 0
    %1691 = vmatpush.bf16.msra.mxu0 0
    %1692 = vmatpush.bf16.msra.mxu0 %v1533
    %1693 = vmatpush.bf16.msra.mxu0 %v1520
    %1694 = vmatmul.bf16.gmra.mxu0 %v1567
    %v1695 = vpop.f32.mrf.mxu0
    %v1696 = vadd.f32 0.0, %v1695
    %v1697 = vpop.f32.mrf.mxu0
    %v1698 = vadd.f32 0.0, %v1697
    %1699 = vmatmul.bf16.gmra.mxu0 %v1570
    %v1700 = vpop.f32.mrf.mxu0
    %v1701 = vadd.f32 0.0, %v1700
    %v1702 = vpop.f32.mrf.mxu0
    %v1703 = vadd.f32 0.0, %v1702
    %1704 = vdwg.mxu0
    %1705 = vmatpush.bf16.msra.mxu0 0
    %1706 = vmatpush.bf16.msra.mxu0 0
    %1707 = vmatpush.bf16.msra.mxu0 0
    %1708 = vmatpush.bf16.msra.mxu0 0
    %1709 = vmatpush.bf16.msra.mxu0 0
    %1710 = vmatpush.bf16.msra.mxu0 0
    %1711 = vmatpush.bf16.msra.mxu0 %v1534
    %1712 = vmatpush.bf16.msra.mxu0 %v1521
    %1713 = vmatmul.bf16.gmra.mxu0 %v1567
    %v1714 = vpop.f32.mrf.mxu0
    %v1715 = vadd.f32 0.0, %v1714
    %v1716 = vpop.f32.mrf.mxu0
    %v1717 = vadd.f32 0.0, %v1716
    %1718 = vmatmul.bf16.gmra.mxu0 %v1570
    %v1719 = vpop.f32.mrf.mxu0
    %v1720 = vadd.f32 0.0, %v1719
    %v1721 = vpop.f32.mrf.mxu0
    %v1722 = vadd.f32 0.0, %v1721
    %1723 = vdwg.mxu0
    %1724 = vmatpush.bf16.msra.mxu0 0
    %1725 = vmatpush.bf16.msra.mxu0 0
    %1726 = vmatpush.bf16.msra.mxu0 0
    %1727 = vmatpush.bf16.msra.mxu0 0
    %1728 = vmatpush.bf16.msra.mxu0 0
    %1729 = vmatpush.bf16.msra.mxu0 0
    %1730 = vmatpush.bf16.msra.mxu0 %v1535
    %1731 = vmatpush.bf16.msra.mxu0 %v1522
    %1732 = vmatmul.bf16.gmra.mxu0 %v1567
    %v1733 = vpop.f32.mrf.mxu0
    %v1734 = vadd.f32 0.0, %v1733
    %v1735 = vpop.f32.mrf.mxu0
    %v1736 = vadd.f32 0.0, %v1735
    %1737 = vmatmul.bf16.gmra.mxu0 %v1570
    %v1738 = vpop.f32.mrf.mxu0
    %v1739 = vadd.f32 0.0, %v1738
    %v1740 = vpop.f32.mrf.mxu0
    %v1741 = vadd.f32 0.0, %v1740
    %1742 = vdwg.mxu0
    %1743 = vmatpush.bf16.msra.mxu0 0
    %1744 = vmatpush.bf16.msra.mxu0 0
    %1745 = vmatpush.bf16.msra.mxu0 0
    %1746 = vmatpush.bf16.msra.mxu0 0
    %1747 = vmatpush.bf16.msra.mxu0 0
    %1748 = vmatpush.bf16.msra.mxu0 0
    %1749 = vmatpush.bf16.msra.mxu0 %v1536
    %1750 = vmatpush.bf16.msra.mxu0 %v1523
    %1751 = vmatmul.bf16.gmra.mxu0 %v1567
    %v1752 = vpop.f32.mrf.mxu0
    %v1753 = vadd.f32 0.0, %v1752
    %v1754 = vpop.f32.mrf.mxu0
    %v1755 = vadd.f32 0.0, %v1754
    %1756 = vmatmul.bf16.gmra.mxu0 %v1570
    %v1757 = vpop.f32.mrf.mxu0
    %v1758 = vadd.f32 0.0, %v1757
    %v1759 = vpop.f32.mrf.mxu0
    %v1760 = vadd.f32 0.0, %v1759
    %1761 = vdwg.mxu0
    %1762 = vmatpush.bf16.msra.mxu0 0
    %1763 = vmatpush.bf16.msra.mxu0 0
    %1764 = vmatpush.bf16.msra.mxu0 0
    %1765 = vmatpush.bf16.msra.mxu0 0
    %1766 = vmatpush.bf16.msra.mxu0 0
    %1767 = vmatpush.bf16.msra.mxu0 0
    %1768 = vmatpush.bf16.msra.mxu0 %v1537
    %1769 = vmatpush.bf16.msra.mxu0 %v1524
    %1770 = vmatmul.bf16.gmra.mxu0 %v1567
    %v1771 = vpop.f32.mrf.mxu0
    %v1772 = vadd.f32 0.0, %v1771
    %v1773 = vpop.f32.mrf.mxu0
    %v1774 = vadd.f32 0.0, %v1773
    %1775 = vmatmul.bf16.gmra.mxu0 %v1570
    %v1776 = vpop.f32.mrf.mxu0
    %v1777 = vadd.f32 0.0, %v1776
    %v1778 = vpop.f32.mrf.mxu0
    %v1779 = vadd.f32 0.0, %v1778
    %1780 = vdwg.mxu0
    %1781 = vmatpush.bf16.msra.mxu0 0
    %1782 = vmatpush.bf16.msra.mxu0 0
    %1783 = vmatpush.bf16.msra.mxu0 0
    %1784 = vmatpush.bf16.msra.mxu0 0
    %1785 = vmatpush.bf16.msra.mxu0 0
    %1786 = vmatpush.bf16.msra.mxu0 0
    %1787 = vmatpush.bf16.msra.mxu0 %v1538
    %1788 = vmatpush.bf16.msra.mxu0 %v1525
    %1789 = vmatmul.bf16.gmra.mxu0 %v1567
    %v1790 = vpop.f32.mrf.mxu0
    %v1791 = vadd.f32 0.0, %v1790
    %v1792 = vpop.f32.mrf.mxu0
    %v1793 = vadd.f32 0.0, %v1792
    %1794 = vmatmul.bf16.gmra.mxu0 %v1570
    %v1795 = vpop.f32.mrf.mxu0
    %v1796 = vadd.f32 0.0, %v1795
    %v1797 = vpop.f32.mrf.mxu0
    %v1798 = vadd.f32 0.0, %v1797
    %1799 = vdwg.mxu0
    %1800 = vmatpush.bf16.msra.mxu0 0
    %1801 = vmatpush.bf16.msra.mxu0 0
    %1802 = vmatpush.bf16.msra.mxu0 0
    %1803 = vmatpush.bf16.msra.mxu0 0
    %1804 = vmatpush.bf16.msra.mxu0 0
    %1805 = vmatpush.bf16.msra.mxu0 0
    %1806 = vmatpush.bf16.msra.mxu0 %v1539
    %1807 = vmatpush.bf16.msra.mxu0 %v1526
    %1808 = vmatmul.bf16.gmra.mxu0 %v1567
    %v1809 = vpop.f32.mrf.mxu0
    %v1810 = vadd.f32 0.0, %v1809
    %v1811 = vpop.f32.mrf.mxu0
    %v1812 = vadd.f32 0.0, %v1811
    %1813 = vmatmul.bf16.gmra.mxu0 %v1570
    %v1814 = vpop.f32.mrf.mxu0
    %v1815 = vadd.f32 0.0, %v1814
    %v1816 = vpop.f32.mrf.mxu0
    %v1817 = vadd.f32 0.0, %v1816
    %1818 = vdwg.mxu0
    %v1819 = vld [vmem:[%s6] sm:$0xff]
    %v1820 = vld [vmem:[%s6 + $0x8] sm:$0xff]
    %v1821 = vld [vmem:[%s6 + $0x10] sm:$0xff]
    %v1822 = vld [vmem:[%s6 + $0x18] sm:$0xff]
    %1824 = vset.pattern.permute.xlu0 0
    %1825 = vperm.xlu0 %1824, %v1819
    %v1826 = vpop.permute.xlu0 %1825
    %1829 = vset.pattern.permute.xlu0 0
    %1830 = vperm.xlu0 %1829, %v1820
    %v1831 = vpop.permute.xlu0 %1830
    %1834 = vset.pattern.permute.xlu0 0
    %1835 = vperm.xlu0 %1834, %v1821
    %v1836 = vpop.permute.xlu0 %1835
    %1839 = vset.pattern.permute.xlu0 0
    %1840 = vperm.xlu0 %1839, %v1822
    %v1841 = vpop.permute.xlu0 %1840
    %v1843 = vadd.f32 %v1582, %v1826
    %v1844 = vadd.f32 %v1584, %v1831
    %v1845 = vadd.f32 %v1587, %v1836
    %v1846 = vadd.f32 %v1589, %v1841
    %v1847 = vtanh.pop %v1843
    %v1848 = vtanh.pop %v1844
    %v1849 = vtanh.pop %v1845
    %v1850 = vtanh.pop %v1846
    %v1851 = vmul.f32 %v1847, %v1847
    %v1852 = vmul.f32 %v1848, %v1848
    %v1853 = vmul.f32 %v1849, %v1849
    %v1854 = vmul.f32 %v1850, %v1850
    %v1855 = vsub.f32 1.0, %v1851
    %v1856 = vsub.f32 1.0, %v1852
    %v1857 = vsub.f32 1.0, %v1853
    %v1858 = vsub.f32 1.0, %v1854
    %v1859 = vmul.f32 %v1847, -2.0
    %v1860 = vmul.f32 %v1848, -2.0
    %v1861 = vmul.f32 %v1849, -2.0
    %v1862 = vmul.f32 %v1850, -2.0
    %v1863 = vmul.f32 %v1859, %v1855
    %v1864 = vmul.f32 %v1860, %v1856
    %v1865 = vmul.f32 %v1861, %v1857
    %v1866 = vmul.f32 %v1862, %v1858
    %v1867 = vmul.f32 %v1855, 2.0
    %v1868 = vmul.f32 %v1856, 2.0
    %v1869 = vmul.f32 %v1857, 2.0
    %v1870 = vmul.f32 %v1858, 2.0
    %v1871 = vmul.f32 %v1851, 3.0
    %v1872 = vmul.f32 %v1852, 3.0
    %v1873 = vmul.f32 %v1853, 3.0
    %v1874 = vmul.f32 %v1854, 3.0
    %v1875 = vsub.f32 %v1871, 1.0
    %v1876 = vsub.f32 %v1872, 1.0
    %v1877 = vsub.f32 %v1873, 1.0
    %v1878 = vsub.f32 %v1874, 1.0
    %v1879 = vmul.f32 %v1867, %v1875
    %v1880 = vmul.f32 %v1868, %v1876
    %v1881 = vmul.f32 %v1869, %v1877
    %v1882 = vmul.f32 %v1870, %v1878
    %v1883 = vmul.f32 %v1601, %v1601
    %v1884 = vmul.f32 %v1603, %v1603
    %v1885 = vmul.f32 %v1606, %v1606
    %v1886 = vmul.f32 %v1608, %v1608
    %v1887 = vmul.f32 %v1620, %v1620
    %v1888 = vmul.f32 %v1622, %v1622
    %v1889 = vmul.f32 %v1625, %v1625
    %v1890 = vmul.f32 %v1627, %v1627
    %v1891 = vmul.f32 %v1863, %v1601
    %v1892 = vmul.f32 %v1864, %v1603
    %v1893 = vmul.f32 %v1865, %v1606
    %v1894 = vmul.f32 %v1866, %v1608
    %v1895 = vmul.f32 %v1863, %v1620
    %v1896 = vmul.f32 %v1864, %v1622
    %v1897 = vmul.f32 %v1865, %v1625
    %v1898 = vmul.f32 %v1866, %v1627
    %v1899 = vmul.f32 %v1879, %v1883
    %v1900 = vmul.f32 %v1880, %v1884
    %v1901 = vmul.f32 %v1881, %v1885
    %v1902 = vmul.f32 %v1882, %v1886
    %v1903 = vmul.f32 %v1879, %v1887
    %v1904 = vmul.f32 %v1880, %v1888
    %v1905 = vmul.f32 %v1881, %v1889
    %v1906 = vmul.f32 %v1882, %v1890
    %v1907 = vpack.c.bf16 %v1847, %v1847
    %v1908 = vpack.c.bf16 %v1848, %v1848
    %v1909 = vpack.c.bf16 %v1849, %v1849
    %v1910 = vpack.c.bf16 %v1850, %v1850
    %1911 = vst [vmem:[#allocation2] sm:$0xf] %v1907
    %1912 = vst [vmem:[#allocation2 + $0x34] sm:$0xf] %v1908
    %1913 = vst [vmem:[#allocation2 + $0x68] sm:$0xf] %v1909
    %1914 = vst [vmem:[#allocation2 + $0x9c] sm:$0xf] %v1910
    %v1915 = vmul.f32 %v1855, %v1601
    %v1916 = vmul.f32 %v1856, %v1603
    %v1917 = vmul.f32 %v1857, %v1606
    %v1918 = vmul.f32 %v1858, %v1608
    %v1919 = vpack.c.bf16 %v1915, %v1915
    %v1920 = vpack.c.bf16 %v1916, %v1916
    %v1921 = vpack.c.bf16 %v1917, %v1917
    %v1922 = vpack.c.bf16 %v1918, %v1918
    %1923 = vst [vmem:[#allocation2 + $0x4] sm:$0xf] %v1919
    %1924 = vst [vmem:[#allocation2 + $0x38] sm:$0xf] %v1920
    %1925 = vst [vmem:[#allocation2 + $0x6c] sm:$0xf] %v1921
    %1926 = vst [vmem:[#allocation2 + $0xa0] sm:$0xf] %v1922
    %v1927 = vmul.f32 %v1855, %v1620
    %v1928 = vmul.f32 %v1856, %v1622
    %v1929 = vmul.f32 %v1857, %v1625
    %v1930 = vmul.f32 %v1858, %v1627
    %v1931 = vpack.c.bf16 %v1927, %v1927
    %v1932 = vpack.c.bf16 %v1928, %v1928
    %v1933 = vpack.c.bf16 %v1929, %v1929
    %v1934 = vpack.c.bf16 %v1930, %v1930
    %1935 = vst [vmem:[#allocation2 + $0x8] sm:$0xf] %v1931
    %1936 = vst [vmem:[#allocation2 + $0x3c] sm:$0xf] %v1932
    %1937 = vst [vmem:[#allocation2 + $0x70] sm:$0xf] %v1933
    %1938 = vst [vmem:[#allocation2 + $0xa4] sm:$0xf] %v1934
    %v1939 = vmul.f32 %v1855, %v1639
    %v1940 = vmul.f32 %v1856, %v1641
    %v1941 = vmul.f32 %v1857, %v1644
    %v1942 = vmul.f32 %v1858, %v1646
    %v1943 = vpack.c.bf16 %v1939, %v1939
    %v1944 = vpack.c.bf16 %v1940, %v1940
    %v1945 = vpack.c.bf16 %v1941, %v1941
    %v1946 = vpack.c.bf16 %v1942, %v1942
    %1947 = vst [vmem:[#allocation2 + $0xc] sm:$0xf] %v1943
    %1948 = vst [vmem:[#allocation2 + $0x40] sm:$0xf] %v1944
    %1949 = vst [vmem:[#allocation2 + $0x74] sm:$0xf] %v1945
    %1950 = vst [vmem:[#allocation2 + $0xa8] sm:$0xf] %v1946
    %v1951 = vmul.f32 %v1863, %v1883
    %v1952 = vmul.f32 %v1864, %v1884
    %v1953 = vmul.f32 %v1865, %v1885
    %v1954 = vmul.f32 %v1866, %v1886
    %v1955 = vmul.f32 %v1855, %v1658
    %v1956 = vmul.f32 %v1856, %v1660
    %v1957 = vmul.f32 %v1857, %v1663
    %v1958 = vmul.f32 %v1858, %v1665
    %v1959 = vadd.f32 %v1951, %v1955
    %v1960 = vadd.f32 %v1952, %v1956
    %v1961 = vadd.f32 %v1953, %v1957
    %v1962 = vadd.f32 %v1954, %v1958
    %v1963 = vpack.c.bf16 %v1959, %v1959
    %v1964 = vpack.c.bf16 %v1960, %v1960
    %v1965 = vpack.c.bf16 %v1961, %v1961
    %v1966 = vpack.c.bf16 %v1962, %v1962
    %1967 = vst [vmem:[#allocation2 + $0x10] sm:$0xf] %v1963
    %1968 = vst [vmem:[#allocation2 + $0x44] sm:$0xf] %v1964
    %1969 = vst [vmem:[#allocation2 + $0x78] sm:$0xf] %v1965
    %1970 = vst [vmem:[#allocation2 + $0xac] sm:$0xf] %v1966
    %v1971 = vmul.f32 %v1891, %v1620
    %v1972 = vmul.f32 %v1892, %v1622
    %v1973 = vmul.f32 %v1893, %v1625
    %v1974 = vmul.f32 %v1894, %v1627
    %v1975 = vmul.f32 %v1855, %v1677
    %v1976 = vmul.f32 %v1856, %v1679
    %v1977 = vmul.f32 %v1857, %v1682
    %v1978 = vmul.f32 %v1858, %v1684
    %v1979 = vadd.f32 %v1971, %v1975
    %v1980 = vadd.f32 %v1972, %v1976
    %v1981 = vadd.f32 %v1973, %v1977
    %v1982 = vadd.f32 %v1974, %v1978
    %v1983 = vpack.c.bf16 %v1979, %v1979
    %v1984 = vpack.c.bf16 %v1980, %v1980
    %v1985 = vpack.c.bf16 %v1981, %v1981
    %v1986 = vpack.c.bf16 %v1982, %v1982
    %1987 = vst [vmem:[#allocation2 + $0x14] sm:$0xf] %v1983
    %1988 = vst [vmem:[#allocation2 + $0x48] sm:$0xf] %v1984
    %1989 = vst [vmem:[#allocation2 + $0x7c] sm:$0xf] %v1985
    %1990 = vst [vmem:[#allocation2 + $0xb0] sm:$0xf] %v1986
    %v1991 = vmul.f32 %v1891, %v1639
    %v1992 = vmul.f32 %v1892, %v1641
    %v1993 = vmul.f32 %v1893, %v1644
    %v1994 = vmul.f32 %v1894, %v1646
    %v1995 = vmul.f32 %v1855, %v1696
    %v1996 = vmul.f32 %v1856, %v1698
    %v1997 = vmul.f32 %v1857, %v1701
    %v1998 = vmul.f32 %v1858, %v1703
    %v1999 = vadd.f32 %v1991, %v1995
    %v2000 = vadd.f32 %v1992, %v1996
    %v2001 = vadd.f32 %v1993, %v1997
    %v2002 = vadd.f32 %v1994, %v1998
    %v2003 = vpack.c.bf16 %v1999, %v1999
    %v2004 = vpack.c.bf16 %v2000, %v2000
    %v2005 = vpack.c.bf16 %v2001, %v2001
    %v2006 = vpack.c.bf16 %v2002, %v2002
    %2007 = vst [vmem:[#allocation2 + $0x18] sm:$0xf] %v2003
    %2008 = vst [vmem:[#allocation2 + $0x4c] sm:$0xf] %v2004
    %2009 = vst [vmem:[#allocation2 + $0x80] sm:$0xf] %v2005
    %2010 = vst [vmem:[#allocation2 + $0xb4] sm:$0xf] %v2006
    %v2011 = vmul.f32 %v1863, %v1887
    %v2012 = vmul.f32 %v1864, %v1888
    %v2013 = vmul.f32 %v1865, %v1889
    %v2014 = vmul.f32 %v1866, %v1890
    %v2015 = vmul.f32 %v1855, %v1715
    %v2016 = vmul.f32 %v1856, %v1717
    %v2017 = vmul.f32 %v1857, %v1720
    %v2018 = vmul.f32 %v1858, %v1722
    %v2019 = vadd.f32 %v2011, %v2015
    %v2020 = vadd.f32 %v2012, %v2016
    %v2021 = vadd.f32 %v2013, %v2017
    %v2022 = vadd.f32 %v2014, %v2018
    %v2023 = vpack.c.bf16 %v2019, %v2019
    %v2024 = vpack.c.bf16 %v2020, %v2020
    %v2025 = vpack.c.bf16 %v2021, %v2021
    %v2026 = vpack.c.bf16 %v2022, %v2022
    %2027 = vst [vmem:[#allocation2 + $0x1c] sm:$0xf] %v2023
    %2028 = vst [vmem:[#allocation2 + $0x50] sm:$0xf] %v2024
    %2029 = vst [vmem:[#allocation2 + $0x84] sm:$0xf] %v2025
    %2030 = vst [vmem:[#allocation2 + $0xb8] sm:$0xf] %v2026
    %v2031 = vmul.f32 %v1895, %v1639
    %v2032 = vmul.f32 %v1896, %v1641
    %v2033 = vmul.f32 %v1897, %v1644
    %v2034 = vmul.f32 %v1898, %v1646
    %v2035 = vmul.f32 %v1855, %v1734
    %v2036 = vmul.f32 %v1856, %v1736
    %v2037 = vmul.f32 %v1857, %v1739
    %v2038 = vmul.f32 %v1858, %v1741
    %v2039 = vadd.f32 %v2031, %v2035
    %v2040 = vadd.f32 %v2032, %v2036
    %v2041 = vadd.f32 %v2033, %v2037
    %v2042 = vadd.f32 %v2034, %v2038
    %v2043 = vpack.c.bf16 %v2039, %v2039
    %v2044 = vpack.c.bf16 %v2040, %v2040
    %v2045 = vpack.c.bf16 %v2041, %v2041
    %v2046 = vpack.c.bf16 %v2042, %v2042
    %2047 = vst [vmem:[#allocation2 + $0x20] sm:$0xf] %v2043
    %2048 = vst [vmem:[#allocation2 + $0x54] sm:$0xf] %v2044
    %2049 = vst [vmem:[#allocation2 + $0x88] sm:$0xf] %v2045
    %2050 = vst [vmem:[#allocation2 + $0xbc] sm:$0xf] %v2046
    %v2051 = vmul.f32 %v1899, %v1601
    %v2052 = vmul.f32 %v1900, %v1603
    %v2053 = vmul.f32 %v1901, %v1606
    %v2054 = vmul.f32 %v1902, %v1608
    %v2055 = vmul.f32 %v1891, %v1658
    %v2056 = vmul.f32 %v1892, %v1660
    %v2057 = vmul.f32 %v1893, %v1663
    %v2058 = vmul.f32 %v1894, %v1665
    %v2059 = vmul.f32 %v2055, 3.0
    %v2060 = vmul.f32 %v2056, 3.0
    %v2061 = vmul.f32 %v2057, 3.0
    %v2062 = vmul.f32 %v2058, 3.0
    %v2063 = vadd.f32 %v2051, %v2059
    %v2064 = vadd.f32 %v2052, %v2060
    %v2065 = vadd.f32 %v2053, %v2061
    %v2066 = vadd.f32 %v2054, %v2062
    %v2067 = vmul.f32 %v1855, %v1753
    %v2068 = vmul.f32 %v1856, %v1755
    %v2069 = vmul.f32 %v1857, %v1758
    %v2070 = vmul.f32 %v1858, %v1760
    %v2071 = vadd.f32 %v2063, %v2067
    %v2072 = vadd.f32 %v2064, %v2068
    %v2073 = vadd.f32 %v2065, %v2069
    %v2074 = vadd.f32 %v2066, %v2070
    %v2075 = vpack.c.bf16 %v2071, %v2071
    %v2076 = vpack.c.bf16 %v2072, %v2072
    %v2077 = vpack.c.bf16 %v2073, %v2073
    %v2078 = vpack.c.bf16 %v2074, %v2074
    %2079 = vst [vmem:[#allocation2 + $0x24] sm:$0xf] %v2075
    %2080 = vst [vmem:[#allocation2 + $0x58] sm:$0xf] %v2076
    %2081 = vst [vmem:[#allocation2 + $0x8c] sm:$0xf] %v2077
    %2082 = vst [vmem:[#allocation2 + $0xc0] sm:$0xf] %v2078
    %v2083 = vmul.f32 %v1899, %v1620
    %v2084 = vmul.f32 %v1900, %v1622
    %v2085 = vmul.f32 %v1901, %v1625
    %v2086 = vmul.f32 %v1902, %v1627
    %v2087 = vmul.f32 %v1658, %v1620
    %v2088 = vmul.f32 %v1660, %v1622
    %v2089 = vmul.f32 %v1663, %v1625
    %v2090 = vmul.f32 %v1665, %v1627
    %v2091 = vmul.f32 %v1863, %v2087
    %v2092 = vmul.f32 %v1864, %v2088
    %v2093 = vmul.f32 %v1865, %v2089
    %v2094 = vmul.f32 %v1866, %v2090
    %v2095 = vadd.f32 %v2083, %v2091
    %v2096 = vadd.f32 %v2084, %v2092
    %v2097 = vadd.f32 %v2085, %v2093
    %v2098 = vadd.f32 %v2086, %v2094
    %v2099 = vmul.f32 %v1891, %v1677
    %v2100 = vmul.f32 %v1892, %v1679
    %v2101 = vmul.f32 %v1893, %v1682
    %v2102 = vmul.f32 %v1894, %v1684
    %v2103 = vmul.f32 %v2099, 2.0
    %v2104 = vmul.f32 %v2100, 2.0
    %v2105 = vmul.f32 %v2101, 2.0
    %v2106 = vmul.f32 %v2102, 2.0
    %v2107 = vadd.f32 %v2095, %v2103
    %v2108 = vadd.f32 %v2096, %v2104
    %v2109 = vadd.f32 %v2097, %v2105
    %v2110 = vadd.f32 %v2098, %v2106
    %v2111 = vmul.f32 %v1855, %v1772
    %v2112 = vmul.f32 %v1856, %v1774
    %v2113 = vmul.f32 %v1857, %v1777
    %v2114 = vmul.f32 %v1858, %v1779
    %v2115 = vadd.f32 %v2107, %v2111
    %v2116 = vadd.f32 %v2108, %v2112
    %v2117 = vadd.f32 %v2109, %v2113
    %v2118 = vadd.f32 %v2110, %v2114
    %v2119 = vpack.c.bf16 %v2115, %v2115
    %v2120 = vpack.c.bf16 %v2116, %v2116
    %v2121 = vpack.c.bf16 %v2117, %v2117
    %v2122 = vpack.c.bf16 %v2118, %v2118
    %2123 = vst [vmem:[#allocation2 + $0x28] sm:$0xf] %v2119
    %2124 = vst [vmem:[#allocation2 + $0x5c] sm:$0xf] %v2120
    %2125 = vst [vmem:[#allocation2 + $0x90] sm:$0xf] %v2121
    %2126 = vst [vmem:[#allocation2 + $0xc4] sm:$0xf] %v2122
    %v2127 = vmul.f32 %v1903, %v1601
    %v2128 = vmul.f32 %v1904, %v1603
    %v2129 = vmul.f32 %v1905, %v1606
    %v2130 = vmul.f32 %v1906, %v1608
    %v2131 = vmul.f32 %v1715, %v1601
    %v2132 = vmul.f32 %v1717, %v1603
    %v2133 = vmul.f32 %v1720, %v1606
    %v2134 = vmul.f32 %v1722, %v1608
    %v2135 = vmul.f32 %v1863, %v2131
    %v2136 = vmul.f32 %v1864, %v2132
    %v2137 = vmul.f32 %v1865, %v2133
    %v2138 = vmul.f32 %v1866, %v2134
    %v2139 = vadd.f32 %v2127, %v2135
    %v2140 = vadd.f32 %v2128, %v2136
    %v2141 = vadd.f32 %v2129, %v2137
    %v2142 = vadd.f32 %v2130, %v2138
    %v2143 = vmul.f32 %v1895, %v1677
    %v2144 = vmul.f32 %v1896, %v1679
    %v2145 = vmul.f32 %v1897, %v1682
    %v2146 = vmul.f32 %v1898, %v1684
    %v2147 = vmul.f32 %v2143, 2.0
    %v2148 = vmul.f32 %v2144, 2.0
    %v2149 = vmul.f32 %v2145, 2.0
    %v2150 = vmul.f32 %v2146, 2.0
    %v2151 = vadd.f32 %v2139, %v2147
    %v2152 = vadd.f32 %v2140, %v2148
    %v2153 = vadd.f32 %v2141, %v2149
    %v2154 = vadd.f32 %v2142, %v2150
    %v2155 = vmul.f32 %v1855, %v1791
    %v2156 = vmul.f32 %v1856, %v1793
    %v2157 = vmul.f32 %v1857, %v1796
    %v2158 = vmul.f32 %v1858, %v1798
    %v2159 = vadd.f32 %v2151, %v2155
    %v2160 = vadd.f32 %v2152, %v2156
    %v2161 = vadd.f32 %v2153, %v2157
    %v2162 = vadd.f32 %v2154, %v2158
    %v2163 = vpack.c.bf16 %v2159, %v2159
    %v2164 = vpack.c.bf16 %v2160, %v2160
    %v2165 = vpack.c.bf16 %v2161, %v2161
    %v2166 = vpack.c.bf16 %v2162, %v2162
    %2167 = vst [vmem:[#allocation2 + $0x2c] sm:$0xf] %v2163
    %2168 = vst [vmem:[#allocation2 + $0x60] sm:$0xf] %v2164
    %2169 = vst [vmem:[#allocation2 + $0x94] sm:$0xf] %v2165
    %2170 = vst [vmem:[#allocation2 + $0xc8] sm:$0xf] %v2166
    %v2171 = vmul.f32 %v1903, %v1620
    %v2172 = vmul.f32 %v1904, %v1622
    %v2173 = vmul.f32 %v1905, %v1625
    %v2174 = vmul.f32 %v1906, %v1627
    %v2175 = vmul.f32 %v1895, %v1715
    %v2176 = vmul.f32 %v1896, %v1717
    %v2177 = vmul.f32 %v1897, %v1720
    %v2178 = vmul.f32 %v1898, %v1722
    %v2179 = vmul.f32 %v2175, 3.0
    %v2180 = vmul.f32 %v2176, 3.0
    %v2181 = vmul.f32 %v2177, 3.0
    %v2182 = vmul.f32 %v2178, 3.0
    %v2183 = vadd.f32 %v2171, %v2179
    %v2184 = vadd.f32 %v2172, %v2180
    %v2185 = vadd.f32 %v2173, %v2181
    %v2186 = vadd.f32 %v2174, %v2182
    %v2187 = vmul.f32 %v1855, %v1810
    %v2188 = vmul.f32 %v1856, %v1812
    %v2189 = vmul.f32 %v1857, %v1815
    %v2190 = vmul.f32 %v1858, %v1817
    %v2191 = vadd.f32 %v2183, %v2187
    %v2192 = vadd.f32 %v2184, %v2188
    %v2193 = vadd.f32 %v2185, %v2189
    %v2194 = vadd.f32 %v2186, %v2190
    %v2195 = vpack.c.bf16 %v2191, %v2191
    %v2196 = vpack.c.bf16 %v2192, %v2192
    %v2197 = vpack.c.bf16 %v2193, %v2193
    %v2198 = vpack.c.bf16 %v2194, %v2194
    %2199 = vst [vmem:[#allocation2 + $0x30] sm:$0xf] %v2195
    %2200 = vst [vmem:[#allocation2 + $0x64] sm:$0xf] %v2196
    %2201 = vst [vmem:[#allocation2 + $0x98] sm:$0xf] %v2197
    %2202 = vst [vmem:[#allocation2 + $0xcc] sm:$0xf] %v2198
    %v2203 = vld [vmem:[%s7] sm:$0xf]
    %v2204 = vld [vmem:[%s7 + $0x4] sm:$0xf]
    %v2205 = vld [vmem:[%s7 + $0x8] sm:$0xf]
    %v2206 = vld [vmem:[%s7 + $0xc] sm:$0xf]
    %v2207 = vld [vmem:[#allocation2] sm:$0xff]
    %v2208 = vld [vmem:[#allocation2 + $0x8] sm:$0xff]
    %v2209 = vld [vmem:[#allocation2 + $0x10] sm:$0xff]
    %v2210 = vld [vmem:[#allocation2 + $0x18] sm:$0xff]
    %v2211 = vld [vmem:[#allocation2 + $0x20] sm:$0xff]
    %v2212 = vld [vmem:[#allocation2 + $0x28] sm:$0xff]
    %v2213 = vld [vmem:[#allocation2 + $0x30] sm:$0xf]
    %v2214 = vld [vmem:[#allocation2 + $0x34] sm:$0xff]
    %v2215 = vld [vmem:[#allocation2 + $0x3c] sm:$0xff]
    %v2216 = vld [vmem:[#allocation2 + $0x44] sm:$0xff]
    %v2217 = vld [vmem:[#allocation2 + $0x4c] sm:$0xff]
    %v2218 = vld [vmem:[#allocation2 + $0x54] sm:$0xff]
    %v2219 = vld [vmem:[#allocation2 + $0x5c] sm:$0xff]
    %v2220 = vld [vmem:[#allocation2 + $0x64] sm:$0xf]
    %v2221 = vld [vmem:[#allocation2 + $0x68] sm:$0xff]
    %v2222 = vld [vmem:[#allocation2 + $0x70] sm:$0xff]
    %v2223 = vld [vmem:[#allocation2 + $0x78] sm:$0xff]
    %v2224 = vld [vmem:[#allocation2 + $0x80] sm:$0xff]
    %v2225 = vld [vmem:[#allocation2 + $0x88] sm:$0xff]
    %v2226 = vld [vmem:[#allocation2 + $0x90] sm:$0xff]
    %v2227 = vld [vmem:[#allocation2 + $0x98] sm:$0xf]
    %v2228 = vld [vmem:[#allocation2 + $0x9c] sm:$0xff]
    %v2229 = vld [vmem:[#allocation2 + $0xa4] sm:$0xff]
    %v2230 = vld [vmem:[#allocation2 + $0xac] sm:$0xff]
    %v2231 = vld [vmem:[#allocation2 + $0xb4] sm:$0xff]
    %v2232 = vld [vmem:[#allocation2 + $0xbc] sm:$0xff]
    %v2233 = vld [vmem:[#allocation2 + $0xc4] sm:$0xff]
    %v2234 = vld [vmem:[#allocation2 + $0xcc] sm:$0xf]
    %v2239 = vunpack.c.l.b16 %v2203
    %v2240 = vunpack.c.l.b16 %v2204
    %v2241 = vunpack.c.l.b16 %v2205
    %v2242 = vunpack.c.l.b16 %v2206
    %v2243 = vpack.c.b16 %v2240, %v2239
    %v2244 = vpack.c.b16 %v2242, %v2241
    %v2273 = vunpack.c.l.b16 %v2207
    %v2274 = vunpack.c.h.b16 %v2207
    %v2275 = vunpack.c.l.b16 %v2208
    %v2276 = vunpack.c.h.b16 %v2208
    %v2277 = vunpack.c.l.b16 %v2209
    %v2278 = vunpack.c.h.b16 %v2209
    %v2279 = vunpack.c.l.b16 %v2210
    %v2280 = vunpack.c.h.b16 %v2210
    %v2281 = vunpack.c.l.b16 %v2211
    %v2282 = vunpack.c.h.b16 %v2211
    %v2283 = vunpack.c.l.b16 %v2212
    %v2284 = vunpack.c.h.b16 %v2212
    %v2285 = vunpack.c.l.b16 %v2213
    %v2286 = vunpack.c.l.b16 %v2214
    %v2287 = vunpack.c.h.b16 %v2214
    %v2288 = vunpack.c.l.b16 %v2215
    %v2289 = vunpack.c.h.b16 %v2215
    %v2290 = vunpack.c.l.b16 %v2216
    %v2291 = vunpack.c.h.b16 %v2216
    %v2292 = vunpack.c.l.b16 %v2217
    %v2293 = vunpack.c.h.b16 %v2217
    %v2294 = vunpack.c.l.b16 %v2218
    %v2295 = vunpack.c.h.b16 %v2218
    %v2296 = vunpack.c.l.b16 %v2219
    %v2297 = vunpack.c.h.b16 %v2219
    %v2298 = vunpack.c.l.b16 %v2220
    %v2299 = vunpack.c.l.b16 %v2221
    %v2300 = vunpack.c.h.b16 %v2221
    %v2301 = vunpack.c.l.b16 %v2222
    %v2302 = vunpack.c.h.b16 %v2222
    %v2303 = vunpack.c.l.b16 %v2223
    %v2304 = vunpack.c.h.b16 %v2223
    %v2305 = vunpack.c.l.b16 %v2224
    %v2306 = vunpack.c.h.b16 %v2224
    %v2307 = vunpack.c.l.b16 %v2225
    %v2308 = vunpack.c.h.b16 %v2225
    %v2309 = vunpack.c.l.b16 %v2226
    %v2310 = vunpack.c.h.b16 %v2226
    %v2311 = vunpack.c.l.b16 %v2227
    %v2312 = vunpack.c.l.b16 %v2228
    %v2313 = vunpack.c.h.b16 %v2228
    %v2314 = vunpack.c.l.b16 %v2229
    %v2315 = vunpack.c.h.b16 %v2229
    %v2316 = vunpack.c.l.b16 %v2230
    %v2317 = vunpack.c.h.b16 %v2230
    %v2318 = vunpack.c.l.b16 %v2231
    %v2319 = vunpack.c.h.b16 %v2231
    %v2320 = vunpack.c.l.b16 %v2232
    %v2321 = vunpack.c.h.b16 %v2232
    %v2322 = vunpack.c.l.b16 %v2233
    %v2323 = vunpack.c.h.b16 %v2233
    %v2324 = vunpack.c.l.b16 %v2234
    %v2325 = vpack.c.b16 %v2286, %v2273
    %v2326 = vpack.c.b16 %v2287, %v2274
    %v2327 = vpack.c.b16 %v2288, %v2275
    %v2328 = vpack.c.b16 %v2289, %v2276
    %v2329 = vpack.c.b16 %v2290, %v2277
    %v2330 = vpack.c.b16 %v2291, %v2278
    %v2331 = vpack.c.b16 %v2292, %v2279
    %v2332 = vpack.c.b16 %v2293, %v2280
    %v2333 = vpack.c.b16 %v2294, %v2281
    %v2334 = vpack.c.b16 %v2295, %v2282
    %v2335 = vpack.c.b16 %v2296, %v2283
    %v2336 = vpack.c.b16 %v2297, %v2284
    %v2337 = vpack.c.b16 %v2298, %v2285
    %v2338 = vpack.c.b16 %v2312, %v2299
    %v2339 = vpack.c.b16 %v2313, %v2300
    %v2340 = vpack.c.b16 %v2314, %v2301
    %v2341 = vpack.c.b16 %v2315, %v2302
    %v2342 = vpack.c.b16 %v2316, %v2303
    %v2343 = vpack.c.b16 %v2317, %v2304
    %v2344 = vpack.c.b16 %v2318, %v2305
    %v2345 = vpack.c.b16 %v2319, %v2306
    %v2346 = vpack.c.b16 %v2320, %v2307
    %v2347 = vpack.c.b16 %v2321, %v2308
    %v2348 = vpack.c.b16 %v2322, %v2309
    %v2349 = vpack.c.b16 %v2323, %v2310
    %v2350 = vpack.c.b16 %v2324, %v2311
    %v2378 = vsel %vm754, %v2243, 0
    %v2381 = vsel %vm754, %v2244, 0
    %2383 = vmatpush.bf16.msra.mxu0 0
    %2384 = vmatpush.bf16.msra.mxu0 0
    %2385 = vmatpush.bf16.msra.mxu0 0
    %2386 = vmatpush.bf16.msra.mxu0 0
    %2387 = vmatpush.bf16.msra.mxu0 0
    %2388 = vmatpush.bf16.msra.mxu0 0
    %2389 = vmatpush.bf16.msra.mxu0 %v2338
    %2390 = vmatpush.bf16.msra.mxu0 %v2325
    %2391 = vmatmul.bf16.gmra.mxu0 %v2378
    %v2392 = vpop.f32.mrf.mxu0
    %v2393 = vadd.f32 0.0, %v2392
    %v2394 = vpop.f32.mrf.mxu0
    %v2395 = vadd.f32 0.0, %v2394
    %2396 = vmatmul.bf16.gmra.mxu0 %v2381
    %v2397 = vpop.f32.mrf.mxu0
    %v2398 = vadd.f32 0.0, %v2397
    %v2399 = vpop.f32.mrf.mxu0
    %v2400 = vadd.f32 0.0, %v2399
    %2401 = vdwg.mxu0
    %2402 = vmatpush.bf16.msra.mxu0 0
    %2403 = vmatpush.bf16.msra.mxu0 0
    %2404 = vmatpush.bf16.msra.mxu0 0
    %2405 = vmatpush.bf16.msra.mxu0 0
    %2406 = vmatpush.bf16.msra.mxu0 0
    %2407 = vmatpush.bf16.msra.mxu0 0
    %2408 = vmatpush.bf16.msra.mxu0 %v2339
    %2409 = vmatpush.bf16.msra.mxu0 %v2326
    %2410 = vmatmul.bf16.gmra.mxu0 %v2378
    %v2411 = vpop.f32.mrf.mxu0
    %v2412 = vadd.f32 0.0, %v2411
    %v2413 = vpop.f32.mrf.mxu0
    %v2414 = vadd.f32 0.0, %v2413
    %2415 = vmatmul.bf16.gmra.mxu0 %v2381
    %v2416 = vpop.f32.mrf.mxu0
    %v2417 = vadd.f32 0.0, %v2416
    %v2418 = vpop.f32.mrf.mxu0
    %v2419 = vadd.f32 0.0, %v2418
    %2420 = vdwg.mxu0
    %2421 = vmatpush.bf16.msra.mxu0 0
    %2422 = vmatpush.bf16.msra.mxu0 0
    %2423 = vmatpush.bf16.msra.mxu0 0
    %2424 = vmatpush.bf16.msra.mxu0 0
    %2425 = vmatpush.bf16.msra.mxu0 0
    %2426 = vmatpush.bf16.msra.mxu0 0
    %2427 = vmatpush.bf16.msra.mxu0 %v2340
    %2428 = vmatpush.bf16.msra.mxu0 %v2327
    %2429 = vmatmul.bf16.gmra.mxu0 %v2378
    %v2430 = vpop.f32.mrf.mxu0
    %v2431 = vadd.f32 0.0, %v2430
    %v2432 = vpop.f32.mrf.mxu0
    %v2433 = vadd.f32 0.0, %v2432
    %2434 = vmatmul.bf16.gmra.mxu0 %v2381
    %v2435 = vpop.f32.mrf.mxu0
    %v2436 = vadd.f32 0.0, %v2435
    %v2437 = vpop.f32.mrf.mxu0
    %v2438 = vadd.f32 0.0, %v2437
    %2439 = vdwg.mxu0
    %2440 = vmatpush.bf16.msra.mxu0 0
    %2441 = vmatpush.bf16.msra.mxu0 0
    %2442 = vmatpush.bf16.msra.mxu0 0
    %2443 = vmatpush.bf16.msra.mxu0 0
    %2444 = vmatpush.bf16.msra.mxu0 0
    %2445 = vmatpush.bf16.msra.mxu0 0
    %2446 = vmatpush.bf16.msra.mxu0 %v2341
    %2447 = vmatpush.bf16.msra.mxu0 %v2328
    %2448 = vmatmul.bf16.gmra.mxu0 %v2378
    %v2449 = vpop.f32.mrf.mxu0
    %v2450 = vadd.f32 0.0, %v2449
    %v2451 = vpop.f32.mrf.mxu0
    %v2452 = vadd.f32 0.0, %v2451
    %2453 = vmatmul.bf16.gmra.mxu0 %v2381
    %v2454 = vpop.f32.mrf.mxu0
    %v2455 = vadd.f32 0.0, %v2454
    %v2456 = vpop.f32.mrf.mxu0
    %v2457 = vadd.f32 0.0, %v2456
    %2458 = vdwg.mxu0
    %2459 = vmatpush.bf16.msra.mxu0 0
    %2460 = vmatpush.bf16.msra.mxu0 0
    %2461 = vmatpush.bf16.msra.mxu0 0
    %2462 = vmatpush.bf16.msra.mxu0 0
    %2463 = vmatpush.bf16.msra.mxu0 0
    %2464 = vmatpush.bf16.msra.mxu0 0
    %2465 = vmatpush.bf16.msra.mxu0 %v2342
    %2466 = vmatpush.bf16.msra.mxu0 %v2329
    %2467 = vmatmul.bf16.gmra.mxu0 %v2378
    %v2468 = vpop.f32.mrf.mxu0
    %v2469 = vadd.f32 0.0, %v2468
    %v2470 = vpop.f32.mrf.mxu0
    %v2471 = vadd.f32 0.0, %v2470
    %2472 = vmatmul.bf16.gmra.mxu0 %v2381
    %v2473 = vpop.f32.mrf.mxu0
    %v2474 = vadd.f32 0.0, %v2473
    %v2475 = vpop.f32.mrf.mxu0
    %v2476 = vadd.f32 0.0, %v2475
    %2477 = vdwg.mxu0
    %2478 = vmatpush.bf16.msra.mxu0 0
    %2479 = vmatpush.bf16.msra.mxu0 0
    %2480 = vmatpush.bf16.msra.mxu0 0
    %2481 = vmatpush.bf16.msra.mxu0 0
    %2482 = vmatpush.bf16.msra.mxu0 0
    %2483 = vmatpush.bf16.msra.mxu0 0
    %2484 = vmatpush.bf16.msra.mxu0 %v2343
    %2485 = vmatpush.bf16.msra.mxu0 %v2330
    %2486 = vmatmul.bf16.gmra.mxu0 %v2378
    %v2487 = vpop.f32.mrf.mxu0
    %v2488 = vadd.f32 0.0, %v2487
    %v2489 = vpop.f32.mrf.mxu0
    %v2490 = vadd.f32 0.0, %v2489
    %2491 = vmatmul.bf16.gmra.mxu0 %v2381
    %v2492 = vpop.f32.mrf.mxu0
    %v2493 = vadd.f32 0.0, %v2492
    %v2494 = vpop.f32.mrf.mxu0
    %v2495 = vadd.f32 0.0, %v2494
    %2496 = vdwg.mxu0
    %2497 = vmatpush.bf16.msra.mxu0 0
    %2498 = vmatpush.bf16.msra.mxu0 0
    %2499 = vmatpush.bf16.msra.mxu0 0
    %2500 = vmatpush.bf16.msra.mxu0 0
    %2501 = vmatpush.bf16.msra.mxu0 0
    %2502 = vmatpush.bf16.msra.mxu0 0
    %2503 = vmatpush.bf16.msra.mxu0 %v2344
    %2504 = vmatpush.bf16.msra.mxu0 %v2331
    %2505 = vmatmul.bf16.gmra.mxu0 %v2378
    %v2506 = vpop.f32.mrf.mxu0
    %v2507 = vadd.f32 0.0, %v2506
    %v2508 = vpop.f32.mrf.mxu0
    %v2509 = vadd.f32 0.0, %v2508
    %2510 = vmatmul.bf16.gmra.mxu0 %v2381
    %v2511 = vpop.f32.mrf.mxu0
    %v2512 = vadd.f32 0.0, %v2511
    %v2513 = vpop.f32.mrf.mxu0
    %v2514 = vadd.f32 0.0, %v2513
    %2515 = vdwg.mxu0
    %2516 = vmatpush.bf16.msra.mxu0 0
    %2517 = vmatpush.bf16.msra.mxu0 0
    %2518 = vmatpush.bf16.msra.mxu0 0
    %2519 = vmatpush.bf16.msra.mxu0 0
    %2520 = vmatpush.bf16.msra.mxu0 0
    %2521 = vmatpush.bf16.msra.mxu0 0
    %2522 = vmatpush.bf16.msra.mxu0 %v2345
    %2523 = vmatpush.bf16.msra.mxu0 %v2332
    %2524 = vmatmul.bf16.gmra.mxu0 %v2378
    %v2525 = vpop.f32.mrf.mxu0
    %v2526 = vadd.f32 0.0, %v2525
    %v2527 = vpop.f32.mrf.mxu0
    %v2528 = vadd.f32 0.0, %v2527
    %2529 = vmatmul.bf16.gmra.mxu0 %v2381
    %v2530 = vpop.f32.mrf.mxu0
    %v2531 = vadd.f32 0.0, %v2530
    %v2532 = vpop.f32.mrf.mxu0
    %v2533 = vadd.f32 0.0, %v2532
    %2534 = vdwg.mxu0
    %2535 = vmatpush.bf16.msra.mxu0 0
    %2536 = vmatpush.bf16.msra.mxu0 0
    %2537 = vmatpush.bf16.msra.mxu0 0
    %2538 = vmatpush.bf16.msra.mxu0 0
    %2539 = vmatpush.bf16.msra.mxu0 0
    %2540 = vmatpush.bf16.msra.mxu0 0
    %2541 = vmatpush.bf16.msra.mxu0 %v2346
    %2542 = vmatpush.bf16.msra.mxu0 %v2333
    %2543 = vmatmul.bf16.gmra.mxu0 %v2378
    %v2544 = vpop.f32.mrf.mxu0
    %v2545 = vadd.f32 0.0, %v2544
    %v2546 = vpop.f32.mrf.mxu0
    %v2547 = vadd.f32 0.0, %v2546
    %2548 = vmatmul.bf16.gmra.mxu0 %v2381
    %v2549 = vpop.f32.mrf.mxu0
    %v2550 = vadd.f32 0.0, %v2549
    %v2551 = vpop.f32.mrf.mxu0
    %v2552 = vadd.f32 0.0, %v2551
    %2553 = vdwg.mxu0
    %2554 = vmatpush.bf16.msra.mxu0 0
    %2555 = vmatpush.bf16.msra.mxu0 0
    %2556 = vmatpush.bf16.msra.mxu0 0
    %2557 = vmatpush.bf16.msra.mxu0 0
    %2558 = vmatpush.bf16.msra.mxu0 0
    %2559 = vmatpush.bf16.msra.mxu0 0
    %2560 = vmatpush.bf16.msra.mxu0 %v2347
    %2561 = vmatpush.bf16.msra.mxu0 %v2334
    %2562 = vmatmul.bf16.gmra.mxu0 %v2378
    %v2563 = vpop.f32.mrf.mxu0
    %v2564 = vadd.f32 0.0, %v2563
    %v2565 = vpop.f32.mrf.mxu0
    %v2566 = vadd.f32 0.0, %v2565
    %2567 = vmatmul.bf16.gmra.mxu0 %v2381
    %v2568 = vpop.f32.mrf.mxu0
    %v2569 = vadd.f32 0.0, %v2568
    %v2570 = vpop.f32.mrf.mxu0
    %v2571 = vadd.f32 0.0, %v2570
    %2572 = vdwg.mxu0
    %2573 = vmatpush.bf16.msra.mxu0 0
    %2574 = vmatpush.bf16.msra.mxu0 0
    %2575 = vmatpush.bf16.msra.mxu0 0
    %2576 = vmatpush.bf16.msra.mxu0 0
    %2577 = vmatpush.bf16.msra.mxu0 0
    %2578 = vmatpush.bf16.msra.mxu0 0
    %2579 = vmatpush.bf16.msra.mxu0 %v2348
    %2580 = vmatpush.bf16.msra.mxu0 %v2335
    %2581 = vmatmul.bf16.gmra.mxu0 %v2378
    %v2582 = vpop.f32.mrf.mxu0
    %v2583 = vadd.f32 0.0, %v2582
    %v2584 = vpop.f32.mrf.mxu0
    %v2585 = vadd.f32 0.0, %v2584
    %2586 = vmatmul.bf16.gmra.mxu0 %v2381
    %v2587 = vpop.f32.mrf.mxu0
    %v2588 = vadd.f32 0.0, %v2587
    %v2589 = vpop.f32.mrf.mxu0
    %v2590 = vadd.f32 0.0, %v2589
    %2591 = vdwg.mxu0
    %2592 = vmatpush.bf16.msra.mxu0 0
    %2593 = vmatpush.bf16.msra.mxu0 0
    %2594 = vmatpush.bf16.msra.mxu0 0
    %2595 = vmatpush.bf16.msra.mxu0 0
    %2596 = vmatpush.bf16.msra.mxu0 0
    %2597 = vmatpush.bf16.msra.mxu0 0
    %2598 = vmatpush.bf16.msra.mxu0 %v2349
    %2599 = vmatpush.bf16.msra.mxu0 %v2336
    %2600 = vmatmul.bf16.gmra.mxu0 %v2378
    %v2601 = vpop.f32.mrf.mxu0
    %v2602 = vadd.f32 0.0, %v2601
    %v2603 = vpop.f32.mrf.mxu0
    %v2604 = vadd.f32 0.0, %v2603
    %2605 = vmatmul.bf16.gmra.mxu0 %v2381
    %v2606 = vpop.f32.mrf.mxu0
    %v2607 = vadd.f32 0.0, %v2606
    %v2608 = vpop.f32.mrf.mxu0
    %v2609 = vadd.f32 0.0, %v2608
    %2610 = vdwg.mxu0
    %2611 = vmatpush.bf16.msra.mxu0 0
    %2612 = vmatpush.bf16.msra.mxu0 0
    %2613 = vmatpush.bf16.msra.mxu0 0
    %2614 = vmatpush.bf16.msra.mxu0 0
    %2615 = vmatpush.bf16.msra.mxu0 0
    %2616 = vmatpush.bf16.msra.mxu0 0
    %2617 = vmatpush.bf16.msra.mxu0 %v2350
    %2618 = vmatpush.bf16.msra.mxu0 %v2337
    %2619 = vmatmul.bf16.gmra.mxu0 %v2378
    %v2620 = vpop.f32.mrf.mxu0
    %v2621 = vadd.f32 0.0, %v2620
    %v2622 = vpop.f32.mrf.mxu0
    %v2623 = vadd.f32 0.0, %v2622
    %2624 = vmatmul.bf16.gmra.mxu0 %v2381
    %v2625 = vpop.f32.mrf.mxu0
    %v2626 = vadd.f32 0.0, %v2625
    %v2627 = vpop.f32.mrf.mxu0
    %v2628 = vadd.f32 0.0, %v2627
    %2629 = vdwg.mxu0
    %v2630 = vld [vmem:[%s8] sm:$0xff]
    %v2631 = vld [vmem:[%s8 + $0x8] sm:$0xff]
    %v2632 = vld [vmem:[%s8 + $0x10] sm:$0xff]
    %v2633 = vld [vmem:[%s8 + $0x18] sm:$0xff]
    %2635 = vset.pattern.permute.xlu0 0
    %2636 = vperm.xlu0 %2635, %v2630
    %v2637 = vpop.permute.xlu0 %2636
    %2640 = vset.pattern.permute.xlu0 0
    %2641 = vperm.xlu0 %2640, %v2631
    %v2642 = vpop.permute.xlu0 %2641
    %2645 = vset.pattern.permute.xlu0 0
    %2646 = vperm.xlu0 %2645, %v2632
    %v2647 = vpop.permute.xlu0 %2646
    %2650 = vset.pattern.permute.xlu0 0
    %2651 = vperm.xlu0 %2650, %v2633
    %v2652 = vpop.permute.xlu0 %2651
    %v2654 = vadd.f32 %v2393, %v2637
    %v2655 = vadd.f32 %v2395, %v2642
    %v2656 = vadd.f32 %v2398, %v2647
    %v2657 = vadd.f32 %v2400, %v2652
    %v2658 = vtanh.pop %v2654
    %v2659 = vtanh.pop %v2655
    %v2660 = vtanh.pop %v2656
    %v2661 = vtanh.pop %v2657
    %v2662 = vmul.f32 %v2658, %v2658
    %v2663 = vmul.f32 %v2659, %v2659
    %v2664 = vmul.f32 %v2660, %v2660
    %v2665 = vmul.f32 %v2661, %v2661
    %v2666 = vsub.f32 1.0, %v2662
    %v2667 = vsub.f32 1.0, %v2663
    %v2668 = vsub.f32 1.0, %v2664
    %v2669 = vsub.f32 1.0, %v2665
    %v2670 = vmul.f32 %v2658, -2.0
    %v2671 = vmul.f32 %v2659, -2.0
    %v2672 = vmul.f32 %v2660, -2.0
    %v2673 = vmul.f32 %v2661, -2.0
    %v2674 = vmul.f32 %v2670, %v2666
    %v2675 = vmul.f32 %v2671, %v2667
    %v2676 = vmul.f32 %v2672, %v2668
    %v2677 = vmul.f32 %v2673, %v2669
    %v2678 = vmul.f32 %v2666, 2.0
    %v2679 = vmul.f32 %v2667, 2.0
    %v2680 = vmul.f32 %v2668, 2.0
    %v2681 = vmul.f32 %v2669, 2.0
    %v2682 = vmul.f32 %v2662, 3.0
    %v2683 = vmul.f32 %v2663, 3.0
    %v2684 = vmul.f32 %v2664, 3.0
    %v2685 = vmul.f32 %v2665, 3.0
    %v2686 = vsub.f32 %v2682, 1.0
    %v2687 = vsub.f32 %v2683, 1.0
    %v2688 = vsub.f32 %v2684, 1.0
    %v2689 = vsub.f32 %v2685, 1.0
    %v2690 = vmul.f32 %v2678, %v2686
    %v2691 = vmul.f32 %v2679, %v2687
    %v2692 = vmul.f32 %v2680, %v2688
    %v2693 = vmul.f32 %v2681, %v2689
    %v2694 = vmul.f32 %v2412, %v2412
    %v2695 = vmul.f32 %v2414, %v2414
    %v2696 = vmul.f32 %v2417, %v2417
    %v2697 = vmul.f32 %v2419, %v2419
    %v2698 = vmul.f32 %v2431, %v2431
    %v2699 = vmul.f32 %v2433, %v2433
    %v2700 = vmul.f32 %v2436, %v2436
    %v2701 = vmul.f32 %v2438, %v2438
    %v2702 = vmul.f32 %v2674, %v2412
    %v2703 = vmul.f32 %v2675, %v2414
    %v2704 = vmul.f32 %v2676, %v2417
    %v2705 = vmul.f32 %v2677, %v2419
    %v2706 = vmul.f32 %v2674, %v2431
    %v2707 = vmul.f32 %v2675, %v2433
    %v2708 = vmul.f32 %v2676, %v2436
    %v2709 = vmul.f32 %v2677, %v2438
    %v2710 = vmul.f32 %v2690, %v2694
    %v2711 = vmul.f32 %v2691, %v2695
    %v2712 = vmul.f32 %v2692, %v2696
    %v2713 = vmul.f32 %v2693, %v2697
    %v2714 = vmul.f32 %v2690, %v2698
    %v2715 = vmul.f32 %v2691, %v2699
    %v2716 = vmul.f32 %v2692, %v2700
    %v2717 = vmul.f32 %v2693, %v2701
    %v2718 = vpack.c.bf16 %v2658, %v2658
    %v2719 = vpack.c.bf16 %v2659, %v2659
    %v2720 = vpack.c.bf16 %v2660, %v2660
    %v2721 = vpack.c.bf16 %v2661, %v2661
    %2722 = vst [vmem:[#allocation2] sm:$0xf] %v2718
    %2723 = vst [vmem:[#allocation2 + $0x34] sm:$0xf] %v2719
    %2724 = vst [vmem:[#allocation2 + $0x68] sm:$0xf] %v2720
    %2725 = vst [vmem:[#allocation2 + $0x9c] sm:$0xf] %v2721
    %v2726 = vmul.f32 %v2666, %v2412
    %v2727 = vmul.f32 %v2667, %v2414
    %v2728 = vmul.f32 %v2668, %v2417
    %v2729 = vmul.f32 %v2669, %v2419
    %v2730 = vpack.c.bf16 %v2726, %v2726
    %v2731 = vpack.c.bf16 %v2727, %v2727
    %v2732 = vpack.c.bf16 %v2728, %v2728
    %v2733 = vpack.c.bf16 %v2729, %v2729
    %2734 = vst [vmem:[#allocation2 + $0x4] sm:$0xf] %v2730
    %2735 = vst [vmem:[#allocation2 + $0x38] sm:$0xf] %v2731
    %2736 = vst [vmem:[#allocation2 + $0x6c] sm:$0xf] %v2732
    %2737 = vst [vmem:[#allocation2 + $0xa0] sm:$0xf] %v2733
    %v2738 = vmul.f32 %v2666, %v2431
    %v2739 = vmul.f32 %v2667, %v2433
    %v2740 = vmul.f32 %v2668, %v2436
    %v2741 = vmul.f32 %v2669, %v2438
    %v2742 = vpack.c.bf16 %v2738, %v2738
    %v2743 = vpack.c.bf16 %v2739, %v2739
    %v2744 = vpack.c.bf16 %v2740, %v2740
    %v2745 = vpack.c.bf16 %v2741, %v2741
    %2746 = vst [vmem:[#allocation2 + $0x8] sm:$0xf] %v2742
    %2747 = vst [vmem:[#allocation2 + $0x3c] sm:$0xf] %v2743
    %2748 = vst [vmem:[#allocation2 + $0x70] sm:$0xf] %v2744
    %2749 = vst [vmem:[#allocation2 + $0xa4] sm:$0xf] %v2745
    %v2750 = vmul.f32 %v2666, %v2450
    %v2751 = vmul.f32 %v2667, %v2452
    %v2752 = vmul.f32 %v2668, %v2455
    %v2753 = vmul.f32 %v2669, %v2457
    %v2754 = vpack.c.bf16 %v2750, %v2750
    %v2755 = vpack.c.bf16 %v2751, %v2751
    %v2756 = vpack.c.bf16 %v2752, %v2752
    %v2757 = vpack.c.bf16 %v2753, %v2753
    %2758 = vst [vmem:[#allocation2 + $0xc] sm:$0xf] %v2754
    %2759 = vst [vmem:[#allocation2 + $0x40] sm:$0xf] %v2755
    %2760 = vst [vmem:[#allocation2 + $0x74] sm:$0xf] %v2756
    %2761 = vst [vmem:[#allocation2 + $0xa8] sm:$0xf] %v2757
    %v2762 = vmul.f32 %v2674, %v2694
    %v2763 = vmul.f32 %v2675, %v2695
    %v2764 = vmul.f32 %v2676, %v2696
    %v2765 = vmul.f32 %v2677, %v2697
    %v2766 = vmul.f32 %v2666, %v2469
    %v2767 = vmul.f32 %v2667, %v2471
    %v2768 = vmul.f32 %v2668, %v2474
    %v2769 = vmul.f32 %v2669, %v2476
    %v2770 = vadd.f32 %v2762, %v2766
    %v2771 = vadd.f32 %v2763, %v2767
    %v2772 = vadd.f32 %v2764, %v2768
    %v2773 = vadd.f32 %v2765, %v2769
    %v2774 = vpack.c.bf16 %v2770, %v2770
    %v2775 = vpack.c.bf16 %v2771, %v2771
    %v2776 = vpack.c.bf16 %v2772, %v2772
    %v2777 = vpack.c.bf16 %v2773, %v2773
    %2778 = vst [vmem:[#allocation2 + $0x10] sm:$0xf] %v2774
    %2779 = vst [vmem:[#allocation2 + $0x44] sm:$0xf] %v2775
    %2780 = vst [vmem:[#allocation2 + $0x78] sm:$0xf] %v2776
    %2781 = vst [vmem:[#allocation2 + $0xac] sm:$0xf] %v2777
    %v2782 = vmul.f32 %v2702, %v2431
    %v2783 = vmul.f32 %v2703, %v2433
    %v2784 = vmul.f32 %v2704, %v2436
    %v2785 = vmul.f32 %v2705, %v2438
    %v2786 = vmul.f32 %v2666, %v2488
    %v2787 = vmul.f32 %v2667, %v2490
    %v2788 = vmul.f32 %v2668, %v2493
    %v2789 = vmul.f32 %v2669, %v2495
    %v2790 = vadd.f32 %v2782, %v2786
    %v2791 = vadd.f32 %v2783, %v2787
    %v2792 = vadd.f32 %v2784, %v2788
    %v2793 = vadd.f32 %v2785, %v2789
    %v2794 = vpack.c.bf16 %v2790, %v2790
    %v2795 = vpack.c.bf16 %v2791, %v2791
    %v2796 = vpack.c.bf16 %v2792, %v2792
    %v2797 = vpack.c.bf16 %v2793, %v2793
    %2798 = vst [vmem:[#allocation2 + $0x14] sm:$0xf] %v2794
    %2799 = vst [vmem:[#allocation2 + $0x48] sm:$0xf] %v2795
    %2800 = vst [vmem:[#allocation2 + $0x7c] sm:$0xf] %v2796
    %2801 = vst [vmem:[#allocation2 + $0xb0] sm:$0xf] %v2797
    %v2802 = vmul.f32 %v2702, %v2450
    %v2803 = vmul.f32 %v2703, %v2452
    %v2804 = vmul.f32 %v2704, %v2455
    %v2805 = vmul.f32 %v2705, %v2457
    %v2806 = vmul.f32 %v2666, %v2507
    %v2807 = vmul.f32 %v2667, %v2509
    %v2808 = vmul.f32 %v2668, %v2512
    %v2809 = vmul.f32 %v2669, %v2514
    %v2810 = vadd.f32 %v2802, %v2806
    %v2811 = vadd.f32 %v2803, %v2807
    %v2812 = vadd.f32 %v2804, %v2808
    %v2813 = vadd.f32 %v2805, %v2809
    %v2814 = vpack.c.bf16 %v2810, %v2810
    %v2815 = vpack.c.bf16 %v2811, %v2811
    %v2816 = vpack.c.bf16 %v2812, %v2812
    %v2817 = vpack.c.bf16 %v2813, %v2813
    %2818 = vst [vmem:[#allocation2 + $0x18] sm:$0xf] %v2814
    %2819 = vst [vmem:[#allocation2 + $0x4c] sm:$0xf] %v2815
    %2820 = vst [vmem:[#allocation2 + $0x80] sm:$0xf] %v2816
    %2821 = vst [vmem:[#allocation2 + $0xb4] sm:$0xf] %v2817
    %v2822 = vmul.f32 %v2674, %v2698
    %v2823 = vmul.f32 %v2675, %v2699
    %v2824 = vmul.f32 %v2676, %v2700
    %v2825 = vmul.f32 %v2677, %v2701
    %v2826 = vmul.f32 %v2666, %v2526
    %v2827 = vmul.f32 %v2667, %v2528
    %v2828 = vmul.f32 %v2668, %v2531
    %v2829 = vmul.f32 %v2669, %v2533
    %v2830 = vadd.f32 %v2822, %v2826
    %v2831 = vadd.f32 %v2823, %v2827
    %v2832 = vadd.f32 %v2824, %v2828
    %v2833 = vadd.f32 %v2825, %v2829
    %v2834 = vpack.c.bf16 %v2830, %v2830
    %v2835 = vpack.c.bf16 %v2831, %v2831
    %v2836 = vpack.c.bf16 %v2832, %v2832
    %v2837 = vpack.c.bf16 %v2833, %v2833
    %2838 = vst [vmem:[#allocation2 + $0x1c] sm:$0xf] %v2834
    %2839 = vst [vmem:[#allocation2 + $0x50] sm:$0xf] %v2835
    %2840 = vst [vmem:[#allocation2 + $0x84] sm:$0xf] %v2836
    %2841 = vst [vmem:[#allocation2 + $0xb8] sm:$0xf] %v2837
    %v2842 = vmul.f32 %v2706, %v2450
    %v2843 = vmul.f32 %v2707, %v2452
    %v2844 = vmul.f32 %v2708, %v2455
    %v2845 = vmul.f32 %v2709, %v2457
    %v2846 = vmul.f32 %v2666, %v2545
    %v2847 = vmul.f32 %v2667, %v2547
    %v2848 = vmul.f32 %v2668, %v2550
    %v2849 = vmul.f32 %v2669, %v2552
    %v2850 = vadd.f32 %v2842, %v2846
    %v2851 = vadd.f32 %v2843, %v2847
    %v2852 = vadd.f32 %v2844, %v2848
    %v2853 = vadd.f32 %v2845, %v2849
    %v2854 = vpack.c.bf16 %v2850, %v2850
    %v2855 = vpack.c.bf16 %v2851, %v2851
    %v2856 = vpack.c.bf16 %v2852, %v2852
    %v2857 = vpack.c.bf16 %v2853, %v2853
    %2858 = vst [vmem:[#allocation2 + $0x20] sm:$0xf] %v2854
    %2859 = vst [vmem:[#allocation2 + $0x54] sm:$0xf] %v2855
    %2860 = vst [vmem:[#allocation2 + $0x88] sm:$0xf] %v2856
    %2861 = vst [vmem:[#allocation2 + $0xbc] sm:$0xf] %v2857
    %v2862 = vmul.f32 %v2710, %v2412
    %v2863 = vmul.f32 %v2711, %v2414
    %v2864 = vmul.f32 %v2712, %v2417
    %v2865 = vmul.f32 %v2713, %v2419
    %v2866 = vmul.f32 %v2702, %v2469
    %v2867 = vmul.f32 %v2703, %v2471
    %v2868 = vmul.f32 %v2704, %v2474
    %v2869 = vmul.f32 %v2705, %v2476
    %v2870 = vmul.f32 %v2866, 3.0
    %v2871 = vmul.f32 %v2867, 3.0
    %v2872 = vmul.f32 %v2868, 3.0
    %v2873 = vmul.f32 %v2869, 3.0
    %v2874 = vadd.f32 %v2862, %v2870
    %v2875 = vadd.f32 %v2863, %v2871
    %v2876 = vadd.f32 %v2864, %v2872
    %v2877 = vadd.f32 %v2865, %v2873
    %v2878 = vmul.f32 %v2666, %v2564
    %v2879 = vmul.f32 %v2667, %v2566
    %v2880 = vmul.f32 %v2668, %v2569
    %v2881 = vmul.f32 %v2669, %v2571
    %v2882 = vadd.f32 %v2874, %v2878
    %v2883 = vadd.f32 %v2875, %v2879
    %v2884 = vadd.f32 %v2876, %v2880
    %v2885 = vadd.f32 %v2877, %v2881
    %v2886 = vpack.c.bf16 %v2882, %v2882
    %v2887 = vpack.c.bf16 %v2883, %v2883
    %v2888 = vpack.c.bf16 %v2884, %v2884
    %v2889 = vpack.c.bf16 %v2885, %v2885
    %2890 = vst [vmem:[#allocation2 + $0x24] sm:$0xf] %v2886
    %2891 = vst [vmem:[#allocation2 + $0x58] sm:$0xf] %v2887
    %2892 = vst [vmem:[#allocation2 + $0x8c] sm:$0xf] %v2888
    %2893 = vst [vmem:[#allocation2 + $0xc0] sm:$0xf] %v2889
    %v2894 = vmul.f32 %v2710, %v2431
    %v2895 = vmul.f32 %v2711, %v2433
    %v2896 = vmul.f32 %v2712, %v2436
    %v2897 = vmul.f32 %v2713, %v2438
    %v2898 = vmul.f32 %v2469, %v2431
    %v2899 = vmul.f32 %v2471, %v2433
    %v2900 = vmul.f32 %v2474, %v2436
    %v2901 = vmul.f32 %v2476, %v2438
    %v2902 = vmul.f32 %v2674, %v2898
    %v2903 = vmul.f32 %v2675, %v2899
    %v2904 = vmul.f32 %v2676, %v2900
    %v2905 = vmul.f32 %v2677, %v2901
    %v2906 = vadd.f32 %v2894, %v2902
    %v2907 = vadd.f32 %v2895, %v2903
    %v2908 = vadd.f32 %v2896, %v2904
    %v2909 = vadd.f32 %v2897, %v2905
    %v2910 = vmul.f32 %v2702, %v2488
    %v2911 = vmul.f32 %v2703, %v2490
    %v2912 = vmul.f32 %v2704, %v2493
    %v2913 = vmul.f32 %v2705, %v2495
    %v2914 = vmul.f32 %v2910, 2.0
    %v2915 = vmul.f32 %v2911, 2.0
    %v2916 = vmul.f32 %v2912, 2.0
    %v2917 = vmul.f32 %v2913, 2.0
    %v2918 = vadd.f32 %v2906, %v2914
    %v2919 = vadd.f32 %v2907, %v2915
    %v2920 = vadd.f32 %v2908, %v2916
    %v2921 = vadd.f32 %v2909, %v2917
    %v2922 = vmul.f32 %v2666, %v2583
    %v2923 = vmul.f32 %v2667, %v2585
    %v2924 = vmul.f32 %v2668, %v2588
    %v2925 = vmul.f32 %v2669, %v2590
    %v2926 = vadd.f32 %v2918, %v2922
    %v2927 = vadd.f32 %v2919, %v2923
    %v2928 = vadd.f32 %v2920, %v2924
    %v2929 = vadd.f32 %v2921, %v2925
    %v2930 = vpack.c.bf16 %v2926, %v2926
    %v2931 = vpack.c.bf16 %v2927, %v2927
    %v2932 = vpack.c.bf16 %v2928, %v2928
    %v2933 = vpack.c.bf16 %v2929, %v2929
    %2934 = vst [vmem:[#allocation2 + $0x28] sm:$0xf] %v2930
    %2935 = vst [vmem:[#allocation2 + $0x5c] sm:$0xf] %v2931
    %2936 = vst [vmem:[#allocation2 + $0x90] sm:$0xf] %v2932
    %2937 = vst [vmem:[#allocation2 + $0xc4] sm:$0xf] %v2933
    %v2938 = vmul.f32 %v2714, %v2412
    %v2939 = vmul.f32 %v2715, %v2414
    %v2940 = vmul.f32 %v2716, %v2417
    %v2941 = vmul.f32 %v2717, %v2419
    %v2942 = vmul.f32 %v2526, %v2412
    %v2943 = vmul.f32 %v2528, %v2414
    %v2944 = vmul.f32 %v2531, %v2417
    %v2945 = vmul.f32 %v2533, %v2419
    %v2946 = vmul.f32 %v2674, %v2942
    %v2947 = vmul.f32 %v2675, %v2943
    %v2948 = vmul.f32 %v2676, %v2944
    %v2949 = vmul.f32 %v2677, %v2945
    %v2950 = vadd.f32 %v2938, %v2946
    %v2951 = vadd.f32 %v2939, %v2947
    %v2952 = vadd.f32 %v2940, %v2948
    %v2953 = vadd.f32 %v2941, %v2949
    %v2954 = vmul.f32 %v2706, %v2488
    %v2955 = vmul.f32 %v2707, %v2490
    %v2956 = vmul.f32 %v2708, %v2493
    %v2957 = vmul.f32 %v2709, %v2495
    %v2958 = vmul.f32 %v2954, 2.0
    %v2959 = vmul.f32 %v2955, 2.0
    %v2960 = vmul.f32 %v2956, 2.0
    %v2961 = vmul.f32 %v2957, 2.0
    %v2962 = vadd.f32 %v2950, %v2958
    %v2963 = vadd.f32 %v2951, %v2959
    %v2964 = vadd.f32 %v2952, %v2960
    %v2965 = vadd.f32 %v2953, %v2961
    %v2966 = vmul.f32 %v2666, %v2602
    %v2967 = vmul.f32 %v2667, %v2604
    %v2968 = vmul.f32 %v2668, %v2607
    %v2969 = vmul.f32 %v2669, %v2609
    %v2970 = vadd.f32 %v2962, %v2966
    %v2971 = vadd.f32 %v2963, %v2967
    %v2972 = vadd.f32 %v2964, %v2968
    %v2973 = vadd.f32 %v2965, %v2969
    %v2974 = vpack.c.bf16 %v2970, %v2970
    %v2975 = vpack.c.bf16 %v2971, %v2971
    %v2976 = vpack.c.bf16 %v2972, %v2972
    %v2977 = vpack.c.bf16 %v2973, %v2973
    %2978 = vst [vmem:[#allocation2 + $0x2c] sm:$0xf] %v2974
    %2979 = vst [vmem:[#allocation2 + $0x60] sm:$0xf] %v2975
    %2980 = vst [vmem:[#allocation2 + $0x94] sm:$0xf] %v2976
    %2981 = vst [vmem:[#allocation2 + $0xc8] sm:$0xf] %v2977
    %v2982 = vmul.f32 %v2714, %v2431
    %v2983 = vmul.f32 %v2715, %v2433
    %v2984 = vmul.f32 %v2716, %v2436
    %v2985 = vmul.f32 %v2717, %v2438
    %v2986 = vmul.f32 %v2706, %v2526
    %v2987 = vmul.f32 %v2707, %v2528
    %v2988 = vmul.f32 %v2708, %v2531
    %v2989 = vmul.f32 %v2709, %v2533
    %v2990 = vmul.f32 %v2986, 3.0
    %v2991 = vmul.f32 %v2987, 3.0
    %v2992 = vmul.f32 %v2988, 3.0
    %v2993 = vmul.f32 %v2989, 3.0
    %v2994 = vadd.f32 %v2982, %v2990
    %v2995 = vadd.f32 %v2983, %v2991
    %v2996 = vadd.f32 %v2984, %v2992
    %v2997 = vadd.f32 %v2985, %v2993
    %v2998 = vmul.f32 %v2666, %v2621
    %v2999 = vmul.f32 %v2667, %v2623
    %v3000 = vmul.f32 %v2668, %v2626
    %v3001 = vmul.f32 %v2669, %v2628
    %v3002 = vadd.f32 %v2994, %v2998
    %v3003 = vadd.f32 %v2995, %v2999
    %v3004 = vadd.f32 %v2996, %v3000
    %v3005 = vadd.f32 %v2997, %v3001
    %v3006 = vpack.c.bf16 %v3002, %v3002
    %v3007 = vpack.c.bf16 %v3003, %v3003
    %v3008 = vpack.c.bf16 %v3004, %v3004
    %v3009 = vpack.c.bf16 %v3005, %v3005
    %3010 = vst [vmem:[#allocation2 + $0x30] sm:$0xf] %v3006
    %3011 = vst [vmem:[#allocation2 + $0x64] sm:$0xf] %v3007
    %3012 = vst [vmem:[#allocation2 + $0x98] sm:$0xf] %v3008
    %3013 = vst [vmem:[#allocation2 + $0xcc] sm:$0xf] %v3009
    %v3014 = vld [vmem:[%s9] sm:$0xf]
    %v3015 = vld [vmem:[#allocation2] sm:$0xff]
    %v3016 = vld [vmem:[#allocation2 + $0x8] sm:$0xff]
    %v3017 = vld [vmem:[#allocation2 + $0x10] sm:$0xff]
    %v3018 = vld [vmem:[#allocation2 + $0x18] sm:$0xff]
    %v3019 = vld [vmem:[#allocation2 + $0x20] sm:$0xff]
    %v3020 = vld [vmem:[#allocation2 + $0x28] sm:$0xff]
    %v3021 = vld [vmem:[#allocation2 + $0x30] sm:$0xf]
    %v3022 = vld [vmem:[#allocation2 + $0x34] sm:$0xff]
    %v3023 = vld [vmem:[#allocation2 + $0x3c] sm:$0xff]
    %v3024 = vld [vmem:[#allocation2 + $0x44] sm:$0xff]
    %v3025 = vld [vmem:[#allocation2 + $0x4c] sm:$0xff]
    %v3026 = vld [vmem:[#allocation2 + $0x54] sm:$0xff]
    %v3027 = vld [vmem:[#allocation2 + $0x5c] sm:$0xff]
    %v3028 = vld [vmem:[#allocation2 + $0x64] sm:$0xf]
    %v3029 = vld [vmem:[#allocation2 + $0x68] sm:$0xff]
    %v3030 = vld [vmem:[#allocation2 + $0x70] sm:$0xff]
    %v3031 = vld [vmem:[#allocation2 + $0x78] sm:$0xff]
    %v3032 = vld [vmem:[#allocation2 + $0x80] sm:$0xff]
    %v3033 = vld [vmem:[#allocation2 + $0x88] sm:$0xff]
    %v3034 = vld [vmem:[#allocation2 + $0x90] sm:$0xff]
    %v3035 = vld [vmem:[#allocation2 + $0x98] sm:$0xf]
    %v3036 = vld [vmem:[#allocation2 + $0x9c] sm:$0xff]
    %v3037 = vld [vmem:[#allocation2 + $0xa4] sm:$0xff]
    %v3038 = vld [vmem:[#allocation2 + $0xac] sm:$0xff]
    %v3039 = vld [vmem:[#allocation2 + $0xb4] sm:$0xff]
    %v3040 = vld [vmem:[#allocation2 + $0xbc] sm:$0xff]
    %v3041 = vld [vmem:[#allocation2 + $0xc4] sm:$0xff]
    %v3042 = vld [vmem:[#allocation2 + $0xcc] sm:$0xf]
    %v3071 = vunpack.c.l.b16 %v3015
    %v3072 = vunpack.c.h.b16 %v3015
    %v3073 = vunpack.c.l.b16 %v3016
    %v3074 = vunpack.c.l.b16 %v3017
    %v3075 = vunpack.c.h.b16 %v3017
    %v3076 = vunpack.c.l.b16 %v3018
    %v3077 = vunpack.c.h.b16 %v3018
    %v3078 = vunpack.c.l.b16 %v3019
    %v3079 = vunpack.c.h.b16 %v3019
    %v3080 = vunpack.c.l.b16 %v3020
    %v3081 = vunpack.c.h.b16 %v3020
    %v3082 = vunpack.c.l.b16 %v3021
    %v3083 = vunpack.c.l.b16 %v3022
    %v3084 = vunpack.c.h.b16 %v3022
    %v3085 = vunpack.c.l.b16 %v3023
    %v3086 = vunpack.c.l.b16 %v3024
    %v3087 = vunpack.c.h.b16 %v3024
    %v3088 = vunpack.c.l.b16 %v3025
    %v3089 = vunpack.c.h.b16 %v3025
    %v3090 = vunpack.c.l.b16 %v3026
    %v3091 = vunpack.c.h.b16 %v3026
    %v3092 = vunpack.c.l.b16 %v3027
    %v3093 = vunpack.c.h.b16 %v3027
    %v3094 = vunpack.c.l.b16 %v3028
    %v3095 = vunpack.c.l.b16 %v3029
    %v3096 = vunpack.c.h.b16 %v3029
    %v3097 = vunpack.c.l.b16 %v3030
    %v3098 = vunpack.c.l.b16 %v3031
    %v3099 = vunpack.c.h.b16 %v3031
    %v3100 = vunpack.c.l.b16 %v3032
    %v3101 = vunpack.c.h.b16 %v3032
    %v3102 = vunpack.c.l.b16 %v3033
    %v3103 = vunpack.c.h.b16 %v3033
    %v3104 = vunpack.c.l.b16 %v3034
    %v3105 = vunpack.c.h.b16 %v3034
    %v3106 = vunpack.c.l.b16 %v3035
    %v3107 = vunpack.c.l.b16 %v3036
    %v3108 = vunpack.c.h.b16 %v3036
    %v3109 = vunpack.c.l.b16 %v3037
    %v3110 = vunpack.c.l.b16 %v3038
    %v3111 = vunpack.c.h.b16 %v3038
    %v3112 = vunpack.c.l.b16 %v3039
    %v3113 = vunpack.c.h.b16 %v3039
    %v3114 = vunpack.c.l.b16 %v3040
    %v3115 = vunpack.c.h.b16 %v3040
    %v3116 = vunpack.c.l.b16 %v3041
    %v3117 = vunpack.c.h.b16 %v3041
    %v3118 = vunpack.c.l.b16 %v3042
    %v3119 = vpack.c.b16 %v3083, %v3071
    %v3120 = vpack.c.b16 %v3084, %v3072
    %v3121 = vpack.c.b16 %v3085, %v3073
    %v3122 = vpack.c.b16 %v3086, %v3074
    %v3123 = vpack.c.b16 %v3087, %v3075
    %v3124 = vpack.c.b16 %v3088, %v3076
    %v3125 = vpack.c.b16 %v3089, %v3077
    %v3126 = vpack.c.b16 %v3090, %v3078
    %v3127 = vpack.c.b16 %v3091, %v3079
    %v3128 = vpack.c.b16 %v3092, %v3080
    %v3129 = vpack.c.b16 %v3093, %v3081
    %v3130 = vpack.c.b16 %v3094, %v3082
    %v3131 = vpack.c.b16 %v3107, %v3095
    %v3132 = vpack.c.b16 %v3108, %v3096
    %v3133 = vpack.c.b16 %v3109, %v3097
    %v3134 = vpack.c.b16 %v3110, %v3098
    %v3135 = vpack.c.b16 %v3111, %v3099
    %v3136 = vpack.c.b16 %v3112, %v3100
    %v3137 = vpack.c.b16 %v3113, %v3101
    %v3138 = vpack.c.b16 %v3114, %v3102
    %v3139 = vpack.c.b16 %v3115, %v3103
    %v3140 = vpack.c.b16 %v3116, %v3104
    %v3141 = vpack.c.b16 %v3117, %v3105
    %v3142 = vpack.c.b16 %v3118, %v3106
    %v3168 = vsel %vm754, %v3014, 0
    %3170 = vmatpush.bf16.msra.mxu0 0
    %3171 = vmatpush.bf16.msra.mxu0 0
    %3172 = vmatpush.bf16.msra.mxu0 0
    %3173 = vmatpush.bf16.msra.mxu0 0
    %3174 = vmatpush.bf16.msra.mxu0 0
    %3175 = vmatpush.bf16.msra.mxu0 0
    %3176 = vmatpush.bf16.msra.mxu0 %v3131
    %3177 = vmatpush.bf16.msra.mxu0 %v3119
    %3178 = vmatmul.bf16.gmra.mxu0 %v3168
    %v3179 = vpop.f32.mrf.mxu0
    %v3180 = vadd.f32 0.0, %v3179
    %v3181 = vpop.f32.mrf.mxu0
    %3182 = vdwg.mxu0
    %3183 = vmatpush.bf16.msra.mxu0 0
    %3184 = vmatpush.bf16.msra.mxu0 0
    %3185 = vmatpush.bf16.msra.mxu0 0
    %3186 = vmatpush.bf16.msra.mxu0 0
    %3187 = vmatpush.bf16.msra.mxu0 0
    %3188 = vmatpush.bf16.msra.mxu0 0
    %3189 = vmatpush.bf16.msra.mxu0 %v3132
    %3190 = vmatpush.bf16.msra.mxu0 %v3120
    %3191 = vmatmul.bf16.gmra.mxu0 %v3168
    %v3192 = vpop.f32.mrf.mxu0
    %v3193 = vadd.f32 0.0, %v3192
    %v3194 = vpop.f32.mrf.mxu0
    %3195 = vdwg.mxu0
    %3196 = vmatpush.bf16.msra.mxu0 0
    %3197 = vmatpush.bf16.msra.mxu0 0
    %3198 = vmatpush.bf16.msra.mxu0 0
    %3199 = vmatpush.bf16.msra.mxu0 0
    %3200 = vmatpush.bf16.msra.mxu0 0
    %3201 = vmatpush.bf16.msra.mxu0 0
    %3202 = vmatpush.bf16.msra.mxu0 %v3133
    %3203 = vmatpush.bf16.msra.mxu0 %v3121
    %3204 = vmatmul.bf16.gmra.mxu0 %v3168
    %v3205 = vpop.f32.mrf.mxu0
    %v3206 = vadd.f32 0.0, %v3205
    %v3207 = vpop.f32.mrf.mxu0
    %3208 = vdwg.mxu0
    %3209 = vmatpush.bf16.msra.mxu0 0
    %3210 = vmatpush.bf16.msra.mxu0 0
    %3211 = vmatpush.bf16.msra.mxu0 0
    %3212 = vmatpush.bf16.msra.mxu0 0
    %3213 = vmatpush.bf16.msra.mxu0 0
    %3214 = vmatpush.bf16.msra.mxu0 0
    %3215 = vmatpush.bf16.msra.mxu0 %v3134
    %3216 = vmatpush.bf16.msra.mxu0 %v3122
    %3217 = vmatmul.bf16.gmra.mxu0 %v3168
    %v3218 = vpop.f32.mrf.mxu0
    %v3219 = vadd.f32 0.0, %v3218
    %v3220 = vpop.f32.mrf.mxu0
    %3221 = vdwg.mxu0
    %3222 = vmatpush.bf16.msra.mxu0 0
    %3223 = vmatpush.bf16.msra.mxu0 0
    %3224 = vmatpush.bf16.msra.mxu0 0
    %3225 = vmatpush.bf16.msra.mxu0 0
    %3226 = vmatpush.bf16.msra.mxu0 0
    %3227 = vmatpush.bf16.msra.mxu0 0
    %3228 = vmatpush.bf16.msra.mxu0 %v3135
    %3229 = vmatpush.bf16.msra.mxu0 %v3123
    %3230 = vmatmul.bf16.gmra.mxu0 %v3168
    %v3231 = vpop.f32.mrf.mxu0
    %v3232 = vadd.f32 0.0, %v3231
    %v3233 = vpop.f32.mrf.mxu0
    %3234 = vdwg.mxu0
    %3235 = vmatpush.bf16.msra.mxu0 0
    %3236 = vmatpush.bf16.msra.mxu0 0
    %3237 = vmatpush.bf16.msra.mxu0 0
    %3238 = vmatpush.bf16.msra.mxu0 0
    %3239 = vmatpush.bf16.msra.mxu0 0
    %3240 = vmatpush.bf16.msra.mxu0 0
    %3241 = vmatpush.bf16.msra.mxu0 %v3136
    %3242 = vmatpush.bf16.msra.mxu0 %v3124
    %3243 = vmatmul.bf16.gmra.mxu0 %v3168
    %v3244 = vpop.f32.mrf.mxu0
    %v3245 = vadd.f32 0.0, %v3244
    %v3246 = vpop.f32.mrf.mxu0
    %3247 = vdwg.mxu0
    %3248 = vmatpush.bf16.msra.mxu0 0
    %3249 = vmatpush.bf16.msra.mxu0 0
    %3250 = vmatpush.bf16.msra.mxu0 0
    %3251 = vmatpush.bf16.msra.mxu0 0
    %3252 = vmatpush.bf16.msra.mxu0 0
    %3253 = vmatpush.bf16.msra.mxu0 0
    %3254 = vmatpush.bf16.msra.mxu0 %v3137
    %3255 = vmatpush.bf16.msra.mxu0 %v3125
    %3256 = vmatmul.bf16.gmra.mxu0 %v3168
    %v3257 = vpop.f32.mrf.mxu0
    %v3258 = vadd.f32 0.0, %v3257
    %v3259 = vpop.f32.mrf.mxu0
    %3260 = vdwg.mxu0
    %3261 = vmatpush.bf16.msra.mxu0 0
    %3262 = vmatpush.bf16.msra.mxu0 0
    %3263 = vmatpush.bf16.msra.mxu0 0
    %3264 = vmatpush.bf16.msra.mxu0 0
    %3265 = vmatpush.bf16.msra.mxu0 0
    %3266 = vmatpush.bf16.msra.mxu0 0
    %3267 = vmatpush.bf16.msra.mxu0 %v3138
    %3268 = vmatpush.bf16.msra.mxu0 %v3126
    %3269 = vmatmul.bf16.gmra.mxu0 %v3168
    %v3270 = vpop.f32.mrf.mxu0
    %v3271 = vadd.f32 0.0, %v3270
    %v3272 = vpop.f32.mrf.mxu0
    %3273 = vdwg.mxu0
    %3274 = vmatpush.bf16.msra.mxu0 0
    %3275 = vmatpush.bf16.msra.mxu0 0
    %3276 = vmatpush.bf16.msra.mxu0 0
    %3277 = vmatpush.bf16.msra.mxu0 0
    %3278 = vmatpush.bf16.msra.mxu0 0
    %3279 = vmatpush.bf16.msra.mxu0 0
    %3280 = vmatpush.bf16.msra.mxu0 %v3139
    %3281 = vmatpush.bf16.msra.mxu0 %v3127
    %3282 = vmatmul.bf16.gmra.mxu0 %v3168
    %v3283 = vpop.f32.mrf.mxu0
    %v3284 = vadd.f32 0.0, %v3283
    %v3285 = vpop.f32.mrf.mxu0
    %3286 = vdwg.mxu0
    %3287 = vmatpush.bf16.msra.mxu0 0
    %3288 = vmatpush.bf16.msra.mxu0 0
    %3289 = vmatpush.bf16.msra.mxu0 0
    %3290 = vmatpush.bf16.msra.mxu0 0
    %3291 = vmatpush.bf16.msra.mxu0 0
    %3292 = vmatpush.bf16.msra.mxu0 0
    %3293 = vmatpush.bf16.msra.mxu0 %v3140
    %3294 = vmatpush.bf16.msra.mxu0 %v3128
    %3295 = vmatmul.bf16.gmra.mxu0 %v3168
    %v3296 = vpop.f32.mrf.mxu0
    %v3297 = vadd.f32 0.0, %v3296
    %v3298 = vpop.f32.mrf.mxu0
    %3299 = vdwg.mxu0
    %3300 = vmatpush.bf16.msra.mxu0 0
    %3301 = vmatpush.bf16.msra.mxu0 0
    %3302 = vmatpush.bf16.msra.mxu0 0
    %3303 = vmatpush.bf16.msra.mxu0 0
    %3304 = vmatpush.bf16.msra.mxu0 0
    %3305 = vmatpush.bf16.msra.mxu0 0
    %3306 = vmatpush.bf16.msra.mxu0 %v3141
    %3307 = vmatpush.bf16.msra.mxu0 %v3129
    %3308 = vmatmul.bf16.gmra.mxu0 %v3168
    %v3309 = vpop.f32.mrf.mxu0
    %v3310 = vadd.f32 0.0, %v3309
    %v3311 = vpop.f32.mrf.mxu0
    %3312 = vdwg.mxu0
    %3313 = vmatpush.bf16.msra.mxu0 0
    %3314 = vmatpush.bf16.msra.mxu0 0
    %3315 = vmatpush.bf16.msra.mxu0 0
    %3316 = vmatpush.bf16.msra.mxu0 0
    %3317 = vmatpush.bf16.msra.mxu0 0
    %3318 = vmatpush.bf16.msra.mxu0 0
    %3319 = vmatpush.bf16.msra.mxu0 %v3142
    %3320 = vmatpush.bf16.msra.mxu0 %v3130
    %3321 = vmatmul.bf16.gmra.mxu0 %v3168
    %v3322 = vpop.f32.mrf.mxu0
    %v3323 = vadd.f32 0.0, %v3322
    %v3324 = vpop.f32.mrf.mxu0
    %3325 = vdwg.mxu0
    %v3326 = vld [vmem:[%s10] sm:$0xff]
    %3328 = vset.pattern.permute.xlu0 0
    %3329 = vperm.xlu0 %3328, %v3326
    %v3330 = vpop.permute.xlu0 %3329
    %v3332 = vadd.f32 %v3180, %v3330
    %v3333 = vsub.f32 0.0, %v3193
    %v3334 = vsub.f32 0.0, %v3245
    %v3335 = vsub.f32 0.0, %v3219
    %v3336 = vsub.f32 0.0, %v3232
    %v3337 = vsub.f32 0.0, %v3284
    %v3338 = vsub.f32 0.0, %v3310
    %s3339 = sld [smem:[#allocation3]]
    %s3340 = sld [smem:[#allocation3 + $0x1]]
    %v3341 = vmul.f32 %v3206, %v3232
    %v3342 = vadd.f32 %v3271, %v3341
    %v3343 = vmul.f32 %v3333, %v3258
    %v3344 = vadd.f32 %v3342, %v3343
    %v3345 = vstv %s3339
    %v3346 = vmul.f32 %v3345, %v3344
    %v3348 = vrot.slane %v3193, 1
    %v3350 = vadd.f32 %v3346, %v3348
    %v3351 = vadd.f32 %v3297, %v3323
    %v3352 = vstv %s3340
    %v3353 = vmul.f32 %v3352, %v3351
    %v3354 = vsub.f32 %v3350, %v3353
    %v3355 = vmul.f32 %v3206, %v3335
    %v3356 = vadd.f32 %v3334, %v3355
    %v3357 = vmul.f32 %v3333, %v3336
    %v3358 = vadd.f32 %v3356, %v3357
    %v3359 = vmul.f32 %v3345, %v3358
    %v3361 = vrot.slane %v3206, 1
    %v3363 = vadd.f32 %v3359, %v3361
    %v3364 = vadd.f32 %v3337, %v3338
    %v3365 = vmul.f32 %v3352, %v3364
    %v3366 = vsub.f32 %v3363, %v3365
    %3367 = vst [vmem:[#allocation6 - $0x1] sm:$0x2] %v3332
    %3368 = vst [vmem:[#allocation6 + $0x1] sm:$0x1] %v3206
    %3369 = vst [vmem:[#allocation6 + $0x2] sm:$0x1] %v3333
    %3370 = vst [vmem:[#allocation6 + $0x3] sm:$0x1] %v3354
    %3371 = vst [vmem:[#allocation6 + $0x4] sm:$0x1] %v3366
    %3372 = vst [vmem:[#allocation6 + $0x5] sm:$0x7] 0.0
    // Predicated region
    $region54: #{tpu_custom_call.1} parent=1 // pred_check
      _
    $region55: #{tpu_custom_call.1} parent=1 // pred_check_branch
      %3374 = sbr.rel (0) target = $region57
    $region56: #{tpu_custom_call.1} parent=1 // pred_region
      %3376 = vsyncadd [#allocation4], 0
      %s3378 = sshll.u32 [#allocation6], 4
      %s3379 = int_to_ptr.vmem [resolvable:$true] %s3378
      %s3380 = sshll.u32 %s12, 4
      %s3381 = int_to_ptr.hbm [resolvable:$true] %s3380
      %3383 = dma.vmem_to_hbm [thread:$0]  %s3379, 128, %s3381, [#allocation4]
    $region57: #{tpu_custom_call.1} parent=1 // pred_fallthru
      _
    // Predicated region
    $region58: #{tpu_custom_call.1} parent=1 // pred_check
      _
    $region59: #{tpu_custom_call.1} parent=1 // pred_check_branch
      %3385 = sbr.rel (0) target = $region61
    $region60: #{tpu_custom_call.1} parent=1 // pred_region
      %3387 = dma.done [#allocation4], 128
    $region61: #{tpu_custom_call.1} parent=1 // pred_fallthru
      _
    %3388 = vsyncpa [#allocation4], 1
    %3389 = vsyncpa [#allocation5], 1

</llo_original>
